<compile_context>
chip_gen: v6e
topology: v6e:2x2x1
jax: 0.10.0
libtpu: 0.0.40
codegen_flags: <defaults>
</compile_context>

<pallas_src>
import functools
import math

import jax
import jax.numpy as jnp
import numpy as np
from jax import lax
from jax.experimental import pallas as pl
from jax.experimental.pallas import tpu as pltpu

# ------------------------- model config (small) ------------------------------
B, S = 2, 8          # batch, sequence
D, H, L = 32, 2, 2   # hidden size, num heads, num layers  (args.d, args.num_heads, args.l)
DH = D // H
V = 64               # tiny synthetic vocab
VPAD = ((V + 127) // 128) * 128   # lane-dense LM-head width
MAX_POS = 16
LN_EPS = 1e-5
NEG_INF = -1e9


# ------------------------------ fused Pallas kernel ----------------------------
def _fused_gpt_kernel(
    x_ref, mask_ref,
    ln1g_ref, ln1b_ref, wqkv_ref, bqkv_ref, wo_ref, bo_ref,
    ln2g_ref, ln2b_ref, wfc_ref, bfc_ref, wproj_ref, bproj_ref,
    lnfg_ref, lnfb_ref, wte_t_ref,
    out_ref,
    *, batch, seq, num_layers, num_heads, head_dim, scale):
    """Single grid step: the whole (B*S, D) activation slab + all weights are VMEM-resident."""
    x = x_ref[...].astype(jnp.float32)         # (B*S, D) flattened embeddings
    mask = mask_ref[...]                       # (B, S, S) additive causal + key-padding bias
    d = x.shape[-1]

    def layer_norm(h, g, b):
        mu = jnp.mean(h, axis=-1, keepdims=True)
        var = jnp.mean(jnp.square(h - mu), axis=-1, keepdims=True)
        return (h - mu) * lax.rsqrt(var + LN_EPS) * g + b

    # small per-layer vectors loaded once, sliced per layer (stay 2-D for clean layouts)
    ln1g = ln1g_ref[...]; ln1b = ln1b_ref[...]
    bqkv = bqkv_ref[...]; bo = bo_ref[...]
    ln2g = ln2g_ref[...]; ln2b = ln2b_ref[...]
    bfc = bfc_ref[...]; bproj = bproj_ref[...]

    # TODO(synk): replace with lax.fori_loop / a layer grid axis + streamed weights once L
    # grows beyond a few layers (unrolled Python loop keeps per-layer temporaries live).
    for l in range(num_layers):
        # --- attention sub-block (pre-LN); Q/K/V fused into one MXU matmul over all B*S rows
        h1 = layer_norm(x, ln1g[l:l + 1], ln1b[l:l + 1])
        qkv = jnp.dot(h1, wqkv_ref[l], preferred_element_type=jnp.float32) + bqkv[l:l + 1]
        wo_l = wo_ref[l]                                                # (D, D)

        att_rows = []
        for b in range(batch):                       # causal attention couples only within a seq
            qkv_b = qkv[b * seq:(b + 1) * seq]       # (S, 3D) sublane-aligned row slice
            mb = mask[b]                             # (S, S) precomputed additive bias
            acc = None
            for hh in range(num_heads):
                qh = qkv_b[:, hh * head_dim:(hh + 1) * head_dim]                  # (S, Dh)
                kh = qkv_b[:, d + hh * head_dim: d + (hh + 1) * head_dim]
                vh = qkv_b[:, 2 * d + hh * head_dim: 2 * d + (hh + 1) * head_dim]
                # scores = q @ k^T without materializing the transpose
                sc = lax.dot_general(qh, kh, (((1,), (1,)), ((), ())),
                                     preferred_element_type=jnp.float32) * scale + mb
                sc = sc - jnp.max(sc, axis=-1, keepdims=True)
                p = jnp.exp(sc)
                p = p * pl.reciprocal(jnp.sum(p, axis=-1, keepdims=True), approx=True)
                ctx = jnp.dot(p, vh, preferred_element_type=jnp.float32)          # (S, Dh)
                # fold the head merge into the output projection (no lane concatenate)
                contrib = jnp.dot(ctx, wo_l[hh * head_dim:(hh + 1) * head_dim, :],
                                  preferred_element_type=jnp.float32)             # (S, D)
                acc = contrib if acc is None else acc + contrib
            att_rows.append(acc)
        att = jnp.concatenate(att_rows, axis=0)                         # (B*S, D) row-wise stack
        x = x + att + bo[l:l + 1]

        # --- MLP sub-block (pre-LN) ---
        h2 = layer_norm(x, ln2g[l:l + 1], ln2b[l:l + 1])
        m = jax.nn.gelu(
            jnp.dot(h2, wfc_ref[l], preferred_element_type=jnp.float32) + bfc[l:l + 1],
            approximate=True)                                           # GPT-2 tanh GELU
        x = x + jnp.dot(m, wproj_ref[l], preferred_element_type=jnp.float32) + bproj[l:l + 1]

    xf = layer_norm(x, lnfg_ref[...], lnfb_ref[...])
    # Weight-tied LM head: pre-transposed, pre-padded (D, VPAD) weight, lane-dense store.
    out_ref[...] = jnp.dot(xf, wte_t_ref[...],
                           preferred_element_type=jnp.float32).astype(out_ref.dtype)


def _resident_spec(arr):
    """Full-array VMEM-resident block (single grid step, constant index map).
    At real scale these become streamed/tiled specs with pipeline_mode=pl.Buffered(1)."""
    nd = arr.ndim
    return pl.BlockSpec(arr.shape, lambda i, _nd=nd: (0,) * _nd)


# ------------------------------ parameters ------------------------------------
def init_params(key):
    def nrm(k, shape):
        return jax.random.normal(k, shape, jnp.float32) * 0.02

    keys = iter(jax.random.split(key, 6))
    wte = nrm(next(keys), (V, D))
    return {
        "wte": wte,
        # Tied LM head: built ONCE at init, pre-padded to lane-dense width and pre-transposed
        # to the canonical [K, N] = (D, VPAD) MXU weight layout.
        "wte_lm_t": jnp.pad(wte, ((0, VPAD - V), (0, 0))).T,
        "wpe": nrm(next(keys), (MAX_POS, D)),
        "ln1_g": jnp.ones((L, D), jnp.float32), "ln1_b": jnp.zeros((L, D), jnp.float32),
        "w_qkv": nrm(next(keys), (L, D, 3 * D)), "b_qkv": jnp.zeros((L, 3 * D), jnp.float32),
        "w_o": nrm(next(keys), (L, D, D)), "b_o": jnp.zeros((L, D), jnp.float32),
        "ln2_g": jnp.ones((L, D), jnp.float32), "ln2_b": jnp.zeros((L, D), jnp.float32),
        "w_fc": nrm(next(keys), (L, D, 4 * D)), "b_fc": jnp.zeros((L, 4 * D), jnp.float32),
        "w_proj": nrm(next(keys), (L, 4 * D, D)), "b_proj": jnp.zeros((L, D), jnp.float32),
        "lnf_g": jnp.ones((D,), jnp.float32), "lnf_b": jnp.zeros((D,), jnp.float32),
    }


# ------------------------------ forward (Pallas) -------------------------------
def sonnet_gpt_forward(params, input_ids, attention_mask):
    """logits = hidden_state_to_token(GPT2(input_ids, attention_mask)); dropout=eval."""
    b, s = input_ids.shape
    # embedding gather + positional add: plain-JAX glue (cheap); everything else in-kernel.
    x = (params["wte"][input_ids] + params["wpe"][jnp.arange(s)][None]).reshape(b * s, D)
    # Hoisted additive attention bias: causal mask + key-padding bias, built once per call.
    key_bias = ((1.0 - attention_mask.astype(jnp.float32)) * -1e4)[:, None, :]   # (B,1,S)
    row = lax.broadcasted_iota(jnp.int32, (s, s), 0)
    col = lax.broadcasted_iota(jnp.int32, (s, s), 1)
    mask = jnp.where((col <= row)[None], key_bias, NEG_INF)                      # (B,S,S)

    resident = (
        params["ln1_g"], params["ln1_b"],
        params["w_qkv"], params["b_qkv"],
        params["w_o"], params["b_o"],
        params["ln2_g"], params["ln2_b"],
        params["w_fc"], params["b_fc"],
        params["w_proj"], params["b_proj"],
        params["lnf_g"].reshape(1, D), params["lnf_b"].reshape(1, D),
        params["wte_lm_t"],
    )

    kernel = functools.partial(
        _fused_gpt_kernel, batch=b, seq=s, num_layers=L, num_heads=H, head_dim=DH,
        scale=1.0 / math.sqrt(DH))

    logits_pad = pl.pallas_call(
        kernel,
        out_shape=jax.ShapeDtypeStruct((b * s, VPAD), jnp.float32),
        grid=(1,),                                    # batch folded into the block
        in_specs=[_resident_spec(x), _resident_spec(mask)]
                 + [_resident_spec(w) for w in resident],
        out_specs=pl.BlockSpec((b * s, VPAD), lambda i: (0, 0)),
        compiler_params=pltpu.CompilerParams(dimension_semantics=("arbitrary",)),
    )(x, mask, *resident)
    return logits_pad.reshape(b, s, VPAD)[:, :, :V]


# ------------------------------ pure-JAX reference ------------------------------
def ref_forward(params, input_ids, attention_mask):
    b, s = input_ids.shape
    x = params["wte"][input_ids] + params["wpe"][jnp.arange(s)][None]
    key_bias = (1.0 - attention_mask.astype(jnp.float32)) * -1e4               # (B, S)

    def ln(t, g, bb):
        mu = jnp.mean(t, -1, keepdims=True)
        var = jnp.mean(jnp.square(t - mu), -1, keepdims=True)
        return (t - mu) * lax.rsqrt(var + LN_EPS) * g + bb

    row = lax.broadcasted_iota(jnp.int32, (s, s), 0)
    col = lax.broadcasted_iota(jnp.int32, (s, s), 1)
    for l in range(L):
        h = ln(x, params["ln1_g"][l], params["ln1_b"][l])
        qkv = h @ params["w_qkv"][l] + params["b_qkv"][l]
        q, k, v = jnp.split(qkv, 3, axis=-1)
        q = q.reshape(b, s, H, DH).transpose(0, 2, 1, 3)
        k = k.reshape(b, s, H, DH).transpose(0, 2, 1, 3)
        v = v.reshape(b, s, H, DH).transpose(0, 2, 1, 3)
        sc = jnp.einsum("bhqd,bhkd->bhqk", q, k) / math.sqrt(DH)
        sc = sc + key_bias[:, None, None, :]
        sc = jnp.where((col <= row)[None, None], sc, NEG_INF)
        p = jax.nn.softmax(sc, axis=-1)
        a = jnp.einsum("bhqk,bhkd->bhqd", p, v).transpose(0, 2, 1, 3).reshape(b, s, D)
        x = x + (a @ params["w_o"][l] + params["b_o"][l])
        h2 = ln(x, params["ln2_g"][l], params["ln2_b"][l])
        m = jax.nn.gelu(h2 @ params["w_fc"][l] + params["b_fc"][l], approximate=True)
        x = x + (m @ params["w_proj"][l] + params["b_proj"][l])
    xf = ln(x, params["lnf_g"], params["lnf_b"])
    return xf @ params["wte"].T


# ---------------------------------- main ----------------------------------------
if __name__ == "__main__":
    key = jax.random.PRNGKey(0)
    k_param, k_ids = jax.random.split(key)
    params = init_params(k_param)

    input_ids = jax.random.randint(k_ids, (B, S), 0, V, dtype=jnp.int32)
    attention_mask = jnp.ones((B, S), jnp.int32).at[1, -2:].set(0)   # pad tail of batch 1

    fwd = jax.jit(sonnet_gpt_forward)
    logits = fwd(params, input_ids, attention_mask)
    jax.block_until_ready(logits)

    assert logits.shape == (B, S, V)
    assert bool(jnp.all(jnp.isfinite(logits)))

    ref = ref_forward(params, input_ids, attention_mask)
    np.testing.assert_allclose(np.asarray(logits), np.asarray(ref), atol=1e-2, rtol=1e-2)

    print("KERNEL_OK")
</pallas_src>

<mosaic_0001>
module attributes {stable_mosaic.version = 11 : i64} {
  func.func @_fused_gpt_kernel(%arg0: i32, %arg1: memref<16x32xf32, #tpu.memory_space<vmem>>, %arg2: memref<2x8x8xf32, #tpu.memory_space<vmem>>, %arg3: memref<2x32xf32, #tpu.memory_space<vmem>>, %arg4: memref<2x32xf32, #tpu.memory_space<vmem>>, %arg5: memref<2x32x96xf32, #tpu.memory_space<vmem>>, %arg6: memref<2x96xf32, #tpu.memory_space<vmem>>, %arg7: memref<2x32x32xf32, #tpu.memory_space<vmem>>, %arg8: memref<2x32xf32, #tpu.memory_space<vmem>>, %arg9: memref<2x32xf32, #tpu.memory_space<vmem>>, %arg10: memref<2x32xf32, #tpu.memory_space<vmem>>, %arg11: memref<2x32x128xf32, #tpu.memory_space<vmem>>, %arg12: memref<2x128xf32, #tpu.memory_space<vmem>>, %arg13: memref<2x128x32xf32, #tpu.memory_space<vmem>>, %arg14: memref<2x32xf32, #tpu.memory_space<vmem>>, %arg15: memref<1x32xf32, #tpu.memory_space<vmem>>, %arg16: memref<1x32xf32, #tpu.memory_space<vmem>>, %arg17: memref<32x128xf32, #tpu.memory_space<vmem>>, %arg18: memref<16x128xf32, #tpu.memory_space<vmem>>) attributes {dimension_semantics = [#tpu.dimension_semantics<arbitrary>], iteration_bounds = array<i64: 1>, scalar_prefetch = 0 : i64, scratch_operands = 0 : i64, tpu.core_type = #tpu.core_type<tc>, window_params = [{pipeline_mode = #tpu.pipeline_mode<synchronous>, transform_indices = @transform_0, window_bounds = array<i64: 16, 32>}, {pipeline_mode = #tpu.pipeline_mode<synchronous>, transform_indices = @transform_1, window_bounds = array<i64: 2, 8, 8>}, {pipeline_mode = #tpu.pipeline_mode<synchronous>, transform_indices = @transform_2, window_bounds = array<i64: 2, 32>}, {pipeline_mode = #tpu.pipeline_mode<synchronous>, transform_indices = @transform_3, window_bounds = array<i64: 2, 32>}, {pipeline_mode = #tpu.pipeline_mode<synchronous>, transform_indices = @transform_4, window_bounds = array<i64: 2, 32, 96>}, {pipeline_mode = #tpu.pipeline_mode<synchronous>, transform_indices = @transform_5, window_bounds = array<i64: 2, 96>}, {pipeline_mode = #tpu.pipeline_mode<synchronous>, transform_indices = @transform_6, window_bounds = array<i64: 2, 32, 32>}, {pipeline_mode = #tpu.pipeline_mode<synchronous>, transform_indices = @transform_7, window_bounds = array<i64: 2, 32>}, {pipeline_mode = #tpu.pipeline_mode<synchronous>, transform_indices = @transform_8, window_bounds = array<i64: 2, 32>}, {pipeline_mode = #tpu.pipeline_mode<synchronous>, transform_indices = @transform_9, window_bounds = array<i64: 2, 32>}, {pipeline_mode = #tpu.pipeline_mode<synchronous>, transform_indices = @transform_10, window_bounds = array<i64: 2, 32, 128>}, {pipeline_mode = #tpu.pipeline_mode<synchronous>, transform_indices = @transform_11, window_bounds = array<i64: 2, 128>}, {pipeline_mode = #tpu.pipeline_mode<synchronous>, transform_indices = @transform_12, window_bounds = array<i64: 2, 128, 32>}, {pipeline_mode = #tpu.pipeline_mode<synchronous>, transform_indices = @transform_13, window_bounds = array<i64: 2, 32>}, {pipeline_mode = #tpu.pipeline_mode<synchronous>, transform_indices = @transform_14, window_bounds = array<i64: 1, 32>}, {pipeline_mode = #tpu.pipeline_mode<synchronous>, transform_indices = @transform_15, window_bounds = array<i64: 1, 32>}, {pipeline_mode = #tpu.pipeline_mode<synchronous>, transform_indices = @transform_16, window_bounds = array<i64: 32, 128>}, {pipeline_mode = #tpu.pipeline_mode<synchronous>, transform_indices = @transform_17, window_bounds = array<i64: 16, 128>}]} {
    %c0 = arith.constant 0 : index
    %c0_0 = arith.constant 0 : index
    %0 = vector.load %arg1[%c0, %c0_0] : memref<16x32xf32, #tpu.memory_space<vmem>>, vector<16x32xf32>
    %c0_1 = arith.constant 0 : index
    %c0_2 = arith.constant 0 : index
    %c0_3 = arith.constant 0 : index
    %1 = vector.load %arg2[%c0_1, %c0_2, %c0_3] : memref<2x8x8xf32, #tpu.memory_space<vmem>>, vector<2x8x8xf32>
    %c0_4 = arith.constant 0 : index
    %c0_5 = arith.constant 0 : index
    %2 = vector.load %arg3[%c0_4, %c0_5] : memref<2x32xf32, #tpu.memory_space<vmem>>, vector<2x32xf32>
    %c0_6 = arith.constant 0 : index
    %c0_7 = arith.constant 0 : index
    %3 = vector.load %arg4[%c0_6, %c0_7] : memref<2x32xf32, #tpu.memory_space<vmem>>, vector<2x32xf32>
    %c0_8 = arith.constant 0 : index
    %c0_9 = arith.constant 0 : index
    %4 = vector.load %arg6[%c0_8, %c0_9] : memref<2x96xf32, #tpu.memory_space<vmem>>, vector<2x96xf32>
    %c0_10 = arith.constant 0 : index
    %c0_11 = arith.constant 0 : index
    %5 = vector.load %arg8[%c0_10, %c0_11] : memref<2x32xf32, #tpu.memory_space<vmem>>, vector<2x32xf32>
    %c0_12 = arith.constant 0 : index
    %c0_13 = arith.constant 0 : index
    %6 = vector.load %arg9[%c0_12, %c0_13] : memref<2x32xf32, #tpu.memory_space<vmem>>, vector<2x32xf32>
    %c0_14 = arith.constant 0 : index
    %c0_15 = arith.constant 0 : index
    %7 = vector.load %arg10[%c0_14, %c0_15] : memref<2x32xf32, #tpu.memory_space<vmem>>, vector<2x32xf32>
    %c0_16 = arith.constant 0 : index
    %c0_17 = arith.constant 0 : index
    %8 = vector.load %arg12[%c0_16, %c0_17] : memref<2x128xf32, #tpu.memory_space<vmem>>, vector<2x128xf32>
    %c0_18 = arith.constant 0 : index
    %c0_19 = arith.constant 0 : index
    %9 = vector.load %arg14[%c0_18, %c0_19] : memref<2x32xf32, #tpu.memory_space<vmem>>, vector<2x32xf32>
    %10 = vector.extract_strided_slice %2 {offsets = [0, 0], sizes = [1, 32], strides = [1, 1]} : vector<2x32xf32> to vector<1x32xf32>
    %11 = vector.extract_strided_slice %3 {offsets = [0, 0], sizes = [1, 32], strides = [1, 1]} : vector<2x32xf32> to vector<1x32xf32>
    %cst = arith.constant dense<0.000000e+00> : vector<16xf32>
    %12 = vector.multi_reduction <add>, %0, %cst [1] : vector<16x32xf32> to vector<16xf32>
    %13 = vector.shape_cast %12 : vector<16xf32> to vector<16x1xf32>
    %cst_20 = arith.constant 3.200000e+01 : f32
    %14 = vector.broadcast %cst_20 : f32 to vector<16x1xf32>
    %15 = arith.divf %13, %14 : vector<16x1xf32>
    %16 = vector.broadcast %15 : vector<16x1xf32> to vector<16x32xf32>
    %17 = arith.subf %0, %16 : vector<16x32xf32>
    %18 = arith.mulf %17, %17 : vector<16x32xf32>
    %cst_21 = arith.constant dense<0.000000e+00> : vector<16xf32>
    %19 = vector.multi_reduction <add>, %18, %cst_21 [1] : vector<16x32xf32> to vector<16xf32>
    %20 = vector.shape_cast %19 : vector<16xf32> to vector<16x1xf32>
    %cst_22 = arith.constant 3.200000e+01 : f32
    %21 = vector.broadcast %cst_22 : f32 to vector<16x1xf32>
    %22 = arith.divf %20, %21 : vector<16x1xf32>
    %23 = vector.broadcast %15 : vector<16x1xf32> to vector<16x32xf32>
    %24 = arith.subf %0, %23 : vector<16x32xf32>
    %cst_23 = arith.constant 9.99999974E-6 : f32
    %25 = vector.broadcast %cst_23 : f32 to vector<16x1xf32>
    %26 = arith.addf %22, %25 : vector<16x1xf32>
    %27 = math.rsqrt %26 : vector<16x1xf32>
    %28 = vector.broadcast %27 : vector<16x1xf32> to vector<16x32xf32>
    %29 = arith.mulf %24, %28 : vector<16x32xf32>
    %30 = vector.broadcast %10 : vector<1x32xf32> to vector<16x32xf32>
    %31 = arith.mulf %29, %30 : vector<16x32xf32>
    %32 = vector.broadcast %11 : vector<1x32xf32> to vector<16x32xf32>
    %33 = arith.addf %31, %32 : vector<16x32xf32>
    %c0_24 = arith.constant 0 : index
    %c0_25 = arith.constant 0 : index
    %c0_26 = arith.constant 0 : index
    %34 = vector.load %arg5[%c0_24, %c0_25, %c0_26] : memref<2x32x96xf32, #tpu.memory_space<vmem>>, vector<1x32x96xf32>
    %35 = vector.shape_cast %34 : vector<1x32x96xf32> to vector<32x96xf32>
    %cst_27 = arith.constant dense<0.000000e+00> : vector<16x96xf32>
    %36 = tpu.matmul %33, %35, %cst_27 {dimension_numbers = #tpu.dot_dimension_numbers<[1], [0], [0], [1], [0, 0, 1, 1], [], []>} : vector<16x32xf32>, vector<32x96xf32>, vector<16x96xf32> -> vector<16x96xf32>
    %37 = vector.extract_strided_slice %4 {offsets = [0, 0], sizes = [1, 96], strides = [1, 1]} : vector<2x96xf32> to vector<1x96xf32>
    %38 = vector.broadcast %37 : vector<1x96xf32> to vector<16x96xf32>
    %39 = arith.addf %36, %38 : vector<16x96xf32>
    %c0_28 = arith.constant 0 : index
    %c0_29 = arith.constant 0 : index
    %c0_30 = arith.constant 0 : index
    %40 = vector.load %arg7[%c0_28, %c0_29, %c0_30] : memref<2x32x32xf32, #tpu.memory_space<vmem>>, vector<1x32x32xf32>
    %41 = vector.shape_cast %40 : vector<1x32x32xf32> to vector<32x32xf32>
    %42 = vector.extract_strided_slice %39 {offsets = [0, 0], sizes = [8, 96], strides = [1, 1]} : vector<16x96xf32> to vector<8x96xf32>
    %43 = vector.extract_strided_slice %1 {offsets = [0, 0, 0], sizes = [1, 8, 8], strides = [1, 1, 1]} : vector<2x8x8xf32> to vector<1x8x8xf32>
    %44 = vector.shape_cast %43 : vector<1x8x8xf32> to vector<8x8xf32>
    %45 = vector.extract_strided_slice %42 {offsets = [0, 0], sizes = [8, 16], strides = [1, 1]} : vector<8x96xf32> to vector<8x16xf32>
    %46 = vector.extract_strided_slice %42 {offsets = [0, 32], sizes = [8, 16], strides = [1, 1]} : vector<8x96xf32> to vector<8x16xf32>
    %47 = vector.extract_strided_slice %42 {offsets = [0, 64], sizes = [8, 16], strides = [1, 1]} : vector<8x96xf32> to vector<8x16xf32>
    %cst_31 = arith.constant dense<0.000000e+00> : vector<8x8xf32>
    %48 = tpu.matmul %45, %46, %cst_31 {dimension_numbers = #tpu.dot_dimension_numbers<[1], [1], [0], [0], [0, 0, 1, 0], [], []>} : vector<8x16xf32>, vector<8x16xf32>, vector<8x8xf32> -> vector<8x8xf32>
    %cst_32 = arith.constant 2.500000e-01 : f32
    %49 = vector.broadcast %cst_32 : f32 to vector<8x8xf32>
    %50 = arith.mulf %48, %49 : vector<8x8xf32>
    %51 = arith.addf %50, %44 : vector<8x8xf32>
    %cst_33 = arith.constant dense<0xFF800000> : vector<8xf32>
    %52 = vector.multi_reduction <maximumf>, %51, %cst_33 [1] : vector<8x8xf32> to vector<8xf32>
    %53 = vector.shape_cast %52 : vector<8xf32> to vector<8x1xf32>
    %54 = vector.broadcast %53 : vector<8x1xf32> to vector<8x8xf32>
    %55 = arith.subf %51, %54 : vector<8x8xf32>
    %56 = math.exp %55 : vector<8x8xf32>
    %cst_34 = arith.constant dense<0.000000e+00> : vector<8xf32>
    %57 = vector.multi_reduction <add>, %56, %cst_34 [1] : vector<8x8xf32> to vector<8xf32>
    %58 = vector.shape_cast %57 : vector<8xf32> to vector<8x1xf32>
    %59 = tpu.reciprocal %58 {approx = true} : vector<8x1xf32> -> vector<8x1xf32>
    %60 = vector.broadcast %59 : vector<8x1xf32> to vector<8x8xf32>
    %61 = arith.mulf %56, %60 : vector<8x8xf32>
    %cst_35 = arith.constant dense<0.000000e+00> : vector<8x16xf32>
    %62 = tpu.matmul %61, %47, %cst_35 {dimension_numbers = #tpu.dot_dimension_numbers<[1], [0], [0], [1], [0, 0, 1, 1], [], []>} : vector<8x8xf32>, vector<8x16xf32>, vector<8x16xf32> -> vector<8x16xf32>
    %63 = vector.extract_strided_slice %41 {offsets = [0, 0], sizes = [16, 32], strides = [1, 1]} : vector<32x32xf32> to vector<16x32xf32>
    %cst_36 = arith.constant dense<0.000000e+00> : vector<8x32xf32>
    %64 = tpu.matmul %62, %63, %cst_36 {dimension_numbers = #tpu.dot_dimension_numbers<[1], [0], [0], [1], [0, 0, 1, 1], [], []>} : vector<8x16xf32>, vector<16x32xf32>, vector<8x32xf32> -> vector<8x32xf32>
    %65 = vector.extract_strided_slice %42 {offsets = [0, 16], sizes = [8, 16], strides = [1, 1]} : vector<8x96xf32> to vector<8x16xf32>
    %66 = vector.extract_strided_slice %42 {offsets = [0, 48], sizes = [8, 16], strides = [1, 1]} : vector<8x96xf32> to vector<8x16xf32>
    %67 = vector.extract_strided_slice %42 {offsets = [0, 80], sizes = [8, 16], strides = [1, 1]} : vector<8x96xf32> to vector<8x16xf32>
    %cst_37 = arith.constant dense<0.000000e+00> : vector<8x8xf32>
    %68 = tpu.matmul %65, %66, %cst_37 {dimension_numbers = #tpu.dot_dimension_numbers<[1], [1], [0], [0], [0, 0, 1, 0], [], []>} : vector<8x16xf32>, vector<8x16xf32>, vector<8x8xf32> -> vector<8x8xf32>
    %cst_38 = arith.constant 2.500000e-01 : f32
    %69 = vector.broadcast %cst_38 : f32 to vector<8x8xf32>
    %70 = arith.mulf %68, %69 : vector<8x8xf32>
    %71 = arith.addf %70, %44 : vector<8x8xf32>
    %cst_39 = arith.constant dense<0xFF800000> : vector<8xf32>
    %72 = vector.multi_reduction <maximumf>, %71, %cst_39 [1] : vector<8x8xf32> to vector<8xf32>
    %73 = vector.shape_cast %72 : vector<8xf32> to vector<8x1xf32>
    %74 = vector.broadcast %73 : vector<8x1xf32> to vector<8x8xf32>
    %75 = arith.subf %71, %74 : vector<8x8xf32>
    %76 = math.exp %75 : vector<8x8xf32>
    %cst_40 = arith.constant dense<0.000000e+00> : vector<8xf32>
    %77 = vector.multi_reduction <add>, %76, %cst_40 [1] : vector<8x8xf32> to vector<8xf32>
    %78 = vector.shape_cast %77 : vector<8xf32> to vector<8x1xf32>
    %79 = tpu.reciprocal %78 {approx = true} : vector<8x1xf32> -> vector<8x1xf32>
    %80 = vector.broadcast %79 : vector<8x1xf32> to vector<8x8xf32>
    %81 = arith.mulf %76, %80 : vector<8x8xf32>
    %cst_41 = arith.constant dense<0.000000e+00> : vector<8x16xf32>
    %82 = tpu.matmul %81, %67, %cst_41 {dimension_numbers = #tpu.dot_dimension_numbers<[1], [0], [0], [1], [0, 0, 1, 1], [], []>} : vector<8x8xf32>, vector<8x16xf32>, vector<8x16xf32> -> vector<8x16xf32>
    %83 = vector.extract_strided_slice %41 {offsets = [16, 0], sizes = [16, 32], strides = [1, 1]} : vector<32x32xf32> to vector<16x32xf32>
    %cst_42 = arith.constant dense<0.000000e+00> : vector<8x32xf32>
    %84 = tpu.matmul %82, %83, %cst_42 {dimension_numbers = #tpu.dot_dimension_numbers<[1], [0], [0], [1], [0, 0, 1, 1], [], []>} : vector<8x16xf32>, vector<16x32xf32>, vector<8x32xf32> -> vector<8x32xf32>
    %85 = arith.addf %64, %84 : vector<8x32xf32>
    %86 = vector.extract_strided_slice %39 {offsets = [8, 0], sizes = [8, 96], strides = [1, 1]} : vector<16x96xf32> to vector<8x96xf32>
    %87 = vector.extract_strided_slice %1 {offsets = [1, 0, 0], sizes = [1, 8, 8], strides = [1, 1, 1]} : vector<2x8x8xf32> to vector<1x8x8xf32>
    %88 = vector.shape_cast %87 : vector<1x8x8xf32> to vector<8x8xf32>
    %89 = vector.extract_strided_slice %86 {offsets = [0, 0], sizes = [8, 16], strides = [1, 1]} : vector<8x96xf32> to vector<8x16xf32>
    %90 = vector.extract_strided_slice %86 {offsets = [0, 32], sizes = [8, 16], strides = [1, 1]} : vector<8x96xf32> to vector<8x16xf32>
    %91 = vector.extract_strided_slice %86 {offsets = [0, 64], sizes = [8, 16], strides = [1, 1]} : vector<8x96xf32> to vector<8x16xf32>
    %cst_43 = arith.constant dense<0.000000e+00> : vector<8x8xf32>
    %92 = tpu.matmul %89, %90, %cst_43 {dimension_numbers = #tpu.dot_dimension_numbers<[1], [1], [0], [0], [0, 0, 1, 0], [], []>} : vector<8x16xf32>, vector<8x16xf32>, vector<8x8xf32> -> vector<8x8xf32>
    %cst_44 = arith.constant 2.500000e-01 : f32
    %93 = vector.broadcast %cst_44 : f32 to vector<8x8xf32>
    %94 = arith.mulf %92, %93 : vector<8x8xf32>
    %95 = arith.addf %94, %88 : vector<8x8xf32>
    %cst_45 = arith.constant dense<0xFF800000> : vector<8xf32>
    %96 = vector.multi_reduction <maximumf>, %95, %cst_45 [1] : vector<8x8xf32> to vector<8xf32>
    %97 = vector.shape_cast %96 : vector<8xf32> to vector<8x1xf32>
    %98 = vector.broadcast %97 : vector<8x1xf32> to vector<8x8xf32>
    %99 = arith.subf %95, %98 : vector<8x8xf32>
    %100 = math.exp %99 : vector<8x8xf32>
    %cst_46 = arith.constant dense<0.000000e+00> : vector<8xf32>
    %101 = vector.multi_reduction <add>, %100, %cst_46 [1] : vector<8x8xf32> to vector<8xf32>
    %102 = vector.shape_cast %101 : vector<8xf32> to vector<8x1xf32>
    %103 = tpu.reciprocal %102 {approx = true} : vector<8x1xf32> -> vector<8x1xf32>
    %104 = vector.broadcast %103 : vector<8x1xf32> to vector<8x8xf32>
    %105 = arith.mulf %100, %104 : vector<8x8xf32>
    %cst_47 = arith.constant dense<0.000000e+00> : vector<8x16xf32>
    %106 = tpu.matmul %105, %91, %cst_47 {dimension_numbers = #tpu.dot_dimension_numbers<[1], [0], [0], [1], [0, 0, 1, 1], [], []>} : vector<8x8xf32>, vector<8x16xf32>, vector<8x16xf32> -> vector<8x16xf32>
    %107 = vector.extract_strided_slice %41 {offsets = [0, 0], sizes = [16, 32], strides = [1, 1]} : vector<32x32xf32> to vector<16x32xf32>
    %cst_48 = arith.constant dense<0.000000e+00> : vector<8x32xf32>
    %108 = tpu.matmul %106, %107, %cst_48 {dimension_numbers = #tpu.dot_dimension_numbers<[1], [0], [0], [1], [0, 0, 1, 1], [], []>} : vector<8x16xf32>, vector<16x32xf32>, vector<8x32xf32> -> vector<8x32xf32>
    %109 = vector.extract_strided_slice %86 {offsets = [0, 16], sizes = [8, 16], strides = [1, 1]} : vector<8x96xf32> to vector<8x16xf32>
    %110 = vector.extract_strided_slice %86 {offsets = [0, 48], sizes = [8, 16], strides = [1, 1]} : vector<8x96xf32> to vector<8x16xf32>
    %111 = vector.extract_strided_slice %86 {offsets = [0, 80], sizes = [8, 16], strides = [1, 1]} : vector<8x96xf32> to vector<8x16xf32>
    %cst_49 = arith.constant dense<0.000000e+00> : vector<8x8xf32>
    %112 = tpu.matmul %109, %110, %cst_49 {dimension_numbers = #tpu.dot_dimension_numbers<[1], [1], [0], [0], [0, 0, 1, 0], [], []>} : vector<8x16xf32>, vector<8x16xf32>, vector<8x8xf32> -> vector<8x8xf32>
    %cst_50 = arith.constant 2.500000e-01 : f32
    %113 = vector.broadcast %cst_50 : f32 to vector<8x8xf32>
    %114 = arith.mulf %112, %113 : vector<8x8xf32>
    %115 = arith.addf %114, %88 : vector<8x8xf32>
    %cst_51 = arith.constant dense<0xFF800000> : vector<8xf32>
    %116 = vector.multi_reduction <maximumf>, %115, %cst_51 [1] : vector<8x8xf32> to vector<8xf32>
    %117 = vector.shape_cast %116 : vector<8xf32> to vector<8x1xf32>
    %118 = vector.broadcast %117 : vector<8x1xf32> to vector<8x8xf32>
    %119 = arith.subf %115, %118 : vector<8x8xf32>
    %120 = math.exp %119 : vector<8x8xf32>
    %cst_52 = arith.constant dense<0.000000e+00> : vector<8xf32>
    %121 = vector.multi_reduction <add>, %120, %cst_52 [1] : vector<8x8xf32> to vector<8xf32>
    %122 = vector.shape_cast %121 : vector<8xf32> to vector<8x1xf32>
    %123 = tpu.reciprocal %122 {approx = true} : vector<8x1xf32> -> vector<8x1xf32>
    %124 = vector.broadcast %123 : vector<8x1xf32> to vector<8x8xf32>
    %125 = arith.mulf %120, %124 : vector<8x8xf32>
    %cst_53 = arith.constant dense<0.000000e+00> : vector<8x16xf32>
    %126 = tpu.matmul %125, %111, %cst_53 {dimension_numbers = #tpu.dot_dimension_numbers<[1], [0], [0], [1], [0, 0, 1, 1], [], []>} : vector<8x8xf32>, vector<8x16xf32>, vector<8x16xf32> -> vector<8x16xf32>
    %127 = vector.extract_strided_slice %41 {offsets = [16, 0], sizes = [16, 32], strides = [1, 1]} : vector<32x32xf32> to vector<16x32xf32>
    %cst_54 = arith.constant dense<0.000000e+00> : vector<8x32xf32>
    %128 = tpu.matmul %126, %127, %cst_54 {dimension_numbers = #tpu.dot_dimension_numbers<[1], [0], [0], [1], [0, 0, 1, 1], [], []>} : vector<8x16xf32>, vector<16x32xf32>, vector<8x32xf32> -> vector<8x32xf32>
    %129 = arith.addf %108, %128 : vector<8x32xf32>
    %130 = tpu.concatenate %85, %129 in 0 : vector<8x32xf32>, vector<8x32xf32> -> vector<16x32xf32>
    %131 = arith.addf %0, %130 : vector<16x32xf32>
    %132 = vector.extract_strided_slice %5 {offsets = [0, 0], sizes = [1, 32], strides = [1, 1]} : vector<2x32xf32> to vector<1x32xf32>
    %133 = vector.broadcast %132 : vector<1x32xf32> to vector<16x32xf32>
    %134 = arith.addf %131, %133 : vector<16x32xf32>
    %135 = vector.extract_strided_slice %6 {offsets = [0, 0], sizes = [1, 32], strides = [1, 1]} : vector<2x32xf32> to vector<1x32xf32>
    %136 = vector.extract_strided_slice %7 {offsets = [0, 0], sizes = [1, 32], strides = [1, 1]} : vector<2x32xf32> to vector<1x32xf32>
    %cst_55 = arith.constant dense<0.000000e+00> : vector<16xf32>
    %137 = vector.multi_reduction <add>, %134, %cst_55 [1] : vector<16x32xf32> to vector<16xf32>
    %138 = vector.shape_cast %137 : vector<16xf32> to vector<16x1xf32>
    %cst_56 = arith.constant 3.200000e+01 : f32
    %139 = vector.broadcast %cst_56 : f32 to vector<16x1xf32>
    %140 = arith.divf %138, %139 : vector<16x1xf32>
    %141 = vector.broadcast %140 : vector<16x1xf32> to vector<16x32xf32>
    %142 = arith.subf %134, %141 : vector<16x32xf32>
    %143 = arith.mulf %142, %142 : vector<16x32xf32>
    %cst_57 = arith.constant dense<0.000000e+00> : vector<16xf32>
    %144 = vector.multi_reduction <add>, %143, %cst_57 [1] : vector<16x32xf32> to vector<16xf32>
    %145 = vector.shape_cast %144 : vector<16xf32> to vector<16x1xf32>
    %cst_58 = arith.constant 3.200000e+01 : f32
    %146 = vector.broadcast %cst_58 : f32 to vector<16x1xf32>
    %147 = arith.divf %145, %146 : vector<16x1xf32>
    %148 = vector.broadcast %140 : vector<16x1xf32> to vector<16x32xf32>
    %149 = arith.subf %134, %148 : vector<16x32xf32>
    %cst_59 = arith.constant 9.99999974E-6 : f32
    %150 = vector.broadcast %cst_59 : f32 to vector<16x1xf32>
    %151 = arith.addf %147, %150 : vector<16x1xf32>
    %152 = math.rsqrt %151 : vector<16x1xf32>
    %153 = vector.broadcast %152 : vector<16x1xf32> to vector<16x32xf32>
    %154 = arith.mulf %149, %153 : vector<16x32xf32>
    %155 = vector.broadcast %135 : vector<1x32xf32> to vector<16x32xf32>
    %156 = arith.mulf %154, %155 : vector<16x32xf32>
    %157 = vector.broadcast %136 : vector<1x32xf32> to vector<16x32xf32>
    %158 = arith.addf %156, %157 : vector<16x32xf32>
    %c0_60 = arith.constant 0 : index
    %c0_61 = arith.constant 0 : index
    %c0_62 = arith.constant 0 : index
    %159 = vector.load %arg11[%c0_60, %c0_61, %c0_62] : memref<2x32x128xf32, #tpu.memory_space<vmem>>, vector<1x32x128xf32>
    %160 = vector.shape_cast %159 : vector<1x32x128xf32> to vector<32x128xf32>
    %cst_63 = arith.constant dense<0.000000e+00> : vector<16x128xf32>
    %161 = tpu.matmul %158, %160, %cst_63 {dimension_numbers = #tpu.dot_dimension_numbers<[1], [0], [0], [1], [0, 0, 1, 1], [], []>} : vector<16x32xf32>, vector<32x128xf32>, vector<16x128xf32> -> vector<16x128xf32>
    %162 = vector.extract_strided_slice %8 {offsets = [0, 0], sizes = [1, 128], strides = [1, 1]} : vector<2x128xf32> to vector<1x128xf32>
    %163 = vector.broadcast %162 : vector<1x128xf32> to vector<16x128xf32>
    %164 = arith.addf %161, %163 : vector<16x128xf32>
    %165 = arith.mulf %164, %164 : vector<16x128xf32>
    %166 = arith.mulf %164, %165 : vector<16x128xf32>
    %cst_64 = arith.constant 4.471500e-02 : f32
    %167 = vector.broadcast %cst_64 : f32 to vector<16x128xf32>
    %168 = arith.mulf %167, %166 : vector<16x128xf32>
    %169 = arith.addf %164, %168 : vector<16x128xf32>
    %cst_65 = arith.constant 0.797884583 : f32
    %170 = vector.broadcast %cst_65 : f32 to vector<16x128xf32>
    %171 = arith.mulf %170, %169 : vector<16x128xf32>
    %172 = math.tanh %171 : vector<16x128xf32>
    %cst_66 = arith.constant 1.000000e+00 : f32
    %173 = vector.broadcast %cst_66 : f32 to vector<16x128xf32>
    %174 = arith.addf %173, %172 : vector<16x128xf32>
    %cst_67 = arith.constant 5.000000e-01 : f32
    %175 = vector.broadcast %cst_67 : f32 to vector<16x128xf32>
    %176 = arith.mulf %175, %174 : vector<16x128xf32>
    %177 = arith.mulf %164, %176 : vector<16x128xf32>
    %c0_68 = arith.constant 0 : index
    %c0_69 = arith.constant 0 : index
    %c0_70 = arith.constant 0 : index
    %178 = vector.load %arg13[%c0_68, %c0_69, %c0_70] : memref<2x128x32xf32, #tpu.memory_space<vmem>>, vector<1x128x32xf32>
    %179 = vector.shape_cast %178 : vector<1x128x32xf32> to vector<128x32xf32>
    %cst_71 = arith.constant dense<0.000000e+00> : vector<16x32xf32>
    %180 = tpu.matmul %177, %179, %cst_71 {dimension_numbers = #tpu.dot_dimension_numbers<[1], [0], [0], [1], [0, 0, 1, 1], [], []>} : vector<16x128xf32>, vector<128x32xf32>, vector<16x32xf32> -> vector<16x32xf32>
    %181 = arith.addf %134, %180 : vector<16x32xf32>
    %182 = vector.extract_strided_slice %9 {offsets = [0, 0], sizes = [1, 32], strides = [1, 1]} : vector<2x32xf32> to vector<1x32xf32>
    %183 = vector.broadcast %182 : vector<1x32xf32> to vector<16x32xf32>
    %184 = arith.addf %181, %183 : vector<16x32xf32>
    %185 = vector.extract_strided_slice %2 {offsets = [1, 0], sizes = [1, 32], strides = [1, 1]} : vector<2x32xf32> to vector<1x32xf32>
    %186 = vector.extract_strided_slice %3 {offsets = [1, 0], sizes = [1, 32], strides = [1, 1]} : vector<2x32xf32> to vector<1x32xf32>
    %cst_72 = arith.constant dense<0.000000e+00> : vector<16xf32>
    %187 = vector.multi_reduction <add>, %184, %cst_72 [1] : vector<16x32xf32> to vector<16xf32>
    %188 = vector.shape_cast %187 : vector<16xf32> to vector<16x1xf32>
    %cst_73 = arith.constant 3.200000e+01 : f32
    %189 = vector.broadcast %cst_73 : f32 to vector<16x1xf32>
    %190 = arith.divf %188, %189 : vector<16x1xf32>
    %191 = vector.broadcast %190 : vector<16x1xf32> to vector<16x32xf32>
    %192 = arith.subf %184, %191 : vector<16x32xf32>
    %193 = arith.mulf %192, %192 : vector<16x32xf32>
    %cst_74 = arith.constant dense<0.000000e+00> : vector<16xf32>
    %194 = vector.multi_reduction <add>, %193, %cst_74 [1] : vector<16x32xf32> to vector<16xf32>
    %195 = vector.shape_cast %194 : vector<16xf32> to vector<16x1xf32>
    %cst_75 = arith.constant 3.200000e+01 : f32
    %196 = vector.broadcast %cst_75 : f32 to vector<16x1xf32>
    %197 = arith.divf %195, %196 : vector<16x1xf32>
    %198 = vector.broadcast %190 : vector<16x1xf32> to vector<16x32xf32>
    %199 = arith.subf %184, %198 : vector<16x32xf32>
    %cst_76 = arith.constant 9.99999974E-6 : f32
    %200 = vector.broadcast %cst_76 : f32 to vector<16x1xf32>
    %201 = arith.addf %197, %200 : vector<16x1xf32>
    %202 = math.rsqrt %201 : vector<16x1xf32>
    %203 = vector.broadcast %202 : vector<16x1xf32> to vector<16x32xf32>
    %204 = arith.mulf %199, %203 : vector<16x32xf32>
    %205 = vector.broadcast %185 : vector<1x32xf32> to vector<16x32xf32>
    %206 = arith.mulf %204, %205 : vector<16x32xf32>
    %207 = vector.broadcast %186 : vector<1x32xf32> to vector<16x32xf32>
    %208 = arith.addf %206, %207 : vector<16x32xf32>
    %c1 = arith.constant 1 : index
    %c0_77 = arith.constant 0 : index
    %c0_78 = arith.constant 0 : index
    %209 = vector.load %arg5[%c1, %c0_77, %c0_78] : memref<2x32x96xf32, #tpu.memory_space<vmem>>, vector<1x32x96xf32>
    %210 = vector.shape_cast %209 : vector<1x32x96xf32> to vector<32x96xf32>
    %cst_79 = arith.constant dense<0.000000e+00> : vector<16x96xf32>
    %211 = tpu.matmul %208, %210, %cst_79 {dimension_numbers = #tpu.dot_dimension_numbers<[1], [0], [0], [1], [0, 0, 1, 1], [], []>} : vector<16x32xf32>, vector<32x96xf32>, vector<16x96xf32> -> vector<16x96xf32>
    %212 = vector.extract_strided_slice %4 {offsets = [1, 0], sizes = [1, 96], strides = [1, 1]} : vector<2x96xf32> to vector<1x96xf32>
    %213 = vector.broadcast %212 : vector<1x96xf32> to vector<16x96xf32>
    %214 = arith.addf %211, %213 : vector<16x96xf32>
    %c1_80 = arith.constant 1 : index
    %c0_81 = arith.constant 0 : index
    %c0_82 = arith.constant 0 : index
    %215 = vector.load %arg7[%c1_80, %c0_81, %c0_82] : memref<2x32x32xf32, #tpu.memory_space<vmem>>, vector<1x32x32xf32>
    %216 = vector.shape_cast %215 : vector<1x32x32xf32> to vector<32x32xf32>
    %217 = vector.extract_strided_slice %214 {offsets = [0, 0], sizes = [8, 96], strides = [1, 1]} : vector<16x96xf32> to vector<8x96xf32>
    %218 = vector.extract_strided_slice %1 {offsets = [0, 0, 0], sizes = [1, 8, 8], strides = [1, 1, 1]} : vector<2x8x8xf32> to vector<1x8x8xf32>
    %219 = vector.shape_cast %218 : vector<1x8x8xf32> to vector<8x8xf32>
    %220 = vector.extract_strided_slice %217 {offsets = [0, 0], sizes = [8, 16], strides = [1, 1]} : vector<8x96xf32> to vector<8x16xf32>
    %221 = vector.extract_strided_slice %217 {offsets = [0, 32], sizes = [8, 16], strides = [1, 1]} : vector<8x96xf32> to vector<8x16xf32>
    %222 = vector.extract_strided_slice %217 {offsets = [0, 64], sizes = [8, 16], strides = [1, 1]} : vector<8x96xf32> to vector<8x16xf32>
    %cst_83 = arith.constant dense<0.000000e+00> : vector<8x8xf32>
    %223 = tpu.matmul %220, %221, %cst_83 {dimension_numbers = #tpu.dot_dimension_numbers<[1], [1], [0], [0], [0, 0, 1, 0], [], []>} : vector<8x16xf32>, vector<8x16xf32>, vector<8x8xf32> -> vector<8x8xf32>
    %cst_84 = arith.constant 2.500000e-01 : f32
    %224 = vector.broadcast %cst_84 : f32 to vector<8x8xf32>
    %225 = arith.mulf %223, %224 : vector<8x8xf32>
    %226 = arith.addf %225, %219 : vector<8x8xf32>
    %cst_85 = arith.constant dense<0xFF800000> : vector<8xf32>
    %227 = vector.multi_reduction <maximumf>, %226, %cst_85 [1] : vector<8x8xf32> to vector<8xf32>
    %228 = vector.shape_cast %227 : vector<8xf32> to vector<8x1xf32>
    %229 = vector.broadcast %228 : vector<8x1xf32> to vector<8x8xf32>
    %230 = arith.subf %226, %229 : vector<8x8xf32>
    %231 = math.exp %230 : vector<8x8xf32>
    %cst_86 = arith.constant dense<0.000000e+00> : vector<8xf32>
    %232 = vector.multi_reduction <add>, %231, %cst_86 [1] : vector<8x8xf32> to vector<8xf32>
    %233 = vector.shape_cast %232 : vector<8xf32> to vector<8x1xf32>
    %234 = tpu.reciprocal %233 {approx = true} : vector<8x1xf32> -> vector<8x1xf32>
    %235 = vector.broadcast %234 : vector<8x1xf32> to vector<8x8xf32>
    %236 = arith.mulf %231, %235 : vector<8x8xf32>
    %cst_87 = arith.constant dense<0.000000e+00> : vector<8x16xf32>
    %237 = tpu.matmul %236, %222, %cst_87 {dimension_numbers = #tpu.dot_dimension_numbers<[1], [0], [0], [1], [0, 0, 1, 1], [], []>} : vector<8x8xf32>, vector<8x16xf32>, vector<8x16xf32> -> vector<8x16xf32>
    %238 = vector.extract_strided_slice %216 {offsets = [0, 0], sizes = [16, 32], strides = [1, 1]} : vector<32x32xf32> to vector<16x32xf32>
    %cst_88 = arith.constant dense<0.000000e+00> : vector<8x32xf32>
    %239 = tpu.matmul %237, %238, %cst_88 {dimension_numbers = #tpu.dot_dimension_numbers<[1], [0], [0], [1], [0, 0, 1, 1], [], []>} : vector<8x16xf32>, vector<16x32xf32>, vector<8x32xf32> -> vector<8x32xf32>
    %240 = vector.extract_strided_slice %217 {offsets = [0, 16], sizes = [8, 16], strides = [1, 1]} : vector<8x96xf32> to vector<8x16xf32>
    %241 = vector.extract_strided_slice %217 {offsets = [0, 48], sizes = [8, 16], strides = [1, 1]} : vector<8x96xf32> to vector<8x16xf32>
    %242 = vector.extract_strided_slice %217 {offsets = [0, 80], sizes = [8, 16], strides = [1, 1]} : vector<8x96xf32> to vector<8x16xf32>
    %cst_89 = arith.constant dense<0.000000e+00> : vector<8x8xf32>
    %243 = tpu.matmul %240, %241, %cst_89 {dimension_numbers = #tpu.dot_dimension_numbers<[1], [1], [0], [0], [0, 0, 1, 0], [], []>} : vector<8x16xf32>, vector<8x16xf32>, vector<8x8xf32> -> vector<8x8xf32>
    %cst_90 = arith.constant 2.500000e-01 : f32
    %244 = vector.broadcast %cst_90 : f32 to vector<8x8xf32>
    %245 = arith.mulf %243, %244 : vector<8x8xf32>
    %246 = arith.addf %245, %219 : vector<8x8xf32>
    %cst_91 = arith.constant dense<0xFF800000> : vector<8xf32>
    %247 = vector.multi_reduction <maximumf>, %246, %cst_91 [1] : vector<8x8xf32> to vector<8xf32>
    %248 = vector.shape_cast %247 : vector<8xf32> to vector<8x1xf32>
    %249 = vector.broadcast %248 : vector<8x1xf32> to vector<8x8xf32>
    %250 = arith.subf %246, %249 : vector<8x8xf32>
    %251 = math.exp %250 : vector<8x8xf32>
    %cst_92 = arith.constant dense<0.000000e+00> : vector<8xf32>
    %252 = vector.multi_reduction <add>, %251, %cst_92 [1] : vector<8x8xf32> to vector<8xf32>
    %253 = vector.shape_cast %252 : vector<8xf32> to vector<8x1xf32>
    %254 = tpu.reciprocal %253 {approx = true} : vector<8x1xf32> -> vector<8x1xf32>
    %255 = vector.broadcast %254 : vector<8x1xf32> to vector<8x8xf32>
    %256 = arith.mulf %251, %255 : vector<8x8xf32>
    %cst_93 = arith.constant dense<0.000000e+00> : vector<8x16xf32>
    %257 = tpu.matmul %256, %242, %cst_93 {dimension_numbers = #tpu.dot_dimension_numbers<[1], [0], [0], [1], [0, 0, 1, 1], [], []>} : vector<8x8xf32>, vector<8x16xf32>, vector<8x16xf32> -> vector<8x16xf32>
    %258 = vector.extract_strided_slice %216 {offsets = [16, 0], sizes = [16, 32], strides = [1, 1]} : vector<32x32xf32> to vector<16x32xf32>
    %cst_94 = arith.constant dense<0.000000e+00> : vector<8x32xf32>
    %259 = tpu.matmul %257, %258, %cst_94 {dimension_numbers = #tpu.dot_dimension_numbers<[1], [0], [0], [1], [0, 0, 1, 1], [], []>} : vector<8x16xf32>, vector<16x32xf32>, vector<8x32xf32> -> vector<8x32xf32>
    %260 = arith.addf %239, %259 : vector<8x32xf32>
    %261 = vector.extract_strided_slice %214 {offsets = [8, 0], sizes = [8, 96], strides = [1, 1]} : vector<16x96xf32> to vector<8x96xf32>
    %262 = vector.extract_strided_slice %1 {offsets = [1, 0, 0], sizes = [1, 8, 8], strides = [1, 1, 1]} : vector<2x8x8xf32> to vector<1x8x8xf32>
    %263 = vector.shape_cast %262 : vector<1x8x8xf32> to vector<8x8xf32>
    %264 = vector.extract_strided_slice %261 {offsets = [0, 0], sizes = [8, 16], strides = [1, 1]} : vector<8x96xf32> to vector<8x16xf32>
    %265 = vector.extract_strided_slice %261 {offsets = [0, 32], sizes = [8, 16], strides = [1, 1]} : vector<8x96xf32> to vector<8x16xf32>
    %266 = vector.extract_strided_slice %261 {offsets = [0, 64], sizes = [8, 16], strides = [1, 1]} : vector<8x96xf32> to vector<8x16xf32>
    %cst_95 = arith.constant dense<0.000000e+00> : vector<8x8xf32>
    %267 = tpu.matmul %264, %265, %cst_95 {dimension_numbers = #tpu.dot_dimension_numbers<[1], [1], [0], [0], [0, 0, 1, 0], [], []>} : vector<8x16xf32>, vector<8x16xf32>, vector<8x8xf32> -> vector<8x8xf32>
    %cst_96 = arith.constant 2.500000e-01 : f32
    %268 = vector.broadcast %cst_96 : f32 to vector<8x8xf32>
    %269 = arith.mulf %267, %268 : vector<8x8xf32>
    %270 = arith.addf %269, %263 : vector<8x8xf32>
    %cst_97 = arith.constant dense<0xFF800000> : vector<8xf32>
    %271 = vector.multi_reduction <maximumf>, %270, %cst_97 [1] : vector<8x8xf32> to vector<8xf32>
    %272 = vector.shape_cast %271 : vector<8xf32> to vector<8x1xf32>
    %273 = vector.broadcast %272 : vector<8x1xf32> to vector<8x8xf32>
    %274 = arith.subf %270, %273 : vector<8x8xf32>
    %275 = math.exp %274 : vector<8x8xf32>
    %cst_98 = arith.constant dense<0.000000e+00> : vector<8xf32>
    %276 = vector.multi_reduction <add>, %275, %cst_98 [1] : vector<8x8xf32> to vector<8xf32>
    %277 = vector.shape_cast %276 : vector<8xf32> to vector<8x1xf32>
    %278 = tpu.reciprocal %277 {approx = true} : vector<8x1xf32> -> vector<8x1xf32>
    %279 = vector.broadcast %278 : vector<8x1xf32> to vector<8x8xf32>
    %280 = arith.mulf %275, %279 : vector<8x8xf32>
    %cst_99 = arith.constant dense<0.000000e+00> : vector<8x16xf32>
    %281 = tpu.matmul %280, %266, %cst_99 {dimension_numbers = #tpu.dot_dimension_numbers<[1], [0], [0], [1], [0, 0, 1, 1], [], []>} : vector<8x8xf32>, vector<8x16xf32>, vector<8x16xf32> -> vector<8x16xf32>
    %282 = vector.extract_strided_slice %216 {offsets = [0, 0], sizes = [16, 32], strides = [1, 1]} : vector<32x32xf32> to vector<16x32xf32>
    %cst_100 = arith.constant dense<0.000000e+00> : vector<8x32xf32>
    %283 = tpu.matmul %281, %282, %cst_100 {dimension_numbers = #tpu.dot_dimension_numbers<[1], [0], [0], [1], [0, 0, 1, 1], [], []>} : vector<8x16xf32>, vector<16x32xf32>, vector<8x32xf32> -> vector<8x32xf32>
    %284 = vector.extract_strided_slice %261 {offsets = [0, 16], sizes = [8, 16], strides = [1, 1]} : vector<8x96xf32> to vector<8x16xf32>
    %285 = vector.extract_strided_slice %261 {offsets = [0, 48], sizes = [8, 16], strides = [1, 1]} : vector<8x96xf32> to vector<8x16xf32>
    %286 = vector.extract_strided_slice %261 {offsets = [0, 80], sizes = [8, 16], strides = [1, 1]} : vector<8x96xf32> to vector<8x16xf32>
    %cst_101 = arith.constant dense<0.000000e+00> : vector<8x8xf32>
    %287 = tpu.matmul %284, %285, %cst_101 {dimension_numbers = #tpu.dot_dimension_numbers<[1], [1], [0], [0], [0, 0, 1, 0], [], []>} : vector<8x16xf32>, vector<8x16xf32>, vector<8x8xf32> -> vector<8x8xf32>
    %cst_102 = arith.constant 2.500000e-01 : f32
    %288 = vector.broadcast %cst_102 : f32 to vector<8x8xf32>
    %289 = arith.mulf %287, %288 : vector<8x8xf32>
    %290 = arith.addf %289, %263 : vector<8x8xf32>
    %cst_103 = arith.constant dense<0xFF800000> : vector<8xf32>
    %291 = vector.multi_reduction <maximumf>, %290, %cst_103 [1] : vector<8x8xf32> to vector<8xf32>
    %292 = vector.shape_cast %291 : vector<8xf32> to vector<8x1xf32>
    %293 = vector.broadcast %292 : vector<8x1xf32> to vector<8x8xf32>
    %294 = arith.subf %290, %293 : vector<8x8xf32>
    %295 = math.exp %294 : vector<8x8xf32>
    %cst_104 = arith.constant dense<0.000000e+00> : vector<8xf32>
    %296 = vector.multi_reduction <add>, %295, %cst_104 [1] : vector<8x8xf32> to vector<8xf32>
    %297 = vector.shape_cast %296 : vector<8xf32> to vector<8x1xf32>
    %298 = tpu.reciprocal %297 {approx = true} : vector<8x1xf32> -> vector<8x1xf32>
    %299 = vector.broadcast %298 : vector<8x1xf32> to vector<8x8xf32>
    %300 = arith.mulf %295, %299 : vector<8x8xf32>
    %cst_105 = arith.constant dense<0.000000e+00> : vector<8x16xf32>
    %301 = tpu.matmul %300, %286, %cst_105 {dimension_numbers = #tpu.dot_dimension_numbers<[1], [0], [0], [1], [0, 0, 1, 1], [], []>} : vector<8x8xf32>, vector<8x16xf32>, vector<8x16xf32> -> vector<8x16xf32>
    %302 = vector.extract_strided_slice %216 {offsets = [16, 0], sizes = [16, 32], strides = [1, 1]} : vector<32x32xf32> to vector<16x32xf32>
    %cst_106 = arith.constant dense<0.000000e+00> : vector<8x32xf32>
    %303 = tpu.matmul %301, %302, %cst_106 {dimension_numbers = #tpu.dot_dimension_numbers<[1], [0], [0], [1], [0, 0, 1, 1], [], []>} : vector<8x16xf32>, vector<16x32xf32>, vector<8x32xf32> -> vector<8x32xf32>
    %304 = arith.addf %283, %303 : vector<8x32xf32>
    %305 = tpu.concatenate %260, %304 in 0 : vector<8x32xf32>, vector<8x32xf32> -> vector<16x32xf32>
    %306 = arith.addf %184, %305 : vector<16x32xf32>
    %307 = vector.extract_strided_slice %5 {offsets = [1, 0], sizes = [1, 32], strides = [1, 1]} : vector<2x32xf32> to vector<1x32xf32>
    %308 = vector.broadcast %307 : vector<1x32xf32> to vector<16x32xf32>
    %309 = arith.addf %306, %308 : vector<16x32xf32>
    %310 = vector.extract_strided_slice %6 {offsets = [1, 0], sizes = [1, 32], strides = [1, 1]} : vector<2x32xf32> to vector<1x32xf32>
    %311 = vector.extract_strided_slice %7 {offsets = [1, 0], sizes = [1, 32], strides = [1, 1]} : vector<2x32xf32> to vector<1x32xf32>
    %cst_107 = arith.constant dense<0.000000e+00> : vector<16xf32>
    %312 = vector.multi_reduction <add>, %309, %cst_107 [1] : vector<16x32xf32> to vector<16xf32>
    %313 = vector.shape_cast %312 : vector<16xf32> to vector<16x1xf32>
    %cst_108 = arith.constant 3.200000e+01 : f32
    %314 = vector.broadcast %cst_108 : f32 to vector<16x1xf32>
    %315 = arith.divf %313, %314 : vector<16x1xf32>
    %316 = vector.broadcast %315 : vector<16x1xf32> to vector<16x32xf32>
    %317 = arith.subf %309, %316 : vector<16x32xf32>
    %318 = arith.mulf %317, %317 : vector<16x32xf32>
    %cst_109 = arith.constant dense<0.000000e+00> : vector<16xf32>
    %319 = vector.multi_reduction <add>, %318, %cst_109 [1] : vector<16x32xf32> to vector<16xf32>
    %320 = vector.shape_cast %319 : vector<16xf32> to vector<16x1xf32>
    %cst_110 = arith.constant 3.200000e+01 : f32
    %321 = vector.broadcast %cst_110 : f32 to vector<16x1xf32>
    %322 = arith.divf %320, %321 : vector<16x1xf32>
    %323 = vector.broadcast %315 : vector<16x1xf32> to vector<16x32xf32>
    %324 = arith.subf %309, %323 : vector<16x32xf32>
    %cst_111 = arith.constant 9.99999974E-6 : f32
    %325 = vector.broadcast %cst_111 : f32 to vector<16x1xf32>
    %326 = arith.addf %322, %325 : vector<16x1xf32>
    %327 = math.rsqrt %326 : vector<16x1xf32>
    %328 = vector.broadcast %327 : vector<16x1xf32> to vector<16x32xf32>
    %329 = arith.mulf %324, %328 : vector<16x32xf32>
    %330 = vector.broadcast %310 : vector<1x32xf32> to vector<16x32xf32>
    %331 = arith.mulf %329, %330 : vector<16x32xf32>
    %332 = vector.broadcast %311 : vector<1x32xf32> to vector<16x32xf32>
    %333 = arith.addf %331, %332 : vector<16x32xf32>
    %c1_112 = arith.constant 1 : index
    %c0_113 = arith.constant 0 : index
    %c0_114 = arith.constant 0 : index
    %334 = vector.load %arg11[%c1_112, %c0_113, %c0_114] : memref<2x32x128xf32, #tpu.memory_space<vmem>>, vector<1x32x128xf32>
    %335 = vector.shape_cast %334 : vector<1x32x128xf32> to vector<32x128xf32>
    %cst_115 = arith.constant dense<0.000000e+00> : vector<16x128xf32>
    %336 = tpu.matmul %333, %335, %cst_115 {dimension_numbers = #tpu.dot_dimension_numbers<[1], [0], [0], [1], [0, 0, 1, 1], [], []>} : vector<16x32xf32>, vector<32x128xf32>, vector<16x128xf32> -> vector<16x128xf32>
    %337 = vector.extract_strided_slice %8 {offsets = [1, 0], sizes = [1, 128], strides = [1, 1]} : vector<2x128xf32> to vector<1x128xf32>
    %338 = vector.broadcast %337 : vector<1x128xf32> to vector<16x128xf32>
    %339 = arith.addf %336, %338 : vector<16x128xf32>
    %340 = arith.mulf %339, %339 : vector<16x128xf32>
    %341 = arith.mulf %339, %340 : vector<16x128xf32>
    %cst_116 = arith.constant 4.471500e-02 : f32
    %342 = vector.broadcast %cst_116 : f32 to vector<16x128xf32>
    %343 = arith.mulf %342, %341 : vector<16x128xf32>
    %344 = arith.addf %339, %343 : vector<16x128xf32>
    %cst_117 = arith.constant 0.797884583 : f32
    %345 = vector.broadcast %cst_117 : f32 to vector<16x128xf32>
    %346 = arith.mulf %345, %344 : vector<16x128xf32>
    %347 = math.tanh %346 : vector<16x128xf32>
    %cst_118 = arith.constant 1.000000e+00 : f32
    %348 = vector.broadcast %cst_118 : f32 to vector<16x128xf32>
    %349 = arith.addf %348, %347 : vector<16x128xf32>
    %cst_119 = arith.constant 5.000000e-01 : f32
    %350 = vector.broadcast %cst_119 : f32 to vector<16x128xf32>
    %351 = arith.mulf %350, %349 : vector<16x128xf32>
    %352 = arith.mulf %339, %351 : vector<16x128xf32>
    %c1_120 = arith.constant 1 : index
    %c0_121 = arith.constant 0 : index
    %c0_122 = arith.constant 0 : index
    %353 = vector.load %arg13[%c1_120, %c0_121, %c0_122] : memref<2x128x32xf32, #tpu.memory_space<vmem>>, vector<1x128x32xf32>
    %354 = vector.shape_cast %353 : vector<1x128x32xf32> to vector<128x32xf32>
    %cst_123 = arith.constant dense<0.000000e+00> : vector<16x32xf32>
    %355 = tpu.matmul %352, %354, %cst_123 {dimension_numbers = #tpu.dot_dimension_numbers<[1], [0], [0], [1], [0, 0, 1, 1], [], []>} : vector<16x128xf32>, vector<128x32xf32>, vector<16x32xf32> -> vector<16x32xf32>
    %356 = arith.addf %309, %355 : vector<16x32xf32>
    %357 = vector.extract_strided_slice %9 {offsets = [1, 0], sizes = [1, 32], strides = [1, 1]} : vector<2x32xf32> to vector<1x32xf32>
    %358 = vector.broadcast %357 : vector<1x32xf32> to vector<16x32xf32>
    %359 = arith.addf %356, %358 : vector<16x32xf32>
    %c0_124 = arith.constant 0 : index
    %c0_125 = arith.constant 0 : index
    %360 = vector.load %arg15[%c0_124, %c0_125] : memref<1x32xf32, #tpu.memory_space<vmem>>, vector<1x32xf32>
    %c0_126 = arith.constant 0 : index
    %c0_127 = arith.constant 0 : index
    %361 = vector.load %arg16[%c0_126, %c0_127] : memref<1x32xf32, #tpu.memory_space<vmem>>, vector<1x32xf32>
    %cst_128 = arith.constant dense<0.000000e+00> : vector<16xf32>
    %362 = vector.multi_reduction <add>, %359, %cst_128 [1] : vector<16x32xf32> to vector<16xf32>
    %363 = vector.shape_cast %362 : vector<16xf32> to vector<16x1xf32>
    %cst_129 = arith.constant 3.200000e+01 : f32
    %364 = vector.broadcast %cst_129 : f32 to vector<16x1xf32>
    %365 = arith.divf %363, %364 : vector<16x1xf32>
    %366 = vector.broadcast %365 : vector<16x1xf32> to vector<16x32xf32>
    %367 = arith.subf %359, %366 : vector<16x32xf32>
    %368 = arith.mulf %367, %367 : vector<16x32xf32>
    %cst_130 = arith.constant dense<0.000000e+00> : vector<16xf32>
    %369 = vector.multi_reduction <add>, %368, %cst_130 [1] : vector<16x32xf32> to vector<16xf32>
    %370 = vector.shape_cast %369 : vector<16xf32> to vector<16x1xf32>
    %cst_131 = arith.constant 3.200000e+01 : f32
    %371 = vector.broadcast %cst_131 : f32 to vector<16x1xf32>
    %372 = arith.divf %370, %371 : vector<16x1xf32>
    %373 = vector.broadcast %365 : vector<16x1xf32> to vector<16x32xf32>
    %374 = arith.subf %359, %373 : vector<16x32xf32>
    %cst_132 = arith.constant 9.99999974E-6 : f32
    %375 = vector.broadcast %cst_132 : f32 to vector<16x1xf32>
    %376 = arith.addf %372, %375 : vector<16x1xf32>
    %377 = math.rsqrt %376 : vector<16x1xf32>
    %378 = vector.broadcast %377 : vector<16x1xf32> to vector<16x32xf32>
    %379 = arith.mulf %374, %378 : vector<16x32xf32>
    %380 = vector.broadcast %360 : vector<1x32xf32> to vector<16x32xf32>
    %381 = arith.mulf %379, %380 : vector<16x32xf32>
    %382 = vector.broadcast %361 : vector<1x32xf32> to vector<16x32xf32>
    %383 = arith.addf %381, %382 : vector<16x32xf32>
    %c0_133 = arith.constant 0 : index
    %c0_134 = arith.constant 0 : index
    %384 = vector.load %arg17[%c0_133, %c0_134] : memref<32x128xf32, #tpu.memory_space<vmem>>, vector<32x128xf32>
    %cst_135 = arith.constant dense<0.000000e+00> : vector<16x128xf32>
    %385 = tpu.matmul %383, %384, %cst_135 {dimension_numbers = #tpu.dot_dimension_numbers<[1], [0], [0], [1], [0, 0, 1, 1], [], []>} : vector<16x32xf32>, vector<32x128xf32>, vector<16x128xf32> -> vector<16x128xf32>
    %c0_136 = arith.constant 0 : index
    %c0_137 = arith.constant 0 : index
    %386 = vector.load %arg18[%c0_136, %c0_137] : memref<16x128xf32, #tpu.memory_space<vmem>>, vector<16x128xf32>
    tpu.vector_store %arg18[%c0_136, %c0_137], %385 {strides = array<i32>} : memref<16x128xf32, #tpu.memory_space<vmem>>, vector<16x128xf32>,
    return
  }
  func.func @transform_0(%arg0: i32) -> (i32, i32) {
    %c0_i32 = arith.constant 0 : i32
    %c0_i32_0 = arith.constant 0 : i32
    %c0_i32_1 = arith.constant 0 : i32
    return %c0_i32, %c0_i32_0 : i32, i32
  }
  func.func @transform_1(%arg0: i32) -> (i32, i32, i32) {
    %c0_i32 = arith.constant 0 : i32
    %c0_i32_0 = arith.constant 0 : i32
    %c0_i32_1 = arith.constant 0 : i32
    %c0_i32_2 = arith.constant 0 : i32
    return %c0_i32, %c0_i32_0, %c0_i32_1 : i32, i32, i32
  }
  func.func @transform_2(%arg0: i32) -> (i32, i32) {
    %c0_i32 = arith.constant 0 : i32
    %c0_i32_0 = arith.constant 0 : i32
    %c0_i32_1 = arith.constant 0 : i32
    return %c0_i32, %c0_i32_0 : i32, i32
  }
  func.func @transform_3(%arg0: i32) -> (i32, i32) {
    %c0_i32 = arith.constant 0 : i32
    %c0_i32_0 = arith.constant 0 : i32
    %c0_i32_1 = arith.constant 0 : i32
    return %c0_i32, %c0_i32_0 : i32, i32
  }
  func.func @transform_4(%arg0: i32) -> (i32, i32, i32) {
    %c0_i32 = arith.constant 0 : i32
    %c0_i32_0 = arith.constant 0 : i32
    %c0_i32_1 = arith.constant 0 : i32
    %c0_i32_2 = arith.constant 0 : i32
    return %c0_i32, %c0_i32_0, %c0_i32_1 : i32, i32, i32
  }
  func.func @transform_5(%arg0: i32) -> (i32, i32) {
    %c0_i32 = arith.constant 0 : i32
    %c0_i32_0 = arith.constant 0 : i32
    %c0_i32_1 = arith.constant 0 : i32
    return %c0_i32, %c0_i32_0 : i32, i32
  }
  func.func @transform_6(%arg0: i32) -> (i32, i32, i32) {
    %c0_i32 = arith.constant 0 : i32
    %c0_i32_0 = arith.constant 0 : i32
    %c0_i32_1 = arith.constant 0 : i32
    %c0_i32_2 = arith.constant 0 : i32
    return %c0_i32, %c0_i32_0, %c0_i32_1 : i32, i32, i32
  }
  func.func @transform_7(%arg0: i32) -> (i32, i32) {
    %c0_i32 = arith.constant 0 : i32
    %c0_i32_0 = arith.constant 0 : i32
    %c0_i32_1 = arith.constant 0 : i32
    return %c0_i32, %c0_i32_0 : i32, i32
  }
  func.func @transform_8(%arg0: i32) -> (i32, i32) {
    %c0_i32 = arith.constant 0 : i32
    %c0_i32_0 = arith.constant 0 : i32
    %c0_i32_1 = arith.constant 0 : i32
    return %c0_i32, %c0_i32_0 : i32, i32
  }
  func.func @transform_9(%arg0: i32) -> (i32, i32) {
    %c0_i32 = arith.constant 0 : i32
    %c0_i32_0 = arith.constant 0 : i32
    %c0_i32_1 = arith.constant 0 : i32
    return %c0_i32, %c0_i32_0 : i32, i32
  }
  func.func @transform_10(%arg0: i32) -> (i32, i32, i32) {
    %c0_i32 = arith.constant 0 : i32
    %c0_i32_0 = arith.constant 0 : i32
    %c0_i32_1 = arith.constant 0 : i32
    %c0_i32_2 = arith.constant 0 : i32
    return %c0_i32, %c0_i32_0, %c0_i32_1 : i32, i32, i32
  }
  func.func @transform_11(%arg0: i32) -> (i32, i32) {
    %c0_i32 = arith.constant 0 : i32
    %c0_i32_0 = arith.constant 0 : i32
    %c0_i32_1 = arith.constant 0 : i32
    return %c0_i32, %c0_i32_0 : i32, i32
  }
  func.func @transform_12(%arg0: i32) -> (i32, i32, i32) {
    %c0_i32 = arith.constant 0 : i32
    %c0_i32_0 = arith.constant 0 : i32
    %c0_i32_1 = arith.constant 0 : i32
    %c0_i32_2 = arith.constant 0 : i32
    return %c0_i32, %c0_i32_0, %c0_i32_1 : i32, i32, i32
  }
  func.func @transform_13(%arg0: i32) -> (i32, i32) {
    %c0_i32 = arith.constant 0 : i32
    %c0_i32_0 = arith.constant 0 : i32
    %c0_i32_1 = arith.constant 0 : i32
    return %c0_i32, %c0_i32_0 : i32, i32
  }
  func.func @transform_14(%arg0: i32) -> (i32, i32) {
    %c0_i32 = arith.constant 0 : i32
    %c0_i32_0 = arith.constant 0 : i32
    %c0_i32_1 = arith.constant 0 : i32
    return %c0_i32, %c0_i32_0 : i32, i32
  }
  func.func @transform_15(%arg0: i32) -> (i32, i32) {
    %c0_i32 = arith.constant 0 : i32
    %c0_i32_0 = arith.constant 0 : i32
    %c0_i32_1 = arith.constant 0 : i32
    return %c0_i32, %c0_i32_0 : i32, i32
  }
  func.func @transform_16(%arg0: i32) -> (i32, i32) {
    %c0_i32 = arith.constant 0 : i32
    %c0_i32_0 = arith.constant 0 : i32
    %c0_i32_1 = arith.constant 0 : i32
    return %c0_i32, %c0_i32_0 : i32, i32
  }
  func.func @transform_17(%arg0: i32) -> (i32, i32) {
    %c0_i32 = arith.constant 0 : i32
    %c0_i32_0 = arith.constant 0 : i32
    %c0_i32_1 = arith.constant 0 : i32
    return %c0_i32, %c0_i32_0 : i32, i32
  }
}

</mosaic_0001>

<llo_original>
// kernel: sonnet_gpt_forward.1
$region0: #{sonnet_gpt_forward.1}
  #allocation0 [shape = 'u32[]', space=smem, size = 0x4, offset = 0x4, fixed_abs, tag = 'smem constant byte address 0x4 - core index']
  #allocation1 [shape = 'u32[144,128]{1,0:T(1,128)}', space=vmem, size = 0x12000, scoped, tag = 'internal scratch']
  %s0 = inlined_call_operand.vmem [shape: f32[16,32], index: 0, kind: input, shape index: {}]
  %s1 = inlined_call_operand.vmem [shape: f32[2,8,8], index: 1, kind: input, shape index: {}]
  %s2 = inlined_call_operand.vmem [shape: f32[2,32], index: 2, kind: input, shape index: {}]
  %s3 = inlined_call_operand.vmem [shape: f32[2,32], index: 3, kind: input, shape index: {}]
  %s4 = inlined_call_operand.vmem [shape: f32[2,32,96], index: 4, kind: input, shape index: {}]
  %s5 = inlined_call_operand.vmem [shape: f32[2,96], index: 5, kind: input, shape index: {}]
  %s6 = inlined_call_operand.vmem [shape: f32[2,32,32], index: 6, kind: input, shape index: {}]
  %s7 = inlined_call_operand.vmem [shape: f32[2,32], index: 7, kind: input, shape index: {}]
  %s8 = inlined_call_operand.vmem [shape: f32[2,32], index: 8, kind: input, shape index: {}]
  %s9 = inlined_call_operand.vmem [shape: f32[2,32], index: 9, kind: input, shape index: {}]
  %s10 = inlined_call_operand.vmem [shape: f32[2,32,128], index: 10, kind: input, shape index: {}]
  %s11 = inlined_call_operand.vmem [shape: f32[2,128], index: 11, kind: input, shape index: {}]
  %s12 = inlined_call_operand.vmem [shape: f32[2,128,32], index: 12, kind: input, shape index: {}]
  %s13 = inlined_call_operand.vmem [shape: f32[2,32], index: 13, kind: input, shape index: {}]
  %s14 = inlined_call_operand.vmem [shape: f32[1,32], index: 14, kind: input, shape index: {}]
  %s15 = inlined_call_operand.vmem [shape: f32[1,32], index: 15, kind: input, shape index: {}]
  %s16 = inlined_call_operand.vmem [shape: f32[32,128], index: 16, kind: input, shape index: {}]
  %s17 = inlined_call_operand.hbm [shape: f32[16,128], index: 17, kind: output, shape index: {}]
  %s18 = sld [smem:[#allocation0]]
  $region78: #{sonnet_gpt_forward.1} parent=0
    _
  %s20 = ssub.s32 1, %s18
  %s21 = scalar_select 0, %s20, %s18
  $region1: #{sonnet_gpt_forward.1} parent=0
    #allocation2 [shape = 'u8[8192]{0}', space=vmem, size = 0x2000, scoped, tag = 'output window, operand 0, single buffered']
    #allocation3 [shape = 's32[1]{0}', space=sflag, size = 0x4, scoped, tag = 'scoped memory for sonnet_gpt_forward.1']
    %22 = vsyncpa [#allocation3], 0
    // Predicated region
    $region2: #{sonnet_gpt_forward.1} parent=1 // pred_check
      _
    $region3: #{sonnet_gpt_forward.1} parent=1 // pred_check_branch
      %24 = sbr.rel (0) target = $region5
    $region4: #{sonnet_gpt_forward.1} parent=1 // pred_region
      _
    $region5: #{sonnet_gpt_forward.1} parent=1 // pred_fallthru
      _
    // Predicated region
    $region6: #{sonnet_gpt_forward.1} parent=1 // pred_check
      _
    $region7: #{sonnet_gpt_forward.1} parent=1 // pred_check_branch
      %26 = sbr.rel (0) target = $region9
    $region8: #{sonnet_gpt_forward.1} parent=1 // pred_region
      _
    $region9: #{sonnet_gpt_forward.1} parent=1 // pred_fallthru
      _
    // Predicated region
    $region10: #{sonnet_gpt_forward.1} parent=1 // pred_check
      _
    $region11: #{sonnet_gpt_forward.1} parent=1 // pred_check_branch
      %28 = sbr.rel (0) target = $region13
    $region12: #{sonnet_gpt_forward.1} parent=1 // pred_region
      _
    $region13: #{sonnet_gpt_forward.1} parent=1 // pred_fallthru
      _
    // Predicated region
    $region14: #{sonnet_gpt_forward.1} parent=1 // pred_check
      _
    $region15: #{sonnet_gpt_forward.1} parent=1 // pred_check_branch
      %30 = sbr.rel (0) target = $region17
    $region16: #{sonnet_gpt_forward.1} parent=1 // pred_region
      _
    $region17: #{sonnet_gpt_forward.1} parent=1 // pred_fallthru
      _
    // Predicated region
    $region18: #{sonnet_gpt_forward.1} parent=1 // pred_check
      _
    $region19: #{sonnet_gpt_forward.1} parent=1 // pred_check_branch
      %32 = sbr.rel (0) target = $region21
    $region20: #{sonnet_gpt_forward.1} parent=1 // pred_region
      _
    $region21: #{sonnet_gpt_forward.1} parent=1 // pred_fallthru
      _
    // Predicated region
    $region22: #{sonnet_gpt_forward.1} parent=1 // pred_check
      _
    $region23: #{sonnet_gpt_forward.1} parent=1 // pred_check_branch
      %34 = sbr.rel (0) target = $region25
    $region24: #{sonnet_gpt_forward.1} parent=1 // pred_region
      _
    $region25: #{sonnet_gpt_forward.1} parent=1 // pred_fallthru
      _
    // Predicated region
    $region26: #{sonnet_gpt_forward.1} parent=1 // pred_check
      _
    $region27: #{sonnet_gpt_forward.1} parent=1 // pred_check_branch
      %36 = sbr.rel (0) target = $region29
    $region28: #{sonnet_gpt_forward.1} parent=1 // pred_region
      _
    $region29: #{sonnet_gpt_forward.1} parent=1 // pred_fallthru
      _
    // Predicated region
    $region30: #{sonnet_gpt_forward.1} parent=1 // pred_check
      _
    $region31: #{sonnet_gpt_forward.1} parent=1 // pred_check_branch
      %38 = sbr.rel (0) target = $region33
    $region32: #{sonnet_gpt_forward.1} parent=1 // pred_region
      _
    $region33: #{sonnet_gpt_forward.1} parent=1 // pred_fallthru
      _
    // Predicated region
    $region34: #{sonnet_gpt_forward.1} parent=1 // pred_check
      _
    $region35: #{sonnet_gpt_forward.1} parent=1 // pred_check_branch
      %40 = sbr.rel (0) target = $region37
    $region36: #{sonnet_gpt_forward.1} parent=1 // pred_region
      _
    $region37: #{sonnet_gpt_forward.1} parent=1 // pred_fallthru
      _
    // Predicated region
    $region38: #{sonnet_gpt_forward.1} parent=1 // pred_check
      _
    $region39: #{sonnet_gpt_forward.1} parent=1 // pred_check_branch
      %42 = sbr.rel (0) target = $region41
    $region40: #{sonnet_gpt_forward.1} parent=1 // pred_region
      _
    $region41: #{sonnet_gpt_forward.1} parent=1 // pred_fallthru
      _
    // Predicated region
    $region42: #{sonnet_gpt_forward.1} parent=1 // pred_check
      _
    $region43: #{sonnet_gpt_forward.1} parent=1 // pred_check_branch
      %44 = sbr.rel (0) target = $region45
    $region44: #{sonnet_gpt_forward.1} parent=1 // pred_region
      _
    $region45: #{sonnet_gpt_forward.1} parent=1 // pred_fallthru
      _
    // Predicated region
    $region46: #{sonnet_gpt_forward.1} parent=1 // pred_check
      _
    $region47: #{sonnet_gpt_forward.1} parent=1 // pred_check_branch
      %46 = sbr.rel (0) target = $region49
    $region48: #{sonnet_gpt_forward.1} parent=1 // pred_region
      _
    $region49: #{sonnet_gpt_forward.1} parent=1 // pred_fallthru
      _
    // Predicated region
    $region50: #{sonnet_gpt_forward.1} parent=1 // pred_check
      _
    $region51: #{sonnet_gpt_forward.1} parent=1 // pred_check_branch
      %48 = sbr.rel (0) target = $region53
    $region52: #{sonnet_gpt_forward.1} parent=1 // pred_region
      _
    $region53: #{sonnet_gpt_forward.1} parent=1 // pred_fallthru
      _
    // Predicated region
    $region54: #{sonnet_gpt_forward.1} parent=1 // pred_check
      _
    $region55: #{sonnet_gpt_forward.1} parent=1 // pred_check_branch
      %50 = sbr.rel (0) target = $region57
    $region56: #{sonnet_gpt_forward.1} parent=1 // pred_region
      _
    $region57: #{sonnet_gpt_forward.1} parent=1 // pred_fallthru
      _
    // Predicated region
    $region58: #{sonnet_gpt_forward.1} parent=1 // pred_check
      _
    $region59: #{sonnet_gpt_forward.1} parent=1 // pred_check_branch
      %52 = sbr.rel (0) target = $region61
    $region60: #{sonnet_gpt_forward.1} parent=1 // pred_region
      _
    $region61: #{sonnet_gpt_forward.1} parent=1 // pred_fallthru
      _
    // Predicated region
    $region62: #{sonnet_gpt_forward.1} parent=1 // pred_check
      _
    $region63: #{sonnet_gpt_forward.1} parent=1 // pred_check_branch
      %54 = sbr.rel (0) target = $region65
    $region64: #{sonnet_gpt_forward.1} parent=1 // pred_region
      _
    $region65: #{sonnet_gpt_forward.1} parent=1 // pred_fallthru
      _
    // Predicated region
    $region66: #{sonnet_gpt_forward.1} parent=1 // pred_check
      _
    $region67: #{sonnet_gpt_forward.1} parent=1 // pred_check_branch
      %56 = sbr.rel (0) target = $region69
    $region68: #{sonnet_gpt_forward.1} parent=1 // pred_region
      _
    $region69: #{sonnet_gpt_forward.1} parent=1 // pred_fallthru
      _
    %v57 = vld [vmem:[%s0] sm:$0xff]
    %v58 = vld [vmem:[%s0 + $0x8] sm:$0xff]
    %v59 = vld [vmem:[%s1] sm:$0xff]
    %v60 = vld [vmem:[%s1 + $0x8] sm:$0xff]
    %v61 = vld [vmem:[%s2] sm:$0x3]
    %v62 = vld [vmem:[%s3] sm:$0x3]
    %v63 = vld [vmem:[%s5] sm:$0x3]
    %v64 = vld [vmem:[%s7] sm:$0x3]
    %v65 = vld [vmem:[%s8] sm:$0x3]
    %v66 = vld [vmem:[%s9] sm:$0x3]
    %v67 = vld [vmem:[%s11] sm:$0x3]
    %v68 = vld [vmem:[%s13] sm:$0x3]
    %vm69 = vcmask 261120
    %v70 = vsel %vm69, %v57, 0.0
    %71 = vadd.xlane.f32.xlu0 %v70
    %v72 = vpop.xlane.xlu0 %71
    %v73 = vsel %vm69, %v58, 0.0
    %74 = vadd.xlane.f32.xlu0 %v73
    %v75 = vpop.xlane.xlu0 %74
    %v76 = vrcp.pop 32.0
    %v77 = vmul.f32 %v72, %v76
    %v78 = vmul.f32 %v75, %v76
    %v79 = vsub.f32 %v57, %v77
    %v80 = vsub.f32 %v58, %v78
    %v81 = vmul.f32 %v79, %v79
    %v82 = vmul.f32 %v80, %v80
    %v83 = vsel %vm69, %v81, 0.0
    %84 = vadd.xlane.f32.xlu0 %v83
    %v85 = vpop.xlane.xlu0 %84
    %v86 = vsel %vm69, %v82, 0.0
    %87 = vadd.xlane.f32.xlu0 %v86
    %v88 = vpop.xlane.xlu0 %87
    %v89 = vmul.f32 %v85, %v76
    %v90 = vmul.f32 %v88, %v76
    %v91 = vadd.f32 %v89, 1e-05
    %v92 = vadd.f32 %v90, 1e-05
    %v93 = vrsqrt.pop %v91
    %v94 = vrsqrt.pop %v92
    %v95 = vmul.f32 %v79, %v93
    %v96 = vmul.f32 %v80, %v94
    %v97 = vlaneseq
    %v98 = vshrl.u32 %v97, 7
    %v99 = vsub.s32 0, %v98
    %v100 = vrot.slane %v61, %v99
    %v101 = vmul.f32 %v95, %v100
    %v102 = vmul.f32 %v96, %v100
    %v103 = vlaneseq
    %v104 = vshrl.u32 %v103, 7
    %v105 = vsub.s32 0, %v104
    %v106 = vrot.slane %v62, %v105
    %v107 = vadd.f32 %v101, %v106
    %v108 = vadd.f32 %v102, %v106
    %v109 = vld [vmem:[%s4] sm:$0xff]
    %v110 = vld [vmem:[%s4 + $0x8] sm:$0xff]
    %v111 = vld [vmem:[%s4 + $0x10] sm:$0xff]
    %v112 = vld [vmem:[%s4 + $0x18] sm:$0xff]
    %v113 = vlaneseq
    %v114 = vshrl.u32 %v113, 7
    %v115 = vsub.s32 0, %v114
    %v116 = vrot.slane %v63, %v115
    %v118 = vsel %vm69, %v107, 0
    %v121 = vsel %vm69, %v108, 0
    %123 = vmatprep.subr.mxu0 0.0
    %124 = vmatpush1.msra.mxu0 0.0
    %125 = vmatprep.subr.mxu0 0.0
    %126 = vmatpush1.msra.mxu0 0.0
    %127 = vmatprep.subr.mxu0 0.0
    %128 = vmatpush1.msra.mxu0 0.0
    %129 = vmatprep.subr.mxu0 0.0
    %130 = vmatpush1.msra.mxu0 0.0
    %131 = vmatprep.subr.mxu0 0.0
    %132 = vmatpush1.msra.mxu0 0.0
    %133 = vmatprep.subr.mxu0 0.0
    %134 = vmatpush1.msra.mxu0 0.0
    %135 = vmatprep.subr.mxu0 0.0
    %136 = vmatpush1.msra.mxu0 0.0
    %137 = vmatprep.subr.mxu0 0.0
    %138 = vmatpush1.msra.mxu0 0.0
    %139 = vmatprep.subr.mxu0 0.0
    %140 = vmatpush1.msra.mxu0 0.0
    %141 = vmatprep.subr.mxu0 0.0
    %142 = vmatpush1.msra.mxu0 0.0
    %143 = vmatprep.subr.mxu0 0.0
    %144 = vmatpush1.msra.mxu0 0.0
    %145 = vmatprep.subr.mxu0 0.0
    %146 = vmatpush1.msra.mxu0 0.0
    %147 = vmatprep.subr.mxu0 0.0
    %148 = vmatpush1.msra.mxu0 %v112
    %149 = vmatprep.subr.mxu0 0.0
    %150 = vmatpush1.msra.mxu0 %v111
    %151 = vmatprep.subr.mxu0 0.0
    %152 = vmatpush1.msra.mxu0 %v110
    %153 = vmatprep.subr.mxu0 0.0
    %154 = vmatpush1.msra.mxu0 %v109
    %155 = vmatprep.subr.mxu0 0.0
    %156 = vmatpush2.msra.mxu0 0.0
    %157 = vmatprep.subr.mxu0 0.0
    %158 = vmatpush2.msra.mxu0 0.0
    %159 = vmatprep.subr.mxu0 0.0
    %160 = vmatpush2.msra.mxu0 0.0
    %161 = vmatprep.subr.mxu0 0.0
    %162 = vmatpush2.msra.mxu0 0.0
    %163 = vmatprep.subr.mxu0 0.0
    %164 = vmatpush2.msra.mxu0 0.0
    %165 = vmatprep.subr.mxu0 0.0
    %166 = vmatpush2.msra.mxu0 0.0
    %167 = vmatprep.subr.mxu0 0.0
    %168 = vmatpush2.msra.mxu0 0.0
    %169 = vmatprep.subr.mxu0 0.0
    %170 = vmatpush2.msra.mxu0 0.0
    %171 = vmatprep.subr.mxu0 0.0
    %172 = vmatpush2.msra.mxu0 0.0
    %173 = vmatprep.subr.mxu0 0.0
    %174 = vmatpush2.msra.mxu0 0.0
    %175 = vmatprep.subr.mxu0 0.0
    %176 = vmatpush2.msra.mxu0 0.0
    %177 = vmatprep.subr.mxu0 0.0
    %178 = vmatpush2.msra.mxu0 0.0
    %179 = vmatprep.subr.mxu0 0.0
    %180 = vmatpush2.msra.mxu0 0.0
    %181 = vmatprep.subr.mxu0 0.0
    %182 = vmatpush2.msra.mxu0 0.0
    %183 = vmatprep.subr.mxu0 0.0
    %184 = vmatpush2.msra.mxu0 0.0
    %185 = vmatprep.subr.mxu0 0.0
    %186 = vmatpush2.msra.mxu0 0.0
    %187 = vmatprep.mubr.f32.mxu0 0.0
    %188 = vmatmul.mubr.f32.gmra.mxu0 %v118
    %v189 = vpop.f32.mrf.mxu0
    %v190 = vadd.f32 %v116, %v189
    %v191 = vpop.f32.mrf.mxu0
    %192 = vmatprep.mubr.f32.mxu0 0.0
    %193 = vmatmul.mubr.f32.gmra.mxu0 %v121
    %v194 = vpop.f32.mrf.mxu0
    %v195 = vadd.f32 %v116, %v194
    %v196 = vpop.f32.mrf.mxu0
    %197 = vdwg.mxu0
    %v198 = vld [vmem:[%s6] sm:$0xff]
    %v199 = vld [vmem:[%s6 + $0x8] sm:$0xff]
    %v200 = vld [vmem:[%s6 + $0x10] sm:$0xff]
    %v201 = vld [vmem:[%s6 + $0x18] sm:$0xff]
    %203 = vrot.lane.b32.xlu0 %v190, 96
    %v204 = vpop.permute.xlu0 %203
    %vm205 = vcmask 130048
    %v206 = vsel %vm205, %v190, 0
    %v208 = vsel %vm205, %v204, 0
    %210 = vmatprep.subr.mxu0 0.0
    %211 = vmatpush1.xpose.msra.mxu0 0.0
    %212 = vmatprep.subr.mxu0 0.0
    %213 = vmatpush1.xpose.msra.mxu0 0.0
    %214 = vmatprep.subr.mxu0 0.0
    %215 = vmatpush1.xpose.msra.mxu0 0.0
    %216 = vmatprep.subr.mxu0 0.0
    %217 = vmatpush1.xpose.msra.mxu0 0.0
    %218 = vmatprep.subr.mxu0 0.0
    %219 = vmatpush1.xpose.msra.mxu0 0.0
    %220 = vmatprep.subr.mxu0 0.0
    %221 = vmatpush1.xpose.msra.mxu0 0.0
    %222 = vmatprep.subr.mxu0 0.0
    %223 = vmatpush1.xpose.msra.mxu0 0.0
    %224 = vmatprep.subr.mxu0 0.0
    %225 = vmatpush1.xpose.msra.mxu0 0.0
    %226 = vmatprep.subr.mxu0 0.0
    %227 = vmatpush1.xpose.msra.mxu0 0.0
    %228 = vmatprep.subr.mxu0 0.0
    %229 = vmatpush1.xpose.msra.mxu0 0.0
    %230 = vmatprep.subr.mxu0 0.0
    %231 = vmatpush1.xpose.msra.mxu0 0.0
    %232 = vmatprep.subr.mxu0 0.0
    %233 = vmatpush1.xpose.msra.mxu0 0.0
    %234 = vmatprep.subr.mxu0 0.0
    %235 = vmatpush1.xpose.msra.mxu0 0.0
    %236 = vmatprep.subr.mxu0 0.0
    %237 = vmatpush1.xpose.msra.mxu0 0.0
    %238 = vmatprep.subr.mxu0 0.0
    %239 = vmatpush1.xpose.msra.mxu0 0.0
    %240 = vmatprep.subr.mxu0 0.0
    %241 = vmatpush1.xpose.msra.mxu0 %v208
    %242 = vmatprep.subr.mxu0 0.0
    %243 = vmatpush2.xpose.msra.mxu0 0.0
    %244 = vmatprep.subr.mxu0 0.0
    %245 = vmatpush2.xpose.msra.mxu0 0.0
    %246 = vmatprep.subr.mxu0 0.0
    %247 = vmatpush2.xpose.msra.mxu0 0.0
    %248 = vmatprep.subr.mxu0 0.0
    %249 = vmatpush2.xpose.msra.mxu0 0.0
    %250 = vmatprep.subr.mxu0 0.0
    %251 = vmatpush2.xpose.msra.mxu0 0.0
    %252 = vmatprep.subr.mxu0 0.0
    %253 = vmatpush2.xpose.msra.mxu0 0.0
    %254 = vmatprep.subr.mxu0 0.0
    %255 = vmatpush2.xpose.msra.mxu0 0.0
    %256 = vmatprep.subr.mxu0 0.0
    %257 = vmatpush2.xpose.msra.mxu0 0.0
    %258 = vmatprep.subr.mxu0 0.0
    %259 = vmatpush2.xpose.msra.mxu0 0.0
    %260 = vmatprep.subr.mxu0 0.0
    %261 = vmatpush2.xpose.msra.mxu0 0.0
    %262 = vmatprep.subr.mxu0 0.0
    %263 = vmatpush2.xpose.msra.mxu0 0.0
    %264 = vmatprep.subr.mxu0 0.0
    %265 = vmatpush2.xpose.msra.mxu0 0.0
    %266 = vmatprep.subr.mxu0 0.0
    %267 = vmatpush2.xpose.msra.mxu0 0.0
    %268 = vmatprep.subr.mxu0 0.0
    %269 = vmatpush2.xpose.msra.mxu0 0.0
    %270 = vmatprep.subr.mxu0 0.0
    %271 = vmatpush2.xpose.msra.mxu0 0.0
    %272 = vmatprep.subr.mxu0 0.0
    %273 = vmatpush2.xpose.msra.mxu0 0.0
    %274 = vmatprep.mubr.f32.mxu0 0.0
    %275 = vmatmul.mubr.f32.gmra.mxu0 %v206
    %v276 = vpop.f32.mrf.mxu0
    %v277 = vadd.f32 0.0, %v276
    %v278 = vpop.f32.mrf.mxu0
    %279 = vdwg.mxu0
    %v280 = vmul.f32 %v277, 0.25
    %v281 = vadd.f32 %v280, %v59
    %vm282 = vcmask 64512
    %v283 = vsel %vm282, %v281, -inf
    %284 = vmax.xlane.f32.xlu0 %v283
    %v285 = vpop.xlane.xlu0 %284
    %v286 = vsub.f32 %v281, %v285
    %v287 = vmul.f32 %v286, 1.442695
    %v288 = vpow.pop %v287
    %v289 = vsel %vm282, %v288, 0.0
    %290 = vadd.xlane.f32.xlu0 %v289
    %v291 = vpop.xlane.xlu0 %290
    %v292 = vrcp.pop %v291
    %v293 = vmul.f32 %v288, %v292
    %294 = vrot.lane.b32.xlu0 %v190, 64
    %v295 = vpop.permute.xlu0 %294
    %v298 = vsel %vm282, %v293, 0
    %300 = vmatprep.subr.mxu0 0.0
    %301 = vmatpush1.msra.mxu0 0.0
    %302 = vmatprep.subr.mxu0 0.0
    %303 = vmatpush1.msra.mxu0 0.0
    %304 = vmatprep.subr.mxu0 0.0
    %305 = vmatpush1.msra.mxu0 0.0
    %306 = vmatprep.subr.mxu0 0.0
    %307 = vmatpush1.msra.mxu0 0.0
    %308 = vmatprep.subr.mxu0 0.0
    %309 = vmatpush1.msra.mxu0 0.0
    %310 = vmatprep.subr.mxu0 0.0
    %311 = vmatpush1.msra.mxu0 0.0
    %312 = vmatprep.subr.mxu0 0.0
    %313 = vmatpush1.msra.mxu0 0.0
    %314 = vmatprep.subr.mxu0 0.0
    %315 = vmatpush1.msra.mxu0 0.0
    %316 = vmatprep.subr.mxu0 0.0
    %317 = vmatpush1.msra.mxu0 0.0
    %318 = vmatprep.subr.mxu0 0.0
    %319 = vmatpush1.msra.mxu0 0.0
    %320 = vmatprep.subr.mxu0 0.0
    %321 = vmatpush1.msra.mxu0 0.0
    %322 = vmatprep.subr.mxu0 0.0
    %323 = vmatpush1.msra.mxu0 0.0
    %324 = vmatprep.subr.mxu0 0.0
    %325 = vmatpush1.msra.mxu0 0.0
    %326 = vmatprep.subr.mxu0 0.0
    %327 = vmatpush1.msra.mxu0 0.0
    %328 = vmatprep.subr.mxu0 0.0
    %329 = vmatpush1.msra.mxu0 0.0
    %330 = vmatprep.subr.mxu0 0.0
    %331 = vmatpush1.msra.mxu0 %v295
    %332 = vmatprep.subr.mxu0 0.0
    %333 = vmatpush2.msra.mxu0 0.0
    %334 = vmatprep.subr.mxu0 0.0
    %335 = vmatpush2.msra.mxu0 0.0
    %336 = vmatprep.subr.mxu0 0.0
    %337 = vmatpush2.msra.mxu0 0.0
    %338 = vmatprep.subr.mxu0 0.0
    %339 = vmatpush2.msra.mxu0 0.0
    %340 = vmatprep.subr.mxu0 0.0
    %341 = vmatpush2.msra.mxu0 0.0
    %342 = vmatprep.subr.mxu0 0.0
    %343 = vmatpush2.msra.mxu0 0.0
    %344 = vmatprep.subr.mxu0 0.0
    %345 = vmatpush2.msra.mxu0 0.0
    %346 = vmatprep.subr.mxu0 0.0
    %347 = vmatpush2.msra.mxu0 0.0
    %348 = vmatprep.subr.mxu0 0.0
    %349 = vmatpush2.msra.mxu0 0.0
    %350 = vmatprep.subr.mxu0 0.0
    %351 = vmatpush2.msra.mxu0 0.0
    %352 = vmatprep.subr.mxu0 0.0
    %353 = vmatpush2.msra.mxu0 0.0
    %354 = vmatprep.subr.mxu0 0.0
    %355 = vmatpush2.msra.mxu0 0.0
    %356 = vmatprep.subr.mxu0 0.0
    %357 = vmatpush2.msra.mxu0 0.0
    %358 = vmatprep.subr.mxu0 0.0
    %359 = vmatpush2.msra.mxu0 0.0
    %360 = vmatprep.subr.mxu0 0.0
    %361 = vmatpush2.msra.mxu0 0.0
    %362 = vmatprep.subr.mxu0 0.0
    %363 = vmatpush2.msra.mxu0 0.0
    %364 = vmatprep.mubr.f32.mxu0 0.0
    %365 = vmatmul.mubr.f32.gmra.mxu0 %v298
    %v366 = vpop.f32.mrf.mxu0
    %v367 = vadd.f32 0.0, %v366
    %v368 = vpop.f32.mrf.mxu0
    %369 = vdwg.mxu0
    %370 = vrot.lane.b32.xlu0 %v190, 112
    %v371 = vpop.permute.xlu0 %370
    %372 = vrot.lane.b32.xlu0 %v190, 80
    %v373 = vpop.permute.xlu0 %372
    %v374 = vsel %vm205, %v371, 0
    %v376 = vsel %vm205, %v373, 0
    %378 = vmatprep.subr.mxu0 0.0
    %379 = vmatpush1.xpose.msra.mxu0 0.0
    %380 = vmatprep.subr.mxu0 0.0
    %381 = vmatpush1.xpose.msra.mxu0 0.0
    %382 = vmatprep.subr.mxu0 0.0
    %383 = vmatpush1.xpose.msra.mxu0 0.0
    %384 = vmatprep.subr.mxu0 0.0
    %385 = vmatpush1.xpose.msra.mxu0 0.0
    %386 = vmatprep.subr.mxu0 0.0
    %387 = vmatpush1.xpose.msra.mxu0 0.0
    %388 = vmatprep.subr.mxu0 0.0
    %389 = vmatpush1.xpose.msra.mxu0 0.0
    %390 = vmatprep.subr.mxu0 0.0
    %391 = vmatpush1.xpose.msra.mxu0 0.0
    %392 = vmatprep.subr.mxu0 0.0
    %393 = vmatpush1.xpose.msra.mxu0 0.0
    %394 = vmatprep.subr.mxu0 0.0
    %395 = vmatpush1.xpose.msra.mxu0 0.0
    %396 = vmatprep.subr.mxu0 0.0
    %397 = vmatpush1.xpose.msra.mxu0 0.0
    %398 = vmatprep.subr.mxu0 0.0
    %399 = vmatpush1.xpose.msra.mxu0 0.0
    %400 = vmatprep.subr.mxu0 0.0
    %401 = vmatpush1.xpose.msra.mxu0 0.0
    %402 = vmatprep.subr.mxu0 0.0
    %403 = vmatpush1.xpose.msra.mxu0 0.0
    %404 = vmatprep.subr.mxu0 0.0
    %405 = vmatpush1.xpose.msra.mxu0 0.0
    %406 = vmatprep.subr.mxu0 0.0
    %407 = vmatpush1.xpose.msra.mxu0 0.0
    %408 = vmatprep.subr.mxu0 0.0
    %409 = vmatpush1.xpose.msra.mxu0 %v376
    %410 = vmatprep.subr.mxu0 0.0
    %411 = vmatpush2.xpose.msra.mxu0 0.0
    %412 = vmatprep.subr.mxu0 0.0
    %413 = vmatpush2.xpose.msra.mxu0 0.0
    %414 = vmatprep.subr.mxu0 0.0
    %415 = vmatpush2.xpose.msra.mxu0 0.0
    %416 = vmatprep.subr.mxu0 0.0
    %417 = vmatpush2.xpose.msra.mxu0 0.0
    %418 = vmatprep.subr.mxu0 0.0
    %419 = vmatpush2.xpose.msra.mxu0 0.0
    %420 = vmatprep.subr.mxu0 0.0
    %421 = vmatpush2.xpose.msra.mxu0 0.0
    %422 = vmatprep.subr.mxu0 0.0
    %423 = vmatpush2.xpose.msra.mxu0 0.0
    %424 = vmatprep.subr.mxu0 0.0
    %425 = vmatpush2.xpose.msra.mxu0 0.0
    %426 = vmatprep.subr.mxu0 0.0
    %427 = vmatpush2.xpose.msra.mxu0 0.0
    %428 = vmatprep.subr.mxu0 0.0
    %429 = vmatpush2.xpose.msra.mxu0 0.0
    %430 = vmatprep.subr.mxu0 0.0
    %431 = vmatpush2.xpose.msra.mxu0 0.0
    %432 = vmatprep.subr.mxu0 0.0
    %433 = vmatpush2.xpose.msra.mxu0 0.0
    %434 = vmatprep.subr.mxu0 0.0
    %435 = vmatpush2.xpose.msra.mxu0 0.0
    %436 = vmatprep.subr.mxu0 0.0
    %437 = vmatpush2.xpose.msra.mxu0 0.0
    %438 = vmatprep.subr.mxu0 0.0
    %439 = vmatpush2.xpose.msra.mxu0 0.0
    %440 = vmatprep.subr.mxu0 0.0
    %441 = vmatpush2.xpose.msra.mxu0 0.0
    %442 = vmatprep.mubr.f32.mxu0 0.0
    %443 = vmatmul.mubr.f32.gmra.mxu0 %v374
    %v444 = vpop.f32.mrf.mxu0
    %v445 = vadd.f32 0.0, %v444
    %v446 = vpop.f32.mrf.mxu0
    %447 = vdwg.mxu0
    %v448 = vmul.f32 %v445, 0.25
    %v449 = vadd.f32 %v448, %v59
    %v450 = vsel %vm282, %v449, -inf
    %451 = vmax.xlane.f32.xlu0 %v450
    %v452 = vpop.xlane.xlu0 %451
    %v453 = vsub.f32 %v449, %v452
    %v454 = vmul.f32 %v453, 1.442695
    %v455 = vpow.pop %v454
    %v456 = vsel %vm282, %v455, 0.0
    %457 = vadd.xlane.f32.xlu0 %v456
    %v458 = vpop.xlane.xlu0 %457
    %v459 = vrcp.pop %v458
    %v460 = vmul.f32 %v455, %v459
    %461 = vrot.lane.b32.xlu0 %v190, 48
    %v462 = vpop.permute.xlu0 %461
    %v465 = vsel %vm282, %v460, 0
    %467 = vmatprep.subr.mxu0 0.0
    %468 = vmatpush1.msra.mxu0 0.0
    %469 = vmatprep.subr.mxu0 0.0
    %470 = vmatpush1.msra.mxu0 0.0
    %471 = vmatprep.subr.mxu0 0.0
    %472 = vmatpush1.msra.mxu0 0.0
    %473 = vmatprep.subr.mxu0 0.0
    %474 = vmatpush1.msra.mxu0 0.0
    %475 = vmatprep.subr.mxu0 0.0
    %476 = vmatpush1.msra.mxu0 0.0
    %477 = vmatprep.subr.mxu0 0.0
    %478 = vmatpush1.msra.mxu0 0.0
    %479 = vmatprep.subr.mxu0 0.0
    %480 = vmatpush1.msra.mxu0 0.0
    %481 = vmatprep.subr.mxu0 0.0
    %482 = vmatpush1.msra.mxu0 0.0
    %483 = vmatprep.subr.mxu0 0.0
    %484 = vmatpush1.msra.mxu0 0.0
    %485 = vmatprep.subr.mxu0 0.0
    %486 = vmatpush1.msra.mxu0 0.0
    %487 = vmatprep.subr.mxu0 0.0
    %488 = vmatpush1.msra.mxu0 0.0
    %489 = vmatprep.subr.mxu0 0.0
    %490 = vmatpush1.msra.mxu0 0.0
    %491 = vmatprep.subr.mxu0 0.0
    %492 = vmatpush1.msra.mxu0 0.0
    %493 = vmatprep.subr.mxu0 0.0
    %494 = vmatpush1.msra.mxu0 0.0
    %495 = vmatprep.subr.mxu0 0.0
    %496 = vmatpush1.msra.mxu0 0.0
    %497 = vmatprep.subr.mxu0 0.0
    %498 = vmatpush1.msra.mxu0 %v462
    %499 = vmatprep.subr.mxu0 0.0
    %500 = vmatpush2.msra.mxu0 0.0
    %501 = vmatprep.subr.mxu0 0.0
    %502 = vmatpush2.msra.mxu0 0.0
    %503 = vmatprep.subr.mxu0 0.0
    %504 = vmatpush2.msra.mxu0 0.0
    %505 = vmatprep.subr.mxu0 0.0
    %506 = vmatpush2.msra.mxu0 0.0
    %507 = vmatprep.subr.mxu0 0.0
    %508 = vmatpush2.msra.mxu0 0.0
    %509 = vmatprep.subr.mxu0 0.0
    %510 = vmatpush2.msra.mxu0 0.0
    %511 = vmatprep.subr.mxu0 0.0
    %512 = vmatpush2.msra.mxu0 0.0
    %513 = vmatprep.subr.mxu0 0.0
    %514 = vmatpush2.msra.mxu0 0.0
    %515 = vmatprep.subr.mxu0 0.0
    %516 = vmatpush2.msra.mxu0 0.0
    %517 = vmatprep.subr.mxu0 0.0
    %518 = vmatpush2.msra.mxu0 0.0
    %519 = vmatprep.subr.mxu0 0.0
    %520 = vmatpush2.msra.mxu0 0.0
    %521 = vmatprep.subr.mxu0 0.0
    %522 = vmatpush2.msra.mxu0 0.0
    %523 = vmatprep.subr.mxu0 0.0
    %524 = vmatpush2.msra.mxu0 0.0
    %525 = vmatprep.subr.mxu0 0.0
    %526 = vmatpush2.msra.mxu0 0.0
    %527 = vmatprep.subr.mxu0 0.0
    %528 = vmatpush2.msra.mxu0 0.0
    %529 = vmatprep.subr.mxu0 0.0
    %530 = vmatpush2.msra.mxu0 0.0
    %531 = vmatprep.mubr.f32.mxu0 0.0
    %532 = vmatmul.mubr.f32.gmra.mxu0 %v465
    %v533 = vpop.f32.mrf.mxu0
    %v534 = vadd.f32 0.0, %v533
    %v535 = vpop.f32.mrf.mxu0
    %536 = vdwg.mxu0
    %v538 = vsel %vm205, %v534, 0
    %540 = vmatprep.subr.mxu0 0.0
    %541 = vmatpush1.msra.mxu0 0.0
    %542 = vmatprep.subr.mxu0 0.0
    %543 = vmatpush1.msra.mxu0 0.0
    %544 = vmatprep.subr.mxu0 0.0
    %545 = vmatpush1.msra.mxu0 0.0
    %546 = vmatprep.subr.mxu0 0.0
    %547 = vmatpush1.msra.mxu0 0.0
    %548 = vmatprep.subr.mxu0 0.0
    %549 = vmatpush1.msra.mxu0 0.0
    %550 = vmatprep.subr.mxu0 0.0
    %551 = vmatpush1.msra.mxu0 0.0
    %552 = vmatprep.subr.mxu0 0.0
    %553 = vmatpush1.msra.mxu0 0.0
    %554 = vmatprep.subr.mxu0 0.0
    %555 = vmatpush1.msra.mxu0 0.0
    %556 = vmatprep.subr.mxu0 0.0
    %557 = vmatpush1.msra.mxu0 0.0
    %558 = vmatprep.subr.mxu0 0.0
    %559 = vmatpush1.msra.mxu0 0.0
    %560 = vmatprep.subr.mxu0 0.0
    %561 = vmatpush1.msra.mxu0 0.0
    %562 = vmatprep.subr.mxu0 0.0
    %563 = vmatpush1.msra.mxu0 0.0
    %564 = vmatprep.subr.mxu0 0.0
    %565 = vmatpush1.msra.mxu0 0.0
    %566 = vmatprep.subr.mxu0 0.0
    %567 = vmatpush1.msra.mxu0 0.0
    %568 = vmatprep.subr.mxu0 0.0
    %569 = vmatpush1.msra.mxu0 %v201
    %570 = vmatprep.subr.mxu0 0.0
    %571 = vmatpush1.msra.mxu0 %v200
    %572 = vmatprep.subr.mxu0 0.0
    %573 = vmatpush2.msra.mxu0 0.0
    %574 = vmatprep.subr.mxu0 0.0
    %575 = vmatpush2.msra.mxu0 0.0
    %576 = vmatprep.subr.mxu0 0.0
    %577 = vmatpush2.msra.mxu0 0.0
    %578 = vmatprep.subr.mxu0 0.0
    %579 = vmatpush2.msra.mxu0 0.0
    %580 = vmatprep.subr.mxu0 0.0
    %581 = vmatpush2.msra.mxu0 0.0
    %582 = vmatprep.subr.mxu0 0.0
    %583 = vmatpush2.msra.mxu0 0.0
    %584 = vmatprep.subr.mxu0 0.0
    %585 = vmatpush2.msra.mxu0 0.0
    %586 = vmatprep.subr.mxu0 0.0
    %587 = vmatpush2.msra.mxu0 0.0
    %588 = vmatprep.subr.mxu0 0.0
    %589 = vmatpush2.msra.mxu0 0.0
    %590 = vmatprep.subr.mxu0 0.0
    %591 = vmatpush2.msra.mxu0 0.0
    %592 = vmatprep.subr.mxu0 0.0
    %593 = vmatpush2.msra.mxu0 0.0
    %594 = vmatprep.subr.mxu0 0.0
    %595 = vmatpush2.msra.mxu0 0.0
    %596 = vmatprep.subr.mxu0 0.0
    %597 = vmatpush2.msra.mxu0 0.0
    %598 = vmatprep.subr.mxu0 0.0
    %599 = vmatpush2.msra.mxu0 0.0
    %600 = vmatprep.subr.mxu0 0.0
    %601 = vmatpush2.msra.mxu0 0.0
    %602 = vmatprep.subr.mxu0 0.0
    %603 = vmatpush2.msra.mxu0 0.0
    %604 = vmatprep.mubr.f32.mxu0 0.0
    %605 = vmatmul.mubr.f32.gmra.mxu0 %v538
    %v606 = vpop.f32.mrf.mxu0
    %v607 = vadd.f32 0.0, %v606
    %v608 = vpop.f32.mrf.mxu0
    %609 = vdwg.mxu0
    %v611 = vsel %vm205, %v367, 0
    %613 = vmatprep.subr.mxu0 0.0
    %614 = vmatpush1.msra.mxu0 0.0
    %615 = vmatprep.subr.mxu0 0.0
    %616 = vmatpush1.msra.mxu0 0.0
    %617 = vmatprep.subr.mxu0 0.0
    %618 = vmatpush1.msra.mxu0 0.0
    %619 = vmatprep.subr.mxu0 0.0
    %620 = vmatpush1.msra.mxu0 0.0
    %621 = vmatprep.subr.mxu0 0.0
    %622 = vmatpush1.msra.mxu0 0.0
    %623 = vmatprep.subr.mxu0 0.0
    %624 = vmatpush1.msra.mxu0 0.0
    %625 = vmatprep.subr.mxu0 0.0
    %626 = vmatpush1.msra.mxu0 0.0
    %627 = vmatprep.subr.mxu0 0.0
    %628 = vmatpush1.msra.mxu0 0.0
    %629 = vmatprep.subr.mxu0 0.0
    %630 = vmatpush1.msra.mxu0 0.0
    %631 = vmatprep.subr.mxu0 0.0
    %632 = vmatpush1.msra.mxu0 0.0
    %633 = vmatprep.subr.mxu0 0.0
    %634 = vmatpush1.msra.mxu0 0.0
    %635 = vmatprep.subr.mxu0 0.0
    %636 = vmatpush1.msra.mxu0 0.0
    %637 = vmatprep.subr.mxu0 0.0
    %638 = vmatpush1.msra.mxu0 0.0
    %639 = vmatprep.subr.mxu0 0.0
    %640 = vmatpush1.msra.mxu0 0.0
    %641 = vmatprep.subr.mxu0 0.0
    %642 = vmatpush1.msra.mxu0 %v199
    %643 = vmatprep.subr.mxu0 0.0
    %644 = vmatpush1.msra.mxu0 %v198
    %645 = vmatprep.subr.mxu0 0.0
    %646 = vmatpush2.msra.mxu0 0.0
    %647 = vmatprep.subr.mxu0 0.0
    %648 = vmatpush2.msra.mxu0 0.0
    %649 = vmatprep.subr.mxu0 0.0
    %650 = vmatpush2.msra.mxu0 0.0
    %651 = vmatprep.subr.mxu0 0.0
    %652 = vmatpush2.msra.mxu0 0.0
    %653 = vmatprep.subr.mxu0 0.0
    %654 = vmatpush2.msra.mxu0 0.0
    %655 = vmatprep.subr.mxu0 0.0
    %656 = vmatpush2.msra.mxu0 0.0
    %657 = vmatprep.subr.mxu0 0.0
    %658 = vmatpush2.msra.mxu0 0.0
    %659 = vmatprep.subr.mxu0 0.0
    %660 = vmatpush2.msra.mxu0 0.0
    %661 = vmatprep.subr.mxu0 0.0
    %662 = vmatpush2.msra.mxu0 0.0
    %663 = vmatprep.subr.mxu0 0.0
    %664 = vmatpush2.msra.mxu0 0.0
    %665 = vmatprep.subr.mxu0 0.0
    %666 = vmatpush2.msra.mxu0 0.0
    %667 = vmatprep.subr.mxu0 0.0
    %668 = vmatpush2.msra.mxu0 0.0
    %669 = vmatprep.subr.mxu0 0.0
    %670 = vmatpush2.msra.mxu0 0.0
    %671 = vmatprep.subr.mxu0 0.0
    %672 = vmatpush2.msra.mxu0 0.0
    %673 = vmatprep.subr.mxu0 0.0
    %674 = vmatpush2.msra.mxu0 0.0
    %675 = vmatprep.subr.mxu0 0.0
    %676 = vmatpush2.msra.mxu0 0.0
    %677 = vmatprep.mubr.f32.mxu0 0.0
    %678 = vmatmul.mubr.f32.gmra.mxu0 %v611
    %v679 = vpop.f32.mrf.mxu0
    %v680 = vadd.f32 %v607, %v679
    %v681 = vpop.f32.mrf.mxu0
    %682 = vdwg.mxu0
    %684 = vrot.lane.b32.xlu0 %v195, 96
    %v685 = vpop.permute.xlu0 %684
    %v686 = vsel %vm205, %v195, 0
    %v688 = vsel %vm205, %v685, 0
    %690 = vmatprep.subr.mxu0 0.0
    %691 = vmatpush1.xpose.msra.mxu0 0.0
    %692 = vmatprep.subr.mxu0 0.0
    %693 = vmatpush1.xpose.msra.mxu0 0.0
    %694 = vmatprep.subr.mxu0 0.0
    %695 = vmatpush1.xpose.msra.mxu0 0.0
    %696 = vmatprep.subr.mxu0 0.0
    %697 = vmatpush1.xpose.msra.mxu0 0.0
    %698 = vmatprep.subr.mxu0 0.0
    %699 = vmatpush1.xpose.msra.mxu0 0.0
    %700 = vmatprep.subr.mxu0 0.0
    %701 = vmatpush1.xpose.msra.mxu0 0.0
    %702 = vmatprep.subr.mxu0 0.0
    %703 = vmatpush1.xpose.msra.mxu0 0.0
    %704 = vmatprep.subr.mxu0 0.0
    %705 = vmatpush1.xpose.msra.mxu0 0.0
    %706 = vmatprep.subr.mxu0 0.0
    %707 = vmatpush1.xpose.msra.mxu0 0.0
    %708 = vmatprep.subr.mxu0 0.0
    %709 = vmatpush1.xpose.msra.mxu0 0.0
    %710 = vmatprep.subr.mxu0 0.0
    %711 = vmatpush1.xpose.msra.mxu0 0.0
    %712 = vmatprep.subr.mxu0 0.0
    %713 = vmatpush1.xpose.msra.mxu0 0.0
    %714 = vmatprep.subr.mxu0 0.0
    %715 = vmatpush1.xpose.msra.mxu0 0.0
    %716 = vmatprep.subr.mxu0 0.0
    %717 = vmatpush1.xpose.msra.mxu0 0.0
    %718 = vmatprep.subr.mxu0 0.0
    %719 = vmatpush1.xpose.msra.mxu0 0.0
    %720 = vmatprep.subr.mxu0 0.0
    %721 = vmatpush1.xpose.msra.mxu0 %v688
    %722 = vmatprep.subr.mxu0 0.0
    %723 = vmatpush2.xpose.msra.mxu0 0.0
    %724 = vmatprep.subr.mxu0 0.0
    %725 = vmatpush2.xpose.msra.mxu0 0.0
    %726 = vmatprep.subr.mxu0 0.0
    %727 = vmatpush2.xpose.msra.mxu0 0.0
    %728 = vmatprep.subr.mxu0 0.0
    %729 = vmatpush2.xpose.msra.mxu0 0.0
    %730 = vmatprep.subr.mxu0 0.0
    %731 = vmatpush2.xpose.msra.mxu0 0.0
    %732 = vmatprep.subr.mxu0 0.0
    %733 = vmatpush2.xpose.msra.mxu0 0.0
    %734 = vmatprep.subr.mxu0 0.0
    %735 = vmatpush2.xpose.msra.mxu0 0.0
    %736 = vmatprep.subr.mxu0 0.0
    %737 = vmatpush2.xpose.msra.mxu0 0.0
    %738 = vmatprep.subr.mxu0 0.0
    %739 = vmatpush2.xpose.msra.mxu0 0.0
    %740 = vmatprep.subr.mxu0 0.0
    %741 = vmatpush2.xpose.msra.mxu0 0.0
    %742 = vmatprep.subr.mxu0 0.0
    %743 = vmatpush2.xpose.msra.mxu0 0.0
    %744 = vmatprep.subr.mxu0 0.0
    %745 = vmatpush2.xpose.msra.mxu0 0.0
    %746 = vmatprep.subr.mxu0 0.0
    %747 = vmatpush2.xpose.msra.mxu0 0.0
    %748 = vmatprep.subr.mxu0 0.0
    %749 = vmatpush2.xpose.msra.mxu0 0.0
    %750 = vmatprep.subr.mxu0 0.0
    %751 = vmatpush2.xpose.msra.mxu0 0.0
    %752 = vmatprep.subr.mxu0 0.0
    %753 = vmatpush2.xpose.msra.mxu0 0.0
    %754 = vmatprep.mubr.f32.mxu0 0.0
    %755 = vmatmul.mubr.f32.gmra.mxu0 %v686
    %v756 = vpop.f32.mrf.mxu0
    %v757 = vadd.f32 0.0, %v756
    %v758 = vpop.f32.mrf.mxu0
    %759 = vdwg.mxu0
    %v760 = vmul.f32 %v757, 0.25
    %v761 = vadd.f32 %v760, %v60
    %v762 = vsel %vm282, %v761, -inf
    %763 = vmax.xlane.f32.xlu0 %v762
    %v764 = vpop.xlane.xlu0 %763
    %v765 = vsub.f32 %v761, %v764
    %v766 = vmul.f32 %v765, 1.442695
    %v767 = vpow.pop %v766
    %v768 = vsel %vm282, %v767, 0.0
    %769 = vadd.xlane.f32.xlu0 %v768
    %v770 = vpop.xlane.xlu0 %769
    %v771 = vrcp.pop %v770
    %v772 = vmul.f32 %v767, %v771
    %773 = vrot.lane.b32.xlu0 %v195, 64
    %v774 = vpop.permute.xlu0 %773
    %v777 = vsel %vm282, %v772, 0
    %779 = vmatprep.subr.mxu0 0.0
    %780 = vmatpush1.msra.mxu0 0.0
    %781 = vmatprep.subr.mxu0 0.0
    %782 = vmatpush1.msra.mxu0 0.0
    %783 = vmatprep.subr.mxu0 0.0
    %784 = vmatpush1.msra.mxu0 0.0
    %785 = vmatprep.subr.mxu0 0.0
    %786 = vmatpush1.msra.mxu0 0.0
    %787 = vmatprep.subr.mxu0 0.0
    %788 = vmatpush1.msra.mxu0 0.0
    %789 = vmatprep.subr.mxu0 0.0
    %790 = vmatpush1.msra.mxu0 0.0
    %791 = vmatprep.subr.mxu0 0.0
    %792 = vmatpush1.msra.mxu0 0.0
    %793 = vmatprep.subr.mxu0 0.0
    %794 = vmatpush1.msra.mxu0 0.0
    %795 = vmatprep.subr.mxu0 0.0
    %796 = vmatpush1.msra.mxu0 0.0
    %797 = vmatprep.subr.mxu0 0.0
    %798 = vmatpush1.msra.mxu0 0.0
    %799 = vmatprep.subr.mxu0 0.0
    %800 = vmatpush1.msra.mxu0 0.0
    %801 = vmatprep.subr.mxu0 0.0
    %802 = vmatpush1.msra.mxu0 0.0
    %803 = vmatprep.subr.mxu0 0.0
    %804 = vmatpush1.msra.mxu0 0.0
    %805 = vmatprep.subr.mxu0 0.0
    %806 = vmatpush1.msra.mxu0 0.0
    %807 = vmatprep.subr.mxu0 0.0
    %808 = vmatpush1.msra.mxu0 0.0
    %809 = vmatprep.subr.mxu0 0.0
    %810 = vmatpush1.msra.mxu0 %v774
    %811 = vmatprep.subr.mxu0 0.0
    %812 = vmatpush2.msra.mxu0 0.0
    %813 = vmatprep.subr.mxu0 0.0
    %814 = vmatpush2.msra.mxu0 0.0
    %815 = vmatprep.subr.mxu0 0.0
    %816 = vmatpush2.msra.mxu0 0.0
    %817 = vmatprep.subr.mxu0 0.0
    %818 = vmatpush2.msra.mxu0 0.0
    %819 = vmatprep.subr.mxu0 0.0
    %820 = vmatpush2.msra.mxu0 0.0
    %821 = vmatprep.subr.mxu0 0.0
    %822 = vmatpush2.msra.mxu0 0.0
    %823 = vmatprep.subr.mxu0 0.0
    %824 = vmatpush2.msra.mxu0 0.0
    %825 = vmatprep.subr.mxu0 0.0
    %826 = vmatpush2.msra.mxu0 0.0
    %827 = vmatprep.subr.mxu0 0.0
    %828 = vmatpush2.msra.mxu0 0.0
    %829 = vmatprep.subr.mxu0 0.0
    %830 = vmatpush2.msra.mxu0 0.0
    %831 = vmatprep.subr.mxu0 0.0
    %832 = vmatpush2.msra.mxu0 0.0
    %833 = vmatprep.subr.mxu0 0.0
    %834 = vmatpush2.msra.mxu0 0.0
    %835 = vmatprep.subr.mxu0 0.0
    %836 = vmatpush2.msra.mxu0 0.0
    %837 = vmatprep.subr.mxu0 0.0
    %838 = vmatpush2.msra.mxu0 0.0
    %839 = vmatprep.subr.mxu0 0.0
    %840 = vmatpush2.msra.mxu0 0.0
    %841 = vmatprep.subr.mxu0 0.0
    %842 = vmatpush2.msra.mxu0 0.0
    %843 = vmatprep.mubr.f32.mxu0 0.0
    %844 = vmatmul.mubr.f32.gmra.mxu0 %v777
    %v845 = vpop.f32.mrf.mxu0
    %v846 = vadd.f32 0.0, %v845
    %v847 = vpop.f32.mrf.mxu0
    %848 = vdwg.mxu0
    %849 = vrot.lane.b32.xlu0 %v195, 112
    %v850 = vpop.permute.xlu0 %849
    %851 = vrot.lane.b32.xlu0 %v195, 80
    %v852 = vpop.permute.xlu0 %851
    %v853 = vsel %vm205, %v850, 0
    %v855 = vsel %vm205, %v852, 0
    %857 = vmatprep.subr.mxu0 0.0
    %858 = vmatpush1.xpose.msra.mxu0 0.0
    %859 = vmatprep.subr.mxu0 0.0
    %860 = vmatpush1.xpose.msra.mxu0 0.0
    %861 = vmatprep.subr.mxu0 0.0
    %862 = vmatpush1.xpose.msra.mxu0 0.0
    %863 = vmatprep.subr.mxu0 0.0
    %864 = vmatpush1.xpose.msra.mxu0 0.0
    %865 = vmatprep.subr.mxu0 0.0
    %866 = vmatpush1.xpose.msra.mxu0 0.0
    %867 = vmatprep.subr.mxu0 0.0
    %868 = vmatpush1.xpose.msra.mxu0 0.0
    %869 = vmatprep.subr.mxu0 0.0
    %870 = vmatpush1.xpose.msra.mxu0 0.0
    %871 = vmatprep.subr.mxu0 0.0
    %872 = vmatpush1.xpose.msra.mxu0 0.0
    %873 = vmatprep.subr.mxu0 0.0
    %874 = vmatpush1.xpose.msra.mxu0 0.0
    %875 = vmatprep.subr.mxu0 0.0
    %876 = vmatpush1.xpose.msra.mxu0 0.0
    %877 = vmatprep.subr.mxu0 0.0
    %878 = vmatpush1.xpose.msra.mxu0 0.0
    %879 = vmatprep.subr.mxu0 0.0
    %880 = vmatpush1.xpose.msra.mxu0 0.0
    %881 = vmatprep.subr.mxu0 0.0
    %882 = vmatpush1.xpose.msra.mxu0 0.0
    %883 = vmatprep.subr.mxu0 0.0
    %884 = vmatpush1.xpose.msra.mxu0 0.0
    %885 = vmatprep.subr.mxu0 0.0
    %886 = vmatpush1.xpose.msra.mxu0 0.0
    %887 = vmatprep.subr.mxu0 0.0
    %888 = vmatpush1.xpose.msra.mxu0 %v855
    %889 = vmatprep.subr.mxu0 0.0
    %890 = vmatpush2.xpose.msra.mxu0 0.0
    %891 = vmatprep.subr.mxu0 0.0
    %892 = vmatpush2.xpose.msra.mxu0 0.0
    %893 = vmatprep.subr.mxu0 0.0
    %894 = vmatpush2.xpose.msra.mxu0 0.0
    %895 = vmatprep.subr.mxu0 0.0
    %896 = vmatpush2.xpose.msra.mxu0 0.0
    %897 = vmatprep.subr.mxu0 0.0
    %898 = vmatpush2.xpose.msra.mxu0 0.0
    %899 = vmatprep.subr.mxu0 0.0
    %900 = vmatpush2.xpose.msra.mxu0 0.0
    %901 = vmatprep.subr.mxu0 0.0
    %902 = vmatpush2.xpose.msra.mxu0 0.0
    %903 = vmatprep.subr.mxu0 0.0
    %904 = vmatpush2.xpose.msra.mxu0 0.0
    %905 = vmatprep.subr.mxu0 0.0
    %906 = vmatpush2.xpose.msra.mxu0 0.0
    %907 = vmatprep.subr.mxu0 0.0
    %908 = vmatpush2.xpose.msra.mxu0 0.0
    %909 = vmatprep.subr.mxu0 0.0
    %910 = vmatpush2.xpose.msra.mxu0 0.0
    %911 = vmatprep.subr.mxu0 0.0
    %912 = vmatpush2.xpose.msra.mxu0 0.0
    %913 = vmatprep.subr.mxu0 0.0
    %914 = vmatpush2.xpose.msra.mxu0 0.0
    %915 = vmatprep.subr.mxu0 0.0
    %916 = vmatpush2.xpose.msra.mxu0 0.0
    %917 = vmatprep.subr.mxu0 0.0
    %918 = vmatpush2.xpose.msra.mxu0 0.0
    %919 = vmatprep.subr.mxu0 0.0
    %920 = vmatpush2.xpose.msra.mxu0 0.0
    %921 = vmatprep.mubr.f32.mxu0 0.0
    %922 = vmatmul.mubr.f32.gmra.mxu0 %v853
    %v923 = vpop.f32.mrf.mxu0
    %v924 = vadd.f32 0.0, %v923
    %v925 = vpop.f32.mrf.mxu0
    %926 = vdwg.mxu0
    %v927 = vmul.f32 %v924, 0.25
    %v928 = vadd.f32 %v927, %v60
    %v929 = vsel %vm282, %v928, -inf
    %930 = vmax.xlane.f32.xlu0 %v929
    %v931 = vpop.xlane.xlu0 %930
    %v932 = vsub.f32 %v928, %v931
    %v933 = vmul.f32 %v932, 1.442695
    %v934 = vpow.pop %v933
    %v935 = vsel %vm282, %v934, 0.0
    %936 = vadd.xlane.f32.xlu0 %v935
    %v937 = vpop.xlane.xlu0 %936
    %v938 = vrcp.pop %v937
    %v939 = vmul.f32 %v934, %v938
    %940 = vrot.lane.b32.xlu0 %v195, 48
    %v941 = vpop.permute.xlu0 %940
    %v944 = vsel %vm282, %v939, 0
    %946 = vmatprep.subr.mxu0 0.0
    %947 = vmatpush1.msra.mxu0 0.0
    %948 = vmatprep.subr.mxu0 0.0
    %949 = vmatpush1.msra.mxu0 0.0
    %950 = vmatprep.subr.mxu0 0.0
    %951 = vmatpush1.msra.mxu0 0.0
    %952 = vmatprep.subr.mxu0 0.0
    %953 = vmatpush1.msra.mxu0 0.0
    %954 = vmatprep.subr.mxu0 0.0
    %955 = vmatpush1.msra.mxu0 0.0
    %956 = vmatprep.subr.mxu0 0.0
    %957 = vmatpush1.msra.mxu0 0.0
    %958 = vmatprep.subr.mxu0 0.0
    %959 = vmatpush1.msra.mxu0 0.0
    %960 = vmatprep.subr.mxu0 0.0
    %961 = vmatpush1.msra.mxu0 0.0
    %962 = vmatprep.subr.mxu0 0.0
    %963 = vmatpush1.msra.mxu0 0.0
    %964 = vmatprep.subr.mxu0 0.0
    %965 = vmatpush1.msra.mxu0 0.0
    %966 = vmatprep.subr.mxu0 0.0
    %967 = vmatpush1.msra.mxu0 0.0
    %968 = vmatprep.subr.mxu0 0.0
    %969 = vmatpush1.msra.mxu0 0.0
    %970 = vmatprep.subr.mxu0 0.0
    %971 = vmatpush1.msra.mxu0 0.0
    %972 = vmatprep.subr.mxu0 0.0
    %973 = vmatpush1.msra.mxu0 0.0
    %974 = vmatprep.subr.mxu0 0.0
    %975 = vmatpush1.msra.mxu0 0.0
    %976 = vmatprep.subr.mxu0 0.0
    %977 = vmatpush1.msra.mxu0 %v941
    %978 = vmatprep.subr.mxu0 0.0
    %979 = vmatpush2.msra.mxu0 0.0
    %980 = vmatprep.subr.mxu0 0.0
    %981 = vmatpush2.msra.mxu0 0.0
    %982 = vmatprep.subr.mxu0 0.0
    %983 = vmatpush2.msra.mxu0 0.0
    %984 = vmatprep.subr.mxu0 0.0
    %985 = vmatpush2.msra.mxu0 0.0
    %986 = vmatprep.subr.mxu0 0.0
    %987 = vmatpush2.msra.mxu0 0.0
    %988 = vmatprep.subr.mxu0 0.0
    %989 = vmatpush2.msra.mxu0 0.0
    %990 = vmatprep.subr.mxu0 0.0
    %991 = vmatpush2.msra.mxu0 0.0
    %992 = vmatprep.subr.mxu0 0.0
    %993 = vmatpush2.msra.mxu0 0.0
    %994 = vmatprep.subr.mxu0 0.0
    %995 = vmatpush2.msra.mxu0 0.0
    %996 = vmatprep.subr.mxu0 0.0
    %997 = vmatpush2.msra.mxu0 0.0
    %998 = vmatprep.subr.mxu0 0.0
    %999 = vmatpush2.msra.mxu0 0.0
    %1000 = vmatprep.subr.mxu0 0.0
    %1001 = vmatpush2.msra.mxu0 0.0
    %1002 = vmatprep.subr.mxu0 0.0
    %1003 = vmatpush2.msra.mxu0 0.0
    %1004 = vmatprep.subr.mxu0 0.0
    %1005 = vmatpush2.msra.mxu0 0.0
    %1006 = vmatprep.subr.mxu0 0.0
    %1007 = vmatpush2.msra.mxu0 0.0
    %1008 = vmatprep.subr.mxu0 0.0
    %1009 = vmatpush2.msra.mxu0 0.0
    %1010 = vmatprep.mubr.f32.mxu0 0.0
    %1011 = vmatmul.mubr.f32.gmra.mxu0 %v944
    %v1012 = vpop.f32.mrf.mxu0
    %v1013 = vadd.f32 0.0, %v1012
    %v1014 = vpop.f32.mrf.mxu0
    %1015 = vdwg.mxu0
    %v1017 = vsel %vm205, %v1013, 0
    %1019 = vmatprep.subr.mxu0 0.0
    %1020 = vmatpush1.msra.mxu0 0.0
    %1021 = vmatprep.subr.mxu0 0.0
    %1022 = vmatpush1.msra.mxu0 0.0
    %1023 = vmatprep.subr.mxu0 0.0
    %1024 = vmatpush1.msra.mxu0 0.0
    %1025 = vmatprep.subr.mxu0 0.0
    %1026 = vmatpush1.msra.mxu0 0.0
    %1027 = vmatprep.subr.mxu0 0.0
    %1028 = vmatpush1.msra.mxu0 0.0
    %1029 = vmatprep.subr.mxu0 0.0
    %1030 = vmatpush1.msra.mxu0 0.0
    %1031 = vmatprep.subr.mxu0 0.0
    %1032 = vmatpush1.msra.mxu0 0.0
    %1033 = vmatprep.subr.mxu0 0.0
    %1034 = vmatpush1.msra.mxu0 0.0
    %1035 = vmatprep.subr.mxu0 0.0
    %1036 = vmatpush1.msra.mxu0 0.0
    %1037 = vmatprep.subr.mxu0 0.0
    %1038 = vmatpush1.msra.mxu0 0.0
    %1039 = vmatprep.subr.mxu0 0.0
    %1040 = vmatpush1.msra.mxu0 0.0
    %1041 = vmatprep.subr.mxu0 0.0
    %1042 = vmatpush1.msra.mxu0 0.0
    %1043 = vmatprep.subr.mxu0 0.0
    %1044 = vmatpush1.msra.mxu0 0.0
    %1045 = vmatprep.subr.mxu0 0.0
    %1046 = vmatpush1.msra.mxu0 0.0
    %1047 = vmatprep.subr.mxu0 0.0
    %1048 = vmatpush1.msra.mxu0 %v201
    %1049 = vmatprep.subr.mxu0 0.0
    %1050 = vmatpush1.msra.mxu0 %v200
    %1051 = vmatprep.subr.mxu0 0.0
    %1052 = vmatpush2.msra.mxu0 0.0
    %1053 = vmatprep.subr.mxu0 0.0
    %1054 = vmatpush2.msra.mxu0 0.0
    %1055 = vmatprep.subr.mxu0 0.0
    %1056 = vmatpush2.msra.mxu0 0.0
    %1057 = vmatprep.subr.mxu0 0.0
    %1058 = vmatpush2.msra.mxu0 0.0
    %1059 = vmatprep.subr.mxu0 0.0
    %1060 = vmatpush2.msra.mxu0 0.0
    %1061 = vmatprep.subr.mxu0 0.0
    %1062 = vmatpush2.msra.mxu0 0.0
    %1063 = vmatprep.subr.mxu0 0.0
    %1064 = vmatpush2.msra.mxu0 0.0
    %1065 = vmatprep.subr.mxu0 0.0
    %1066 = vmatpush2.msra.mxu0 0.0
    %1067 = vmatprep.subr.mxu0 0.0
    %1068 = vmatpush2.msra.mxu0 0.0
    %1069 = vmatprep.subr.mxu0 0.0
    %1070 = vmatpush2.msra.mxu0 0.0
    %1071 = vmatprep.subr.mxu0 0.0
    %1072 = vmatpush2.msra.mxu0 0.0
    %1073 = vmatprep.subr.mxu0 0.0
    %1074 = vmatpush2.msra.mxu0 0.0
    %1075 = vmatprep.subr.mxu0 0.0
    %1076 = vmatpush2.msra.mxu0 0.0
    %1077 = vmatprep.subr.mxu0 0.0
    %1078 = vmatpush2.msra.mxu0 0.0
    %1079 = vmatprep.subr.mxu0 0.0
    %1080 = vmatpush2.msra.mxu0 0.0
    %1081 = vmatprep.subr.mxu0 0.0
    %1082 = vmatpush2.msra.mxu0 0.0
    %1083 = vmatprep.mubr.f32.mxu0 0.0
    %1084 = vmatmul.mubr.f32.gmra.mxu0 %v1017
    %v1085 = vpop.f32.mrf.mxu0
    %v1086 = vadd.f32 0.0, %v1085
    %v1087 = vpop.f32.mrf.mxu0
    %1088 = vdwg.mxu0
    %v1090 = vsel %vm205, %v846, 0
    %1092 = vmatprep.subr.mxu0 0.0
    %1093 = vmatpush1.msra.mxu0 0.0
    %1094 = vmatprep.subr.mxu0 0.0
    %1095 = vmatpush1.msra.mxu0 0.0
    %1096 = vmatprep.subr.mxu0 0.0
    %1097 = vmatpush1.msra.mxu0 0.0
    %1098 = vmatprep.subr.mxu0 0.0
    %1099 = vmatpush1.msra.mxu0 0.0
    %1100 = vmatprep.subr.mxu0 0.0
    %1101 = vmatpush1.msra.mxu0 0.0
    %1102 = vmatprep.subr.mxu0 0.0
    %1103 = vmatpush1.msra.mxu0 0.0
    %1104 = vmatprep.subr.mxu0 0.0
    %1105 = vmatpush1.msra.mxu0 0.0
    %1106 = vmatprep.subr.mxu0 0.0
    %1107 = vmatpush1.msra.mxu0 0.0
    %1108 = vmatprep.subr.mxu0 0.0
    %1109 = vmatpush1.msra.mxu0 0.0
    %1110 = vmatprep.subr.mxu0 0.0
    %1111 = vmatpush1.msra.mxu0 0.0
    %1112 = vmatprep.subr.mxu0 0.0
    %1113 = vmatpush1.msra.mxu0 0.0
    %1114 = vmatprep.subr.mxu0 0.0
    %1115 = vmatpush1.msra.mxu0 0.0
    %1116 = vmatprep.subr.mxu0 0.0
    %1117 = vmatpush1.msra.mxu0 0.0
    %1118 = vmatprep.subr.mxu0 0.0
    %1119 = vmatpush1.msra.mxu0 0.0
    %1120 = vmatprep.subr.mxu0 0.0
    %1121 = vmatpush1.msra.mxu0 %v199
    %1122 = vmatprep.subr.mxu0 0.0
    %1123 = vmatpush1.msra.mxu0 %v198
    %1124 = vmatprep.subr.mxu0 0.0
    %1125 = vmatpush2.msra.mxu0 0.0
    %1126 = vmatprep.subr.mxu0 0.0
    %1127 = vmatpush2.msra.mxu0 0.0
    %1128 = vmatprep.subr.mxu0 0.0
    %1129 = vmatpush2.msra.mxu0 0.0
    %1130 = vmatprep.subr.mxu0 0.0
    %1131 = vmatpush2.msra.mxu0 0.0
    %1132 = vmatprep.subr.mxu0 0.0
    %1133 = vmatpush2.msra.mxu0 0.0
    %1134 = vmatprep.subr.mxu0 0.0
    %1135 = vmatpush2.msra.mxu0 0.0
    %1136 = vmatprep.subr.mxu0 0.0
    %1137 = vmatpush2.msra.mxu0 0.0
    %1138 = vmatprep.subr.mxu0 0.0
    %1139 = vmatpush2.msra.mxu0 0.0
    %1140 = vmatprep.subr.mxu0 0.0
    %1141 = vmatpush2.msra.mxu0 0.0
    %1142 = vmatprep.subr.mxu0 0.0
    %1143 = vmatpush2.msra.mxu0 0.0
    %1144 = vmatprep.subr.mxu0 0.0
    %1145 = vmatpush2.msra.mxu0 0.0
    %1146 = vmatprep.subr.mxu0 0.0
    %1147 = vmatpush2.msra.mxu0 0.0
    %1148 = vmatprep.subr.mxu0 0.0
    %1149 = vmatpush2.msra.mxu0 0.0
    %1150 = vmatprep.subr.mxu0 0.0
    %1151 = vmatpush2.msra.mxu0 0.0
    %1152 = vmatprep.subr.mxu0 0.0
    %1153 = vmatpush2.msra.mxu0 0.0
    %1154 = vmatprep.subr.mxu0 0.0
    %1155 = vmatpush2.msra.mxu0 0.0
    %1156 = vmatprep.mubr.f32.mxu0 0.0
    %1157 = vmatmul.mubr.f32.gmra.mxu0 %v1090
    %v1158 = vpop.f32.mrf.mxu0
    %v1159 = vadd.f32 %v1086, %v1158
    %v1160 = vpop.f32.mrf.mxu0
    %1161 = vdwg.mxu0
    %v1162 = vadd.f32 %v57, %v680
    %v1163 = vadd.f32 %v58, %v1159
    %v1164 = vlaneseq
    %v1165 = vshrl.u32 %v1164, 7
    %v1166 = vsub.s32 0, %v1165
    %v1167 = vrot.slane %v64, %v1166
    %v1168 = vadd.f32 %v1162, %v1167
    %v1169 = vadd.f32 %v1163, %v1167
    %v1170 = vsel %vm69, %v1168, 0.0
    %1171 = vadd.xlane.f32.xlu0 %v1170
    %v1172 = vpop.xlane.xlu0 %1171
    %v1173 = vsel %vm69, %v1169, 0.0
    %1174 = vadd.xlane.f32.xlu0 %v1173
    %v1175 = vpop.xlane.xlu0 %1174
    %v1176 = vmul.f32 %v1172, %v76
    %v1177 = vmul.f32 %v1175, %v76
    %v1178 = vsub.f32 %v1168, %v1176
    %v1179 = vsub.f32 %v1169, %v1177
    %v1180 = vmul.f32 %v1178, %v1178
    %v1181 = vmul.f32 %v1179, %v1179
    %v1182 = vsel %vm69, %v1180, 0.0
    %1183 = vadd.xlane.f32.xlu0 %v1182
    %v1184 = vpop.xlane.xlu0 %1183
    %v1185 = vsel %vm69, %v1181, 0.0
    %1186 = vadd.xlane.f32.xlu0 %v1185
    %v1187 = vpop.xlane.xlu0 %1186
    %v1188 = vmul.f32 %v1184, %v76
    %v1189 = vmul.f32 %v1187, %v76
    %v1190 = vadd.f32 %v1188, 1e-05
    %v1191 = vadd.f32 %v1189, 1e-05
    %v1192 = vrsqrt.pop %v1190
    %v1193 = vrsqrt.pop %v1191
    %v1194 = vmul.f32 %v1178, %v1192
    %v1195 = vmul.f32 %v1179, %v1193
    %v1196 = vlaneseq
    %v1197 = vshrl.u32 %v1196, 7
    %v1198 = vsub.s32 0, %v1197
    %v1199 = vrot.slane %v65, %v1198
    %v1200 = vmul.f32 %v1194, %v1199
    %v1201 = vmul.f32 %v1195, %v1199
    %v1202 = vlaneseq
    %v1203 = vshrl.u32 %v1202, 7
    %v1204 = vsub.s32 0, %v1203
    %v1205 = vrot.slane %v66, %v1204
    %v1206 = vadd.f32 %v1200, %v1205
    %v1207 = vadd.f32 %v1201, %v1205
    %v1208 = vld [vmem:[%s10] sm:$0xff]
    %v1209 = vld [vmem:[%s10 + $0x8] sm:$0xff]
    %v1210 = vld [vmem:[%s10 + $0x10] sm:$0xff]
    %v1211 = vld [vmem:[%s10 + $0x18] sm:$0xff]
    %v1212 = vlaneseq
    %v1213 = vshrl.u32 %v1212, 7
    %v1214 = vsub.s32 0, %v1213
    %v1215 = vrot.slane %v67, %v1214
    %v1217 = vsel %vm69, %v1206, 0
    %v1220 = vsel %vm69, %v1207, 0
    %1222 = vmatprep.subr.mxu0 0.0
    %1223 = vmatpush1.msra.mxu0 0.0
    %1224 = vmatprep.subr.mxu0 0.0
    %1225 = vmatpush1.msra.mxu0 0.0
    %1226 = vmatprep.subr.mxu0 0.0
    %1227 = vmatpush1.msra.mxu0 0.0
    %1228 = vmatprep.subr.mxu0 0.0
    %1229 = vmatpush1.msra.mxu0 0.0
    %1230 = vmatprep.subr.mxu0 0.0
    %1231 = vmatpush1.msra.mxu0 0.0
    %1232 = vmatprep.subr.mxu0 0.0
    %1233 = vmatpush1.msra.mxu0 0.0
    %1234 = vmatprep.subr.mxu0 0.0
    %1235 = vmatpush1.msra.mxu0 0.0
    %1236 = vmatprep.subr.mxu0 0.0
    %1237 = vmatpush1.msra.mxu0 0.0
    %1238 = vmatprep.subr.mxu0 0.0
    %1239 = vmatpush1.msra.mxu0 0.0
    %1240 = vmatprep.subr.mxu0 0.0
    %1241 = vmatpush1.msra.mxu0 0.0
    %1242 = vmatprep.subr.mxu0 0.0
    %1243 = vmatpush1.msra.mxu0 0.0
    %1244 = vmatprep.subr.mxu0 0.0
    %1245 = vmatpush1.msra.mxu0 0.0
    %1246 = vmatprep.subr.mxu0 0.0
    %1247 = vmatpush1.msra.mxu0 %v1211
    %1248 = vmatprep.subr.mxu0 0.0
    %1249 = vmatpush1.msra.mxu0 %v1210
    %1250 = vmatprep.subr.mxu0 0.0
    %1251 = vmatpush1.msra.mxu0 %v1209
    %1252 = vmatprep.subr.mxu0 0.0
    %1253 = vmatpush1.msra.mxu0 %v1208
    %1254 = vmatprep.subr.mxu0 0.0
    %1255 = vmatpush2.msra.mxu0 0.0
    %1256 = vmatprep.subr.mxu0 0.0
    %1257 = vmatpush2.msra.mxu0 0.0
    %1258 = vmatprep.subr.mxu0 0.0
    %1259 = vmatpush2.msra.mxu0 0.0
    %1260 = vmatprep.subr.mxu0 0.0
    %1261 = vmatpush2.msra.mxu0 0.0
    %1262 = vmatprep.subr.mxu0 0.0
    %1263 = vmatpush2.msra.mxu0 0.0
    %1264 = vmatprep.subr.mxu0 0.0
    %1265 = vmatpush2.msra.mxu0 0.0
    %1266 = vmatprep.subr.mxu0 0.0
    %1267 = vmatpush2.msra.mxu0 0.0
    %1268 = vmatprep.subr.mxu0 0.0
    %1269 = vmatpush2.msra.mxu0 0.0
    %1270 = vmatprep.subr.mxu0 0.0
    %1271 = vmatpush2.msra.mxu0 0.0
    %1272 = vmatprep.subr.mxu0 0.0
    %1273 = vmatpush2.msra.mxu0 0.0
    %1274 = vmatprep.subr.mxu0 0.0
    %1275 = vmatpush2.msra.mxu0 0.0
    %1276 = vmatprep.subr.mxu0 0.0
    %1277 = vmatpush2.msra.mxu0 0.0
    %1278 = vmatprep.subr.mxu0 0.0
    %1279 = vmatpush2.msra.mxu0 0.0
    %1280 = vmatprep.subr.mxu0 0.0
    %1281 = vmatpush2.msra.mxu0 0.0
    %1282 = vmatprep.subr.mxu0 0.0
    %1283 = vmatpush2.msra.mxu0 0.0
    %1284 = vmatprep.subr.mxu0 0.0
    %1285 = vmatpush2.msra.mxu0 0.0
    %1286 = vmatprep.mubr.f32.mxu0 0.0
    %1287 = vmatmul.mubr.f32.gmra.mxu0 %v1217
    %v1288 = vpop.f32.mrf.mxu0
    %v1289 = vadd.f32 %v1215, %v1288
    %v1290 = vpop.f32.mrf.mxu0
    %1291 = vmatprep.mubr.f32.mxu0 0.0
    %1292 = vmatmul.mubr.f32.gmra.mxu0 %v1220
    %v1293 = vpop.f32.mrf.mxu0
    %v1294 = vadd.f32 %v1215, %v1293
    %v1295 = vpop.f32.mrf.mxu0
    %1296 = vdwg.mxu0
    %v1297 = vmul.f32 %v1289, %v1289
    %v1298 = vmul.f32 %v1294, %v1294
    %v1299 = vmul.f32 %v1289, %v1297
    %v1300 = vmul.f32 %v1294, %v1298
    %v1301 = vmul.f32 %v1299, 0.044715
    %v1302 = vmul.f32 %v1300, 0.044715
    %v1303 = vadd.f32 %v1289, %v1301
    %v1304 = vadd.f32 %v1294, %v1302
    %v1305 = vmul.f32 %v1303, 0.7978846
    %v1306 = vmul.f32 %v1304, 0.7978846
    %v1307 = vtanh.pop %v1305
    %v1308 = vtanh.pop %v1306
    %v1309 = vadd.f32 %v1307, 1.0
    %v1310 = vadd.f32 %v1308, 1.0
    %v1311 = vmul.f32 %v1309, 0.5
    %v1312 = vmul.f32 %v1310, 0.5
    %v1313 = vmul.f32 %v1289, %v1311
    %v1314 = vmul.f32 %v1294, %v1312
    %v1315 = vld [vmem:[%s12] sm:$0xff]
    %v1316 = vld [vmem:[%s12 + $0x8] sm:$0xff]
    %v1317 = vld [vmem:[%s12 + $0x10] sm:$0xff]
    %v1318 = vld [vmem:[%s12 + $0x18] sm:$0xff]
    %v1319 = vld [vmem:[%s12 + $0x20] sm:$0xff]
    %v1320 = vld [vmem:[%s12 + $0x28] sm:$0xff]
    %v1321 = vld [vmem:[%s12 + $0x30] sm:$0xff]
    %v1322 = vld [vmem:[%s12 + $0x38] sm:$0xff]
    %v1323 = vld [vmem:[%s12 + $0x40] sm:$0xff]
    %v1324 = vld [vmem:[%s12 + $0x48] sm:$0xff]
    %v1325 = vld [vmem:[%s12 + $0x50] sm:$0xff]
    %v1326 = vld [vmem:[%s12 + $0x58] sm:$0xff]
    %v1327 = vld [vmem:[%s12 + $0x60] sm:$0xff]
    %v1328 = vld [vmem:[%s12 + $0x68] sm:$0xff]
    %v1329 = vld [vmem:[%s12 + $0x70] sm:$0xff]
    %v1330 = vld [vmem:[%s12 + $0x78] sm:$0xff]
    %1331 = vmatprep.subr.mxu0 0.0
    %1332 = vmatpush1.msra.mxu0 %v1330
    %1333 = vmatprep.subr.mxu0 0.0
    %1334 = vmatpush1.msra.mxu0 %v1329
    %1335 = vmatprep.subr.mxu0 0.0
    %1336 = vmatpush1.msra.mxu0 %v1328
    %1337 = vmatprep.subr.mxu0 0.0
    %1338 = vmatpush1.msra.mxu0 %v1327
    %1339 = vmatprep.subr.mxu0 0.0
    %1340 = vmatpush1.msra.mxu0 %v1326
    %1341 = vmatprep.subr.mxu0 0.0
    %1342 = vmatpush1.msra.mxu0 %v1325
    %1343 = vmatprep.subr.mxu0 0.0
    %1344 = vmatpush1.msra.mxu0 %v1324
    %1345 = vmatprep.subr.mxu0 0.0
    %1346 = vmatpush1.msra.mxu0 %v1323
    %1347 = vmatprep.subr.mxu0 0.0
    %1348 = vmatpush1.msra.mxu0 %v1322
    %1349 = vmatprep.subr.mxu0 0.0
    %1350 = vmatpush1.msra.mxu0 %v1321
    %1351 = vmatprep.subr.mxu0 0.0
    %1352 = vmatpush1.msra.mxu0 %v1320
    %1353 = vmatprep.subr.mxu0 0.0
    %1354 = vmatpush1.msra.mxu0 %v1319
    %1355 = vmatprep.subr.mxu0 0.0
    %1356 = vmatpush1.msra.mxu0 %v1318
    %1357 = vmatprep.subr.mxu0 0.0
    %1358 = vmatpush1.msra.mxu0 %v1317
    %1359 = vmatprep.subr.mxu0 0.0
    %1360 = vmatpush1.msra.mxu0 %v1316
    %1361 = vmatprep.subr.mxu0 0.0
    %1362 = vmatpush1.msra.mxu0 %v1315
    %1363 = vmatprep.subr.mxu0 0.0
    %1364 = vmatpush2.msra.mxu0 0.0
    %1365 = vmatprep.subr.mxu0 0.0
    %1366 = vmatpush2.msra.mxu0 0.0
    %1367 = vmatprep.subr.mxu0 0.0
    %1368 = vmatpush2.msra.mxu0 0.0
    %1369 = vmatprep.subr.mxu0 0.0
    %1370 = vmatpush2.msra.mxu0 0.0
    %1371 = vmatprep.subr.mxu0 0.0
    %1372 = vmatpush2.msra.mxu0 0.0
    %1373 = vmatprep.subr.mxu0 0.0
    %1374 = vmatpush2.msra.mxu0 0.0
    %1375 = vmatprep.subr.mxu0 0.0
    %1376 = vmatpush2.msra.mxu0 0.0
    %1377 = vmatprep.subr.mxu0 0.0
    %1378 = vmatpush2.msra.mxu0 0.0
    %1379 = vmatprep.subr.mxu0 0.0
    %1380 = vmatpush2.msra.mxu0 0.0
    %1381 = vmatprep.subr.mxu0 0.0
    %1382 = vmatpush2.msra.mxu0 0.0
    %1383 = vmatprep.subr.mxu0 0.0
    %1384 = vmatpush2.msra.mxu0 0.0
    %1385 = vmatprep.subr.mxu0 0.0
    %1386 = vmatpush2.msra.mxu0 0.0
    %1387 = vmatprep.subr.mxu0 0.0
    %1388 = vmatpush2.msra.mxu0 0.0
    %1389 = vmatprep.subr.mxu0 0.0
    %1390 = vmatpush2.msra.mxu0 0.0
    %1391 = vmatprep.subr.mxu0 0.0
    %1392 = vmatpush2.msra.mxu0 0.0
    %1393 = vmatprep.subr.mxu0 0.0
    %1394 = vmatpush2.msra.mxu0 0.0
    %1395 = vmatprep.mubr.f32.mxu0 0.0
    %1396 = vmatmul.mubr.f32.gmra.mxu0 %v1313
    %v1397 = vpop.f32.mrf.mxu0
    %v1398 = vadd.f32 0.0, %v1397
    %v1399 = vpop.f32.mrf.mxu0
    %1400 = vmatprep.mubr.f32.mxu0 0.0
    %1401 = vmatmul.mubr.f32.gmra.mxu0 %v1314
    %v1402 = vpop.f32.mrf.mxu0
    %v1403 = vadd.f32 0.0, %v1402
    %v1404 = vpop.f32.mrf.mxu0
    %1405 = vdwg.mxu0
    %v1406 = vadd.f32 %v1168, %v1398
    %v1407 = vadd.f32 %v1169, %v1403
    %v1408 = vlaneseq
    %v1409 = vshrl.u32 %v1408, 7
    %v1410 = vsub.s32 0, %v1409
    %v1411 = vrot.slane %v68, %v1410
    %v1412 = vadd.f32 %v1406, %v1411
    %v1413 = vadd.f32 %v1407, %v1411
    %v1414 = vsel %vm69, %v1412, 0.0
    %1415 = vadd.xlane.f32.xlu0 %v1414
    %v1416 = vpop.xlane.xlu0 %1415
    %v1417 = vsel %vm69, %v1413, 0.0
    %1418 = vadd.xlane.f32.xlu0 %v1417
    %v1419 = vpop.xlane.xlu0 %1418
    %v1420 = vmul.f32 %v1416, %v76
    %v1421 = vmul.f32 %v1419, %v76
    %v1422 = vsub.f32 %v1412, %v1420
    %v1423 = vsub.f32 %v1413, %v1421
    %v1424 = vmul.f32 %v1422, %v1422
    %v1425 = vmul.f32 %v1423, %v1423
    %v1426 = vsel %vm69, %v1424, 0.0
    %1427 = vadd.xlane.f32.xlu0 %v1426
    %v1428 = vpop.xlane.xlu0 %1427
    %v1429 = vsel %vm69, %v1425, 0.0
    %1430 = vadd.xlane.f32.xlu0 %v1429
    %v1431 = vpop.xlane.xlu0 %1430
    %v1432 = vmul.f32 %v1428, %v76
    %v1433 = vmul.f32 %v1431, %v76
    %v1434 = vadd.f32 %v1432, 1e-05
    %v1435 = vadd.f32 %v1433, 1e-05
    %v1436 = vrsqrt.pop %v1434
    %v1437 = vrsqrt.pop %v1435
    %v1438 = vmul.f32 %v1422, %v1436
    %v1439 = vmul.f32 %v1423, %v1437
    %v1440 = vlaneseq
    %v1441 = vshrl.u32 %v1440, 7
    %v1442 = vsub.s32 1, %v1441
    %v1443 = vrot.slane %v61, %v1442
    %v1444 = vmul.f32 %v1438, %v1443
    %v1445 = vmul.f32 %v1439, %v1443
    %v1446 = vlaneseq
    %v1447 = vshrl.u32 %v1446, 7
    %v1448 = vsub.s32 1, %v1447
    %v1449 = vrot.slane %v62, %v1448
    %v1450 = vadd.f32 %v1444, %v1449
    %v1451 = vadd.f32 %v1445, %v1449
    %s1452 = scalar_lea.vmem %s4, 32
    %v1453 = vld [vmem:[%s1452] sm:$0xff]
    %v1454 = vld [vmem:[%s1452 + $0x8] sm:$0xff]
    %v1455 = vld [vmem:[%s1452 + $0x10] sm:$0xff]
    %v1456 = vld [vmem:[%s1452 + $0x18] sm:$0xff]
    %v1457 = vlaneseq
    %v1458 = vshrl.u32 %v1457, 7
    %v1459 = vsub.s32 1, %v1458
    %v1460 = vrot.slane %v63, %v1459
    %v1462 = vsel %vm69, %v1450, 0
    %v1465 = vsel %vm69, %v1451, 0
    %1467 = vmatprep.subr.mxu0 0.0
    %1468 = vmatpush1.msra.mxu0 0.0
    %1469 = vmatprep.subr.mxu0 0.0
    %1470 = vmatpush1.msra.mxu0 0.0
    %1471 = vmatprep.subr.mxu0 0.0
    %1472 = vmatpush1.msra.mxu0 0.0
    %1473 = vmatprep.subr.mxu0 0.0
    %1474 = vmatpush1.msra.mxu0 0.0
    %1475 = vmatprep.subr.mxu0 0.0
    %1476 = vmatpush1.msra.mxu0 0.0
    %1477 = vmatprep.subr.mxu0 0.0
    %1478 = vmatpush1.msra.mxu0 0.0
    %1479 = vmatprep.subr.mxu0 0.0
    %1480 = vmatpush1.msra.mxu0 0.0
    %1481 = vmatprep.subr.mxu0 0.0
    %1482 = vmatpush1.msra.mxu0 0.0
    %1483 = vmatprep.subr.mxu0 0.0
    %1484 = vmatpush1.msra.mxu0 0.0
    %1485 = vmatprep.subr.mxu0 0.0
    %1486 = vmatpush1.msra.mxu0 0.0
    %1487 = vmatprep.subr.mxu0 0.0
    %1488 = vmatpush1.msra.mxu0 0.0
    %1489 = vmatprep.subr.mxu0 0.0
    %1490 = vmatpush1.msra.mxu0 0.0
    %1491 = vmatprep.subr.mxu0 0.0
    %1492 = vmatpush1.msra.mxu0 %v1456
    %1493 = vmatprep.subr.mxu0 0.0
    %1494 = vmatpush1.msra.mxu0 %v1455
    %1495 = vmatprep.subr.mxu0 0.0
    %1496 = vmatpush1.msra.mxu0 %v1454
    %1497 = vmatprep.subr.mxu0 0.0
    %1498 = vmatpush1.msra.mxu0 %v1453
    %1499 = vmatprep.subr.mxu0 0.0
    %1500 = vmatpush2.msra.mxu0 0.0
    %1501 = vmatprep.subr.mxu0 0.0
    %1502 = vmatpush2.msra.mxu0 0.0
    %1503 = vmatprep.subr.mxu0 0.0
    %1504 = vmatpush2.msra.mxu0 0.0
    %1505 = vmatprep.subr.mxu0 0.0
    %1506 = vmatpush2.msra.mxu0 0.0
    %1507 = vmatprep.subr.mxu0 0.0
    %1508 = vmatpush2.msra.mxu0 0.0
    %1509 = vmatprep.subr.mxu0 0.0
    %1510 = vmatpush2.msra.mxu0 0.0
    %1511 = vmatprep.subr.mxu0 0.0
    %1512 = vmatpush2.msra.mxu0 0.0
    %1513 = vmatprep.subr.mxu0 0.0
    %1514 = vmatpush2.msra.mxu0 0.0
    %1515 = vmatprep.subr.mxu0 0.0
    %1516 = vmatpush2.msra.mxu0 0.0
    %1517 = vmatprep.subr.mxu0 0.0
    %1518 = vmatpush2.msra.mxu0 0.0
    %1519 = vmatprep.subr.mxu0 0.0
    %1520 = vmatpush2.msra.mxu0 0.0
    %1521 = vmatprep.subr.mxu0 0.0
    %1522 = vmatpush2.msra.mxu0 0.0
    %1523 = vmatprep.subr.mxu0 0.0
    %1524 = vmatpush2.msra.mxu0 0.0
    %1525 = vmatprep.subr.mxu0 0.0
    %1526 = vmatpush2.msra.mxu0 0.0
    %1527 = vmatprep.subr.mxu0 0.0
    %1528 = vmatpush2.msra.mxu0 0.0
    %1529 = vmatprep.subr.mxu0 0.0
    %1530 = vmatpush2.msra.mxu0 0.0
    %1531 = vmatprep.mubr.f32.mxu0 0.0
    %1532 = vmatmul.mubr.f32.gmra.mxu0 %v1462
    %v1533 = vpop.f32.mrf.mxu0
    %v1534 = vadd.f32 %v1460, %v1533
    %v1535 = vpop.f32.mrf.mxu0
    %1536 = vmatprep.mubr.f32.mxu0 0.0
    %1537 = vmatmul.mubr.f32.gmra.mxu0 %v1465
    %v1538 = vpop.f32.mrf.mxu0
    %v1539 = vadd.f32 %v1460, %v1538
    %v1540 = vpop.f32.mrf.mxu0
    %1541 = vdwg.mxu0
    %s1542 = scalar_lea.vmem %s6, 32
    %v1543 = vld [vmem:[%s1542] sm:$0xff]
    %v1544 = vld [vmem:[%s1542 + $0x8] sm:$0xff]
    %v1545 = vld [vmem:[%s1542 + $0x10] sm:$0xff]
    %v1546 = vld [vmem:[%s1542 + $0x18] sm:$0xff]
    %1548 = vrot.lane.b32.xlu0 %v1534, 96
    %v1549 = vpop.permute.xlu0 %1548
    %v1550 = vsel %vm205, %v1534, 0
    %v1552 = vsel %vm205, %v1549, 0
    %1554 = vmatprep.subr.mxu0 0.0
    %1555 = vmatpush1.xpose.msra.mxu0 0.0
    %1556 = vmatprep.subr.mxu0 0.0
    %1557 = vmatpush1.xpose.msra.mxu0 0.0
    %1558 = vmatprep.subr.mxu0 0.0
    %1559 = vmatpush1.xpose.msra.mxu0 0.0
    %1560 = vmatprep.subr.mxu0 0.0
    %1561 = vmatpush1.xpose.msra.mxu0 0.0
    %1562 = vmatprep.subr.mxu0 0.0
    %1563 = vmatpush1.xpose.msra.mxu0 0.0
    %1564 = vmatprep.subr.mxu0 0.0
    %1565 = vmatpush1.xpose.msra.mxu0 0.0
    %1566 = vmatprep.subr.mxu0 0.0
    %1567 = vmatpush1.xpose.msra.mxu0 0.0
    %1568 = vmatprep.subr.mxu0 0.0
    %1569 = vmatpush1.xpose.msra.mxu0 0.0
    %1570 = vmatprep.subr.mxu0 0.0
    %1571 = vmatpush1.xpose.msra.mxu0 0.0
    %1572 = vmatprep.subr.mxu0 0.0
    %1573 = vmatpush1.xpose.msra.mxu0 0.0
    %1574 = vmatprep.subr.mxu0 0.0
    %1575 = vmatpush1.xpose.msra.mxu0 0.0
    %1576 = vmatprep.subr.mxu0 0.0
    %1577 = vmatpush1.xpose.msra.mxu0 0.0
    %1578 = vmatprep.subr.mxu0 0.0
    %1579 = vmatpush1.xpose.msra.mxu0 0.0
    %1580 = vmatprep.subr.mxu0 0.0
    %1581 = vmatpush1.xpose.msra.mxu0 0.0
    %1582 = vmatprep.subr.mxu0 0.0
    %1583 = vmatpush1.xpose.msra.mxu0 0.0
    %1584 = vmatprep.subr.mxu0 0.0
    %1585 = vmatpush1.xpose.msra.mxu0 %v1552
    %1586 = vmatprep.subr.mxu0 0.0
    %1587 = vmatpush2.xpose.msra.mxu0 0.0
    %1588 = vmatprep.subr.mxu0 0.0
    %1589 = vmatpush2.xpose.msra.mxu0 0.0
    %1590 = vmatprep.subr.mxu0 0.0
    %1591 = vmatpush2.xpose.msra.mxu0 0.0
    %1592 = vmatprep.subr.mxu0 0.0
    %1593 = vmatpush2.xpose.msra.mxu0 0.0
    %1594 = vmatprep.subr.mxu0 0.0
    %1595 = vmatpush2.xpose.msra.mxu0 0.0
    %1596 = vmatprep.subr.mxu0 0.0
    %1597 = vmatpush2.xpose.msra.mxu0 0.0
    %1598 = vmatprep.subr.mxu0 0.0
    %1599 = vmatpush2.xpose.msra.mxu0 0.0
    %1600 = vmatprep.subr.mxu0 0.0
    %1601 = vmatpush2.xpose.msra.mxu0 0.0
    %1602 = vmatprep.subr.mxu0 0.0
    %1603 = vmatpush2.xpose.msra.mxu0 0.0
    %1604 = vmatprep.subr.mxu0 0.0
    %1605 = vmatpush2.xpose.msra.mxu0 0.0
    %1606 = vmatprep.subr.mxu0 0.0
    %1607 = vmatpush2.xpose.msra.mxu0 0.0
    %1608 = vmatprep.subr.mxu0 0.0
    %1609 = vmatpush2.xpose.msra.mxu0 0.0
    %1610 = vmatprep.subr.mxu0 0.0
    %1611 = vmatpush2.xpose.msra.mxu0 0.0
    %1612 = vmatprep.subr.mxu0 0.0
    %1613 = vmatpush2.xpose.msra.mxu0 0.0
    %1614 = vmatprep.subr.mxu0 0.0
    %1615 = vmatpush2.xpose.msra.mxu0 0.0
    %1616 = vmatprep.subr.mxu0 0.0
    %1617 = vmatpush2.xpose.msra.mxu0 0.0
    %1618 = vmatprep.mubr.f32.mxu0 0.0
    %1619 = vmatmul.mubr.f32.gmra.mxu0 %v1550
    %v1620 = vpop.f32.mrf.mxu0
    %v1621 = vadd.f32 0.0, %v1620
    %v1622 = vpop.f32.mrf.mxu0
    %1623 = vdwg.mxu0
    %v1624 = vmul.f32 %v1621, 0.25
    %v1625 = vadd.f32 %v1624, %v59
    %v1626 = vsel %vm282, %v1625, -inf
    %1627 = vmax.xlane.f32.xlu0 %v1626
    %v1628 = vpop.xlane.xlu0 %1627
    %v1629 = vsub.f32 %v1625, %v1628
    %v1630 = vmul.f32 %v1629, 1.442695
    %v1631 = vpow.pop %v1630
    %v1632 = vsel %vm282, %v1631, 0.0
    %1633 = vadd.xlane.f32.xlu0 %v1632
    %v1634 = vpop.xlane.xlu0 %1633
    %v1635 = vrcp.pop %v1634
    %v1636 = vmul.f32 %v1631, %v1635
    %1637 = vrot.lane.b32.xlu0 %v1534, 64
    %v1638 = vpop.permute.xlu0 %1637
    %v1641 = vsel %vm282, %v1636, 0
    %1643 = vmatprep.subr.mxu0 0.0
    %1644 = vmatpush1.msra.mxu0 0.0
    %1645 = vmatprep.subr.mxu0 0.0
    %1646 = vmatpush1.msra.mxu0 0.0
    %1647 = vmatprep.subr.mxu0 0.0
    %1648 = vmatpush1.msra.mxu0 0.0
    %1649 = vmatprep.subr.mxu0 0.0
    %1650 = vmatpush1.msra.mxu0 0.0
    %1651 = vmatprep.subr.mxu0 0.0
    %1652 = vmatpush1.msra.mxu0 0.0
    %1653 = vmatprep.subr.mxu0 0.0
    %1654 = vmatpush1.msra.mxu0 0.0
    %1655 = vmatprep.subr.mxu0 0.0
    %1656 = vmatpush1.msra.mxu0 0.0
    %1657 = vmatprep.subr.mxu0 0.0
    %1658 = vmatpush1.msra.mxu0 0.0
    %1659 = vmatprep.subr.mxu0 0.0
    %1660 = vmatpush1.msra.mxu0 0.0
    %1661 = vmatprep.subr.mxu0 0.0
    %1662 = vmatpush1.msra.mxu0 0.0
    %1663 = vmatprep.subr.mxu0 0.0
    %1664 = vmatpush1.msra.mxu0 0.0
    %1665 = vmatprep.subr.mxu0 0.0
    %1666 = vmatpush1.msra.mxu0 0.0
    %1667 = vmatprep.subr.mxu0 0.0
    %1668 = vmatpush1.msra.mxu0 0.0
    %1669 = vmatprep.subr.mxu0 0.0
    %1670 = vmatpush1.msra.mxu0 0.0
    %1671 = vmatprep.subr.mxu0 0.0
    %1672 = vmatpush1.msra.mxu0 0.0
    %1673 = vmatprep.subr.mxu0 0.0
    %1674 = vmatpush1.msra.mxu0 %v1638
    %1675 = vmatprep.subr.mxu0 0.0
    %1676 = vmatpush2.msra.mxu0 0.0
    %1677 = vmatprep.subr.mxu0 0.0
    %1678 = vmatpush2.msra.mxu0 0.0
    %1679 = vmatprep.subr.mxu0 0.0
    %1680 = vmatpush2.msra.mxu0 0.0
    %1681 = vmatprep.subr.mxu0 0.0
    %1682 = vmatpush2.msra.mxu0 0.0
    %1683 = vmatprep.subr.mxu0 0.0
    %1684 = vmatpush2.msra.mxu0 0.0
    %1685 = vmatprep.subr.mxu0 0.0
    %1686 = vmatpush2.msra.mxu0 0.0
    %1687 = vmatprep.subr.mxu0 0.0
    %1688 = vmatpush2.msra.mxu0 0.0
    %1689 = vmatprep.subr.mxu0 0.0
    %1690 = vmatpush2.msra.mxu0 0.0
    %1691 = vmatprep.subr.mxu0 0.0
    %1692 = vmatpush2.msra.mxu0 0.0
    %1693 = vmatprep.subr.mxu0 0.0
    %1694 = vmatpush2.msra.mxu0 0.0
    %1695 = vmatprep.subr.mxu0 0.0
    %1696 = vmatpush2.msra.mxu0 0.0
    %1697 = vmatprep.subr.mxu0 0.0
    %1698 = vmatpush2.msra.mxu0 0.0
    %1699 = vmatprep.subr.mxu0 0.0
    %1700 = vmatpush2.msra.mxu0 0.0
    %1701 = vmatprep.subr.mxu0 0.0
    %1702 = vmatpush2.msra.mxu0 0.0
    %1703 = vmatprep.subr.mxu0 0.0
    %1704 = vmatpush2.msra.mxu0 0.0
    %1705 = vmatprep.subr.mxu0 0.0
    %1706 = vmatpush2.msra.mxu0 0.0
    %1707 = vmatprep.mubr.f32.mxu0 0.0
    %1708 = vmatmul.mubr.f32.gmra.mxu0 %v1641
    %v1709 = vpop.f32.mrf.mxu0
    %v1710 = vadd.f32 0.0, %v1709
    %v1711 = vpop.f32.mrf.mxu0
    %1712 = vdwg.mxu0
    %1713 = vrot.lane.b32.xlu0 %v1534, 112
    %v1714 = vpop.permute.xlu0 %1713
    %1715 = vrot.lane.b32.xlu0 %v1534, 80
    %v1716 = vpop.permute.xlu0 %1715
    %v1717 = vsel %vm205, %v1714, 0
    %v1719 = vsel %vm205, %v1716, 0
    %1721 = vmatprep.subr.mxu0 0.0
    %1722 = vmatpush1.xpose.msra.mxu0 0.0
    %1723 = vmatprep.subr.mxu0 0.0
    %1724 = vmatpush1.xpose.msra.mxu0 0.0
    %1725 = vmatprep.subr.mxu0 0.0
    %1726 = vmatpush1.xpose.msra.mxu0 0.0
    %1727 = vmatprep.subr.mxu0 0.0
    %1728 = vmatpush1.xpose.msra.mxu0 0.0
    %1729 = vmatprep.subr.mxu0 0.0
    %1730 = vmatpush1.xpose.msra.mxu0 0.0
    %1731 = vmatprep.subr.mxu0 0.0
    %1732 = vmatpush1.xpose.msra.mxu0 0.0
    %1733 = vmatprep.subr.mxu0 0.0
    %1734 = vmatpush1.xpose.msra.mxu0 0.0
    %1735 = vmatprep.subr.mxu0 0.0
    %1736 = vmatpush1.xpose.msra.mxu0 0.0
    %1737 = vmatprep.subr.mxu0 0.0
    %1738 = vmatpush1.xpose.msra.mxu0 0.0
    %1739 = vmatprep.subr.mxu0 0.0
    %1740 = vmatpush1.xpose.msra.mxu0 0.0
    %1741 = vmatprep.subr.mxu0 0.0
    %1742 = vmatpush1.xpose.msra.mxu0 0.0
    %1743 = vmatprep.subr.mxu0 0.0
    %1744 = vmatpush1.xpose.msra.mxu0 0.0
    %1745 = vmatprep.subr.mxu0 0.0
    %1746 = vmatpush1.xpose.msra.mxu0 0.0
    %1747 = vmatprep.subr.mxu0 0.0
    %1748 = vmatpush1.xpose.msra.mxu0 0.0
    %1749 = vmatprep.subr.mxu0 0.0
    %1750 = vmatpush1.xpose.msra.mxu0 0.0
    %1751 = vmatprep.subr.mxu0 0.0
    %1752 = vmatpush1.xpose.msra.mxu0 %v1719
    %1753 = vmatprep.subr.mxu0 0.0
    %1754 = vmatpush2.xpose.msra.mxu0 0.0
    %1755 = vmatprep.subr.mxu0 0.0
    %1756 = vmatpush2.xpose.msra.mxu0 0.0
    %1757 = vmatprep.subr.mxu0 0.0
    %1758 = vmatpush2.xpose.msra.mxu0 0.0
    %1759 = vmatprep.subr.mxu0 0.0
    %1760 = vmatpush2.xpose.msra.mxu0 0.0
    %1761 = vmatprep.subr.mxu0 0.0
    %1762 = vmatpush2.xpose.msra.mxu0 0.0
    %1763 = vmatprep.subr.mxu0 0.0
    %1764 = vmatpush2.xpose.msra.mxu0 0.0
    %1765 = vmatprep.subr.mxu0 0.0
    %1766 = vmatpush2.xpose.msra.mxu0 0.0
    %1767 = vmatprep.subr.mxu0 0.0
    %1768 = vmatpush2.xpose.msra.mxu0 0.0
    %1769 = vmatprep.subr.mxu0 0.0
    %1770 = vmatpush2.xpose.msra.mxu0 0.0
    %1771 = vmatprep.subr.mxu0 0.0
    %1772 = vmatpush2.xpose.msra.mxu0 0.0
    %1773 = vmatprep.subr.mxu0 0.0
    %1774 = vmatpush2.xpose.msra.mxu0 0.0
    %1775 = vmatprep.subr.mxu0 0.0
    %1776 = vmatpush2.xpose.msra.mxu0 0.0
    %1777 = vmatprep.subr.mxu0 0.0
    %1778 = vmatpush2.xpose.msra.mxu0 0.0
    %1779 = vmatprep.subr.mxu0 0.0
    %1780 = vmatpush2.xpose.msra.mxu0 0.0
    %1781 = vmatprep.subr.mxu0 0.0
    %1782 = vmatpush2.xpose.msra.mxu0 0.0
    %1783 = vmatprep.subr.mxu0 0.0
    %1784 = vmatpush2.xpose.msra.mxu0 0.0
    %1785 = vmatprep.mubr.f32.mxu0 0.0
    %1786 = vmatmul.mubr.f32.gmra.mxu0 %v1717
    %v1787 = vpop.f32.mrf.mxu0
    %v1788 = vadd.f32 0.0, %v1787
    %v1789 = vpop.f32.mrf.mxu0
    %1790 = vdwg.mxu0
    %v1791 = vmul.f32 %v1788, 0.25
    %v1792 = vadd.f32 %v1791, %v59
    %v1793 = vsel %vm282, %v1792, -inf
    %1794 = vmax.xlane.f32.xlu0 %v1793
    %v1795 = vpop.xlane.xlu0 %1794
    %v1796 = vsub.f32 %v1792, %v1795
    %v1797 = vmul.f32 %v1796, 1.442695
    %v1798 = vpow.pop %v1797
    %v1799 = vsel %vm282, %v1798, 0.0
    %1800 = vadd.xlane.f32.xlu0 %v1799
    %v1801 = vpop.xlane.xlu0 %1800
    %v1802 = vrcp.pop %v1801
    %v1803 = vmul.f32 %v1798, %v1802
    %1804 = vrot.lane.b32.xlu0 %v1534, 48
    %v1805 = vpop.permute.xlu0 %1804
    %v1808 = vsel %vm282, %v1803, 0
    %1810 = vmatprep.subr.mxu0 0.0
    %1811 = vmatpush1.msra.mxu0 0.0
    %1812 = vmatprep.subr.mxu0 0.0
    %1813 = vmatpush1.msra.mxu0 0.0
    %1814 = vmatprep.subr.mxu0 0.0
    %1815 = vmatpush1.msra.mxu0 0.0
    %1816 = vmatprep.subr.mxu0 0.0
    %1817 = vmatpush1.msra.mxu0 0.0
    %1818 = vmatprep.subr.mxu0 0.0
    %1819 = vmatpush1.msra.mxu0 0.0
    %1820 = vmatprep.subr.mxu0 0.0
    %1821 = vmatpush1.msra.mxu0 0.0
    %1822 = vmatprep.subr.mxu0 0.0
    %1823 = vmatpush1.msra.mxu0 0.0
    %1824 = vmatprep.subr.mxu0 0.0
    %1825 = vmatpush1.msra.mxu0 0.0
    %1826 = vmatprep.subr.mxu0 0.0
    %1827 = vmatpush1.msra.mxu0 0.0
    %1828 = vmatprep.subr.mxu0 0.0
    %1829 = vmatpush1.msra.mxu0 0.0
    %1830 = vmatprep.subr.mxu0 0.0
    %1831 = vmatpush1.msra.mxu0 0.0
    %1832 = vmatprep.subr.mxu0 0.0
    %1833 = vmatpush1.msra.mxu0 0.0
    %1834 = vmatprep.subr.mxu0 0.0
    %1835 = vmatpush1.msra.mxu0 0.0
    %1836 = vmatprep.subr.mxu0 0.0
    %1837 = vmatpush1.msra.mxu0 0.0
    %1838 = vmatprep.subr.mxu0 0.0
    %1839 = vmatpush1.msra.mxu0 0.0
    %1840 = vmatprep.subr.mxu0 0.0
    %1841 = vmatpush1.msra.mxu0 %v1805
    %1842 = vmatprep.subr.mxu0 0.0
    %1843 = vmatpush2.msra.mxu0 0.0
    %1844 = vmatprep.subr.mxu0 0.0
    %1845 = vmatpush2.msra.mxu0 0.0
    %1846 = vmatprep.subr.mxu0 0.0
    %1847 = vmatpush2.msra.mxu0 0.0
    %1848 = vmatprep.subr.mxu0 0.0
    %1849 = vmatpush2.msra.mxu0 0.0
    %1850 = vmatprep.subr.mxu0 0.0
    %1851 = vmatpush2.msra.mxu0 0.0
    %1852 = vmatprep.subr.mxu0 0.0
    %1853 = vmatpush2.msra.mxu0 0.0
    %1854 = vmatprep.subr.mxu0 0.0
    %1855 = vmatpush2.msra.mxu0 0.0
    %1856 = vmatprep.subr.mxu0 0.0
    %1857 = vmatpush2.msra.mxu0 0.0
    %1858 = vmatprep.subr.mxu0 0.0
    %1859 = vmatpush2.msra.mxu0 0.0
    %1860 = vmatprep.subr.mxu0 0.0
    %1861 = vmatpush2.msra.mxu0 0.0
    %1862 = vmatprep.subr.mxu0 0.0
    %1863 = vmatpush2.msra.mxu0 0.0
    %1864 = vmatprep.subr.mxu0 0.0
    %1865 = vmatpush2.msra.mxu0 0.0
    %1866 = vmatprep.subr.mxu0 0.0
    %1867 = vmatpush2.msra.mxu0 0.0
    %1868 = vmatprep.subr.mxu0 0.0
    %1869 = vmatpush2.msra.mxu0 0.0
    %1870 = vmatprep.subr.mxu0 0.0
    %1871 = vmatpush2.msra.mxu0 0.0
    %1872 = vmatprep.subr.mxu0 0.0
    %1873 = vmatpush2.msra.mxu0 0.0
    %1874 = vmatprep.mubr.f32.mxu0 0.0
    %1875 = vmatmul.mubr.f32.gmra.mxu0 %v1808
    %v1876 = vpop.f32.mrf.mxu0
    %v1877 = vadd.f32 0.0, %v1876
    %v1878 = vpop.f32.mrf.mxu0
    %1879 = vdwg.mxu0
    %v1881 = vsel %vm205, %v1877, 0
    %1883 = vmatprep.subr.mxu0 0.0
    %1884 = vmatpush1.msra.mxu0 0.0
    %1885 = vmatprep.subr.mxu0 0.0
    %1886 = vmatpush1.msra.mxu0 0.0
    %1887 = vmatprep.subr.mxu0 0.0
    %1888 = vmatpush1.msra.mxu0 0.0
    %1889 = vmatprep.subr.mxu0 0.0
    %1890 = vmatpush1.msra.mxu0 0.0
    %1891 = vmatprep.subr.mxu0 0.0
    %1892 = vmatpush1.msra.mxu0 0.0
    %1893 = vmatprep.subr.mxu0 0.0
    %1894 = vmatpush1.msra.mxu0 0.0
    %1895 = vmatprep.subr.mxu0 0.0
    %1896 = vmatpush1.msra.mxu0 0.0
    %1897 = vmatprep.subr.mxu0 0.0
    %1898 = vmatpush1.msra.mxu0 0.0
    %1899 = vmatprep.subr.mxu0 0.0
    %1900 = vmatpush1.msra.mxu0 0.0
    %1901 = vmatprep.subr.mxu0 0.0
    %1902 = vmatpush1.msra.mxu0 0.0
    %1903 = vmatprep.subr.mxu0 0.0
    %1904 = vmatpush1.msra.mxu0 0.0
    %1905 = vmatprep.subr.mxu0 0.0
    %1906 = vmatpush1.msra.mxu0 0.0
    %1907 = vmatprep.subr.mxu0 0.0
    %1908 = vmatpush1.msra.mxu0 0.0
    %1909 = vmatprep.subr.mxu0 0.0
    %1910 = vmatpush1.msra.mxu0 0.0
    %1911 = vmatprep.subr.mxu0 0.0
    %1912 = vmatpush1.msra.mxu0 %v1546
    %1913 = vmatprep.subr.mxu0 0.0
    %1914 = vmatpush1.msra.mxu0 %v1545
    %1915 = vmatprep.subr.mxu0 0.0
    %1916 = vmatpush2.msra.mxu0 0.0
    %1917 = vmatprep.subr.mxu0 0.0
    %1918 = vmatpush2.msra.mxu0 0.0
    %1919 = vmatprep.subr.mxu0 0.0
    %1920 = vmatpush2.msra.mxu0 0.0
    %1921 = vmatprep.subr.mxu0 0.0
    %1922 = vmatpush2.msra.mxu0 0.0
    %1923 = vmatprep.subr.mxu0 0.0
    %1924 = vmatpush2.msra.mxu0 0.0
    %1925 = vmatprep.subr.mxu0 0.0
    %1926 = vmatpush2.msra.mxu0 0.0
    %1927 = vmatprep.subr.mxu0 0.0
    %1928 = vmatpush2.msra.mxu0 0.0
    %1929 = vmatprep.subr.mxu0 0.0
    %1930 = vmatpush2.msra.mxu0 0.0
    %1931 = vmatprep.subr.mxu0 0.0
    %1932 = vmatpush2.msra.mxu0 0.0
    %1933 = vmatprep.subr.mxu0 0.0
    %1934 = vmatpush2.msra.mxu0 0.0
    %1935 = vmatprep.subr.mxu0 0.0
    %1936 = vmatpush2.msra.mxu0 0.0
    %1937 = vmatprep.subr.mxu0 0.0
    %1938 = vmatpush2.msra.mxu0 0.0
    %1939 = vmatprep.subr.mxu0 0.0
    %1940 = vmatpush2.msra.mxu0 0.0
    %1941 = vmatprep.subr.mxu0 0.0
    %1942 = vmatpush2.msra.mxu0 0.0
    %1943 = vmatprep.subr.mxu0 0.0
    %1944 = vmatpush2.msra.mxu0 0.0
    %1945 = vmatprep.subr.mxu0 0.0
    %1946 = vmatpush2.msra.mxu0 0.0
    %1947 = vmatprep.mubr.f32.mxu0 0.0
    %1948 = vmatmul.mubr.f32.gmra.mxu0 %v1881
    %v1949 = vpop.f32.mrf.mxu0
    %v1950 = vadd.f32 0.0, %v1949
    %v1951 = vpop.f32.mrf.mxu0
    %1952 = vdwg.mxu0
    %v1954 = vsel %vm205, %v1710, 0
    %1956 = vmatprep.subr.mxu0 0.0
    %1957 = vmatpush1.msra.mxu0 0.0
    %1958 = vmatprep.subr.mxu0 0.0
    %1959 = vmatpush1.msra.mxu0 0.0
    %1960 = vmatprep.subr.mxu0 0.0
    %1961 = vmatpush1.msra.mxu0 0.0
    %1962 = vmatprep.subr.mxu0 0.0
    %1963 = vmatpush1.msra.mxu0 0.0
    %1964 = vmatprep.subr.mxu0 0.0
    %1965 = vmatpush1.msra.mxu0 0.0
    %1966 = vmatprep.subr.mxu0 0.0
    %1967 = vmatpush1.msra.mxu0 0.0
    %1968 = vmatprep.subr.mxu0 0.0
    %1969 = vmatpush1.msra.mxu0 0.0
    %1970 = vmatprep.subr.mxu0 0.0
    %1971 = vmatpush1.msra.mxu0 0.0
    %1972 = vmatprep.subr.mxu0 0.0
    %1973 = vmatpush1.msra.mxu0 0.0
    %1974 = vmatprep.subr.mxu0 0.0
    %1975 = vmatpush1.msra.mxu0 0.0
    %1976 = vmatprep.subr.mxu0 0.0
    %1977 = vmatpush1.msra.mxu0 0.0
    %1978 = vmatprep.subr.mxu0 0.0
    %1979 = vmatpush1.msra.mxu0 0.0
    %1980 = vmatprep.subr.mxu0 0.0
    %1981 = vmatpush1.msra.mxu0 0.0
    %1982 = vmatprep.subr.mxu0 0.0
    %1983 = vmatpush1.msra.mxu0 0.0
    %1984 = vmatprep.subr.mxu0 0.0
    %1985 = vmatpush1.msra.mxu0 %v1544
    %1986 = vmatprep.subr.mxu0 0.0
    %1987 = vmatpush1.msra.mxu0 %v1543
    %1988 = vmatprep.subr.mxu0 0.0
    %1989 = vmatpush2.msra.mxu0 0.0
    %1990 = vmatprep.subr.mxu0 0.0
    %1991 = vmatpush2.msra.mxu0 0.0
    %1992 = vmatprep.subr.mxu0 0.0
    %1993 = vmatpush2.msra.mxu0 0.0
    %1994 = vmatprep.subr.mxu0 0.0
    %1995 = vmatpush2.msra.mxu0 0.0
    %1996 = vmatprep.subr.mxu0 0.0
    %1997 = vmatpush2.msra.mxu0 0.0
    %1998 = vmatprep.subr.mxu0 0.0
    %1999 = vmatpush2.msra.mxu0 0.0
    %2000 = vmatprep.subr.mxu0 0.0
    %2001 = vmatpush2.msra.mxu0 0.0
    %2002 = vmatprep.subr.mxu0 0.0
    %2003 = vmatpush2.msra.mxu0 0.0
    %2004 = vmatprep.subr.mxu0 0.0
    %2005 = vmatpush2.msra.mxu0 0.0
    %2006 = vmatprep.subr.mxu0 0.0
    %2007 = vmatpush2.msra.mxu0 0.0
    %2008 = vmatprep.subr.mxu0 0.0
    %2009 = vmatpush2.msra.mxu0 0.0
    %2010 = vmatprep.subr.mxu0 0.0
    %2011 = vmatpush2.msra.mxu0 0.0
    %2012 = vmatprep.subr.mxu0 0.0
    %2013 = vmatpush2.msra.mxu0 0.0
    %2014 = vmatprep.subr.mxu0 0.0
    %2015 = vmatpush2.msra.mxu0 0.0
    %2016 = vmatprep.subr.mxu0 0.0
    %2017 = vmatpush2.msra.mxu0 0.0
    %2018 = vmatprep.subr.mxu0 0.0
    %2019 = vmatpush2.msra.mxu0 0.0
    %2020 = vmatprep.mubr.f32.mxu0 0.0
    %2021 = vmatmul.mubr.f32.gmra.mxu0 %v1954
    %v2022 = vpop.f32.mrf.mxu0
    %v2023 = vadd.f32 %v1950, %v2022
    %v2024 = vpop.f32.mrf.mxu0
    %2025 = vdwg.mxu0
    %2027 = vrot.lane.b32.xlu0 %v1539, 96
    %v2028 = vpop.permute.xlu0 %2027
    %v2029 = vsel %vm205, %v1539, 0
    %v2031 = vsel %vm205, %v2028, 0
    %2033 = vmatprep.subr.mxu0 0.0
    %2034 = vmatpush1.xpose.msra.mxu0 0.0
    %2035 = vmatprep.subr.mxu0 0.0
    %2036 = vmatpush1.xpose.msra.mxu0 0.0
    %2037 = vmatprep.subr.mxu0 0.0
    %2038 = vmatpush1.xpose.msra.mxu0 0.0
    %2039 = vmatprep.subr.mxu0 0.0
    %2040 = vmatpush1.xpose.msra.mxu0 0.0
    %2041 = vmatprep.subr.mxu0 0.0
    %2042 = vmatpush1.xpose.msra.mxu0 0.0
    %2043 = vmatprep.subr.mxu0 0.0
    %2044 = vmatpush1.xpose.msra.mxu0 0.0
    %2045 = vmatprep.subr.mxu0 0.0
    %2046 = vmatpush1.xpose.msra.mxu0 0.0
    %2047 = vmatprep.subr.mxu0 0.0
    %2048 = vmatpush1.xpose.msra.mxu0 0.0
    %2049 = vmatprep.subr.mxu0 0.0
    %2050 = vmatpush1.xpose.msra.mxu0 0.0
    %2051 = vmatprep.subr.mxu0 0.0
    %2052 = vmatpush1.xpose.msra.mxu0 0.0
    %2053 = vmatprep.subr.mxu0 0.0
    %2054 = vmatpush1.xpose.msra.mxu0 0.0
    %2055 = vmatprep.subr.mxu0 0.0
    %2056 = vmatpush1.xpose.msra.mxu0 0.0
    %2057 = vmatprep.subr.mxu0 0.0
    %2058 = vmatpush1.xpose.msra.mxu0 0.0
    %2059 = vmatprep.subr.mxu0 0.0
    %2060 = vmatpush1.xpose.msra.mxu0 0.0
    %2061 = vmatprep.subr.mxu0 0.0
    %2062 = vmatpush1.xpose.msra.mxu0 0.0
    %2063 = vmatprep.subr.mxu0 0.0
    %2064 = vmatpush1.xpose.msra.mxu0 %v2031
    %2065 = vmatprep.subr.mxu0 0.0
    %2066 = vmatpush2.xpose.msra.mxu0 0.0
    %2067 = vmatprep.subr.mxu0 0.0
    %2068 = vmatpush2.xpose.msra.mxu0 0.0
    %2069 = vmatprep.subr.mxu0 0.0
    %2070 = vmatpush2.xpose.msra.mxu0 0.0
    %2071 = vmatprep.subr.mxu0 0.0
    %2072 = vmatpush2.xpose.msra.mxu0 0.0
    %2073 = vmatprep.subr.mxu0 0.0
    %2074 = vmatpush2.xpose.msra.mxu0 0.0
    %2075 = vmatprep.subr.mxu0 0.0
    %2076 = vmatpush2.xpose.msra.mxu0 0.0
    %2077 = vmatprep.subr.mxu0 0.0
    %2078 = vmatpush2.xpose.msra.mxu0 0.0
    %2079 = vmatprep.subr.mxu0 0.0
    %2080 = vmatpush2.xpose.msra.mxu0 0.0
    %2081 = vmatprep.subr.mxu0 0.0
    %2082 = vmatpush2.xpose.msra.mxu0 0.0
    %2083 = vmatprep.subr.mxu0 0.0
    %2084 = vmatpush2.xpose.msra.mxu0 0.0
    %2085 = vmatprep.subr.mxu0 0.0
    %2086 = vmatpush2.xpose.msra.mxu0 0.0
    %2087 = vmatprep.subr.mxu0 0.0
    %2088 = vmatpush2.xpose.msra.mxu0 0.0
    %2089 = vmatprep.subr.mxu0 0.0
    %2090 = vmatpush2.xpose.msra.mxu0 0.0
    %2091 = vmatprep.subr.mxu0 0.0
    %2092 = vmatpush2.xpose.msra.mxu0 0.0
    %2093 = vmatprep.subr.mxu0 0.0
    %2094 = vmatpush2.xpose.msra.mxu0 0.0
    %2095 = vmatprep.subr.mxu0 0.0
    %2096 = vmatpush2.xpose.msra.mxu0 0.0
    %2097 = vmatprep.mubr.f32.mxu0 0.0
    %2098 = vmatmul.mubr.f32.gmra.mxu0 %v2029
    %v2099 = vpop.f32.mrf.mxu0
    %v2100 = vadd.f32 0.0, %v2099
    %v2101 = vpop.f32.mrf.mxu0
    %2102 = vdwg.mxu0
    %v2103 = vmul.f32 %v2100, 0.25
    %v2104 = vadd.f32 %v2103, %v60
    %v2105 = vsel %vm282, %v2104, -inf
    %2106 = vmax.xlane.f32.xlu0 %v2105
    %v2107 = vpop.xlane.xlu0 %2106
    %v2108 = vsub.f32 %v2104, %v2107
    %v2109 = vmul.f32 %v2108, 1.442695
    %v2110 = vpow.pop %v2109
    %v2111 = vsel %vm282, %v2110, 0.0
    %2112 = vadd.xlane.f32.xlu0 %v2111
    %v2113 = vpop.xlane.xlu0 %2112
    %v2114 = vrcp.pop %v2113
    %v2115 = vmul.f32 %v2110, %v2114
    %2116 = vrot.lane.b32.xlu0 %v1539, 64
    %v2117 = vpop.permute.xlu0 %2116
    %v2120 = vsel %vm282, %v2115, 0
    %2122 = vmatprep.subr.mxu0 0.0
    %2123 = vmatpush1.msra.mxu0 0.0
    %2124 = vmatprep.subr.mxu0 0.0
    %2125 = vmatpush1.msra.mxu0 0.0
    %2126 = vmatprep.subr.mxu0 0.0
    %2127 = vmatpush1.msra.mxu0 0.0
    %2128 = vmatprep.subr.mxu0 0.0
    %2129 = vmatpush1.msra.mxu0 0.0
    %2130 = vmatprep.subr.mxu0 0.0
    %2131 = vmatpush1.msra.mxu0 0.0
    %2132 = vmatprep.subr.mxu0 0.0
    %2133 = vmatpush1.msra.mxu0 0.0
    %2134 = vmatprep.subr.mxu0 0.0
    %2135 = vmatpush1.msra.mxu0 0.0
    %2136 = vmatprep.subr.mxu0 0.0
    %2137 = vmatpush1.msra.mxu0 0.0
    %2138 = vmatprep.subr.mxu0 0.0
    %2139 = vmatpush1.msra.mxu0 0.0
    %2140 = vmatprep.subr.mxu0 0.0
    %2141 = vmatpush1.msra.mxu0 0.0
    %2142 = vmatprep.subr.mxu0 0.0
    %2143 = vmatpush1.msra.mxu0 0.0
    %2144 = vmatprep.subr.mxu0 0.0
    %2145 = vmatpush1.msra.mxu0 0.0
    %2146 = vmatprep.subr.mxu0 0.0
    %2147 = vmatpush1.msra.mxu0 0.0
    %2148 = vmatprep.subr.mxu0 0.0
    %2149 = vmatpush1.msra.mxu0 0.0
    %2150 = vmatprep.subr.mxu0 0.0
    %2151 = vmatpush1.msra.mxu0 0.0
    %2152 = vmatprep.subr.mxu0 0.0
    %2153 = vmatpush1.msra.mxu0 %v2117
    %2154 = vmatprep.subr.mxu0 0.0
    %2155 = vmatpush2.msra.mxu0 0.0
    %2156 = vmatprep.subr.mxu0 0.0
    %2157 = vmatpush2.msra.mxu0 0.0
    %2158 = vmatprep.subr.mxu0 0.0
    %2159 = vmatpush2.msra.mxu0 0.0
    %2160 = vmatprep.subr.mxu0 0.0
    %2161 = vmatpush2.msra.mxu0 0.0
    %2162 = vmatprep.subr.mxu0 0.0
    %2163 = vmatpush2.msra.mxu0 0.0
    %2164 = vmatprep.subr.mxu0 0.0
    %2165 = vmatpush2.msra.mxu0 0.0
    %2166 = vmatprep.subr.mxu0 0.0
    %2167 = vmatpush2.msra.mxu0 0.0
    %2168 = vmatprep.subr.mxu0 0.0
    %2169 = vmatpush2.msra.mxu0 0.0
    %2170 = vmatprep.subr.mxu0 0.0
    %2171 = vmatpush2.msra.mxu0 0.0
    %2172 = vmatprep.subr.mxu0 0.0
    %2173 = vmatpush2.msra.mxu0 0.0
    %2174 = vmatprep.subr.mxu0 0.0
    %2175 = vmatpush2.msra.mxu0 0.0
    %2176 = vmatprep.subr.mxu0 0.0
    %2177 = vmatpush2.msra.mxu0 0.0
    %2178 = vmatprep.subr.mxu0 0.0
    %2179 = vmatpush2.msra.mxu0 0.0
    %2180 = vmatprep.subr.mxu0 0.0
    %2181 = vmatpush2.msra.mxu0 0.0
    %2182 = vmatprep.subr.mxu0 0.0
    %2183 = vmatpush2.msra.mxu0 0.0
    %2184 = vmatprep.subr.mxu0 0.0
    %2185 = vmatpush2.msra.mxu0 0.0
    %2186 = vmatprep.mubr.f32.mxu0 0.0
    %2187 = vmatmul.mubr.f32.gmra.mxu0 %v2120
    %v2188 = vpop.f32.mrf.mxu0
    %v2189 = vadd.f32 0.0, %v2188
    %v2190 = vpop.f32.mrf.mxu0
    %2191 = vdwg.mxu0
    %2192 = vrot.lane.b32.xlu0 %v1539, 112
    %v2193 = vpop.permute.xlu0 %2192
    %2194 = vrot.lane.b32.xlu0 %v1539, 80
    %v2195 = vpop.permute.xlu0 %2194
    %v2196 = vsel %vm205, %v2193, 0
    %v2198 = vsel %vm205, %v2195, 0
    %2200 = vmatprep.subr.mxu0 0.0
    %2201 = vmatpush1.xpose.msra.mxu0 0.0
    %2202 = vmatprep.subr.mxu0 0.0
    %2203 = vmatpush1.xpose.msra.mxu0 0.0
    %2204 = vmatprep.subr.mxu0 0.0
    %2205 = vmatpush1.xpose.msra.mxu0 0.0
    %2206 = vmatprep.subr.mxu0 0.0
    %2207 = vmatpush1.xpose.msra.mxu0 0.0
    %2208 = vmatprep.subr.mxu0 0.0
    %2209 = vmatpush1.xpose.msra.mxu0 0.0
    %2210 = vmatprep.subr.mxu0 0.0
    %2211 = vmatpush1.xpose.msra.mxu0 0.0
    %2212 = vmatprep.subr.mxu0 0.0
    %2213 = vmatpush1.xpose.msra.mxu0 0.0
    %2214 = vmatprep.subr.mxu0 0.0
    %2215 = vmatpush1.xpose.msra.mxu0 0.0
    %2216 = vmatprep.subr.mxu0 0.0
    %2217 = vmatpush1.xpose.msra.mxu0 0.0
    %2218 = vmatprep.subr.mxu0 0.0
    %2219 = vmatpush1.xpose.msra.mxu0 0.0
    %2220 = vmatprep.subr.mxu0 0.0
    %2221 = vmatpush1.xpose.msra.mxu0 0.0
    %2222 = vmatprep.subr.mxu0 0.0
    %2223 = vmatpush1.xpose.msra.mxu0 0.0
    %2224 = vmatprep.subr.mxu0 0.0
    %2225 = vmatpush1.xpose.msra.mxu0 0.0
    %2226 = vmatprep.subr.mxu0 0.0
    %2227 = vmatpush1.xpose.msra.mxu0 0.0
    %2228 = vmatprep.subr.mxu0 0.0
    %2229 = vmatpush1.xpose.msra.mxu0 0.0
    %2230 = vmatprep.subr.mxu0 0.0
    %2231 = vmatpush1.xpose.msra.mxu0 %v2198
    %2232 = vmatprep.subr.mxu0 0.0
    %2233 = vmatpush2.xpose.msra.mxu0 0.0
    %2234 = vmatprep.subr.mxu0 0.0
    %2235 = vmatpush2.xpose.msra.mxu0 0.0
    %2236 = vmatprep.subr.mxu0 0.0
    %2237 = vmatpush2.xpose.msra.mxu0 0.0
    %2238 = vmatprep.subr.mxu0 0.0
    %2239 = vmatpush2.xpose.msra.mxu0 0.0
    %2240 = vmatprep.subr.mxu0 0.0
    %2241 = vmatpush2.xpose.msra.mxu0 0.0
    %2242 = vmatprep.subr.mxu0 0.0
    %2243 = vmatpush2.xpose.msra.mxu0 0.0
    %2244 = vmatprep.subr.mxu0 0.0
    %2245 = vmatpush2.xpose.msra.mxu0 0.0
    %2246 = vmatprep.subr.mxu0 0.0
    %2247 = vmatpush2.xpose.msra.mxu0 0.0
    %2248 = vmatprep.subr.mxu0 0.0
    %2249 = vmatpush2.xpose.msra.mxu0 0.0
    %2250 = vmatprep.subr.mxu0 0.0
    %2251 = vmatpush2.xpose.msra.mxu0 0.0
    %2252 = vmatprep.subr.mxu0 0.0
    %2253 = vmatpush2.xpose.msra.mxu0 0.0
    %2254 = vmatprep.subr.mxu0 0.0
    %2255 = vmatpush2.xpose.msra.mxu0 0.0
    %2256 = vmatprep.subr.mxu0 0.0
    %2257 = vmatpush2.xpose.msra.mxu0 0.0
    %2258 = vmatprep.subr.mxu0 0.0
    %2259 = vmatpush2.xpose.msra.mxu0 0.0
    %2260 = vmatprep.subr.mxu0 0.0
    %2261 = vmatpush2.xpose.msra.mxu0 0.0
    %2262 = vmatprep.subr.mxu0 0.0
    %2263 = vmatpush2.xpose.msra.mxu0 0.0
    %2264 = vmatprep.mubr.f32.mxu0 0.0
    %2265 = vmatmul.mubr.f32.gmra.mxu0 %v2196
    %v2266 = vpop.f32.mrf.mxu0
    %v2267 = vadd.f32 0.0, %v2266
    %v2268 = vpop.f32.mrf.mxu0
    %2269 = vdwg.mxu0
    %v2270 = vmul.f32 %v2267, 0.25
    %v2271 = vadd.f32 %v2270, %v60
    %v2272 = vsel %vm282, %v2271, -inf
    %2273 = vmax.xlane.f32.xlu0 %v2272
    %v2274 = vpop.xlane.xlu0 %2273
    %v2275 = vsub.f32 %v2271, %v2274
    %v2276 = vmul.f32 %v2275, 1.442695
    %v2277 = vpow.pop %v2276
    %v2278 = vsel %vm282, %v2277, 0.0
    %2279 = vadd.xlane.f32.xlu0 %v2278
    %v2280 = vpop.xlane.xlu0 %2279
    %v2281 = vrcp.pop %v2280
    %v2282 = vmul.f32 %v2277, %v2281
    %2283 = vrot.lane.b32.xlu0 %v1539, 48
    %v2284 = vpop.permute.xlu0 %2283
    %v2287 = vsel %vm282, %v2282, 0
    %2289 = vmatprep.subr.mxu0 0.0
    %2290 = vmatpush1.msra.mxu0 0.0
    %2291 = vmatprep.subr.mxu0 0.0
    %2292 = vmatpush1.msra.mxu0 0.0
    %2293 = vmatprep.subr.mxu0 0.0
    %2294 = vmatpush1.msra.mxu0 0.0
    %2295 = vmatprep.subr.mxu0 0.0
    %2296 = vmatpush1.msra.mxu0 0.0
    %2297 = vmatprep.subr.mxu0 0.0
    %2298 = vmatpush1.msra.mxu0 0.0
    %2299 = vmatprep.subr.mxu0 0.0
    %2300 = vmatpush1.msra.mxu0 0.0
    %2301 = vmatprep.subr.mxu0 0.0
    %2302 = vmatpush1.msra.mxu0 0.0
    %2303 = vmatprep.subr.mxu0 0.0
    %2304 = vmatpush1.msra.mxu0 0.0
    %2305 = vmatprep.subr.mxu0 0.0
    %2306 = vmatpush1.msra.mxu0 0.0
    %2307 = vmatprep.subr.mxu0 0.0
    %2308 = vmatpush1.msra.mxu0 0.0
    %2309 = vmatprep.subr.mxu0 0.0
    %2310 = vmatpush1.msra.mxu0 0.0
    %2311 = vmatprep.subr.mxu0 0.0
    %2312 = vmatpush1.msra.mxu0 0.0
    %2313 = vmatprep.subr.mxu0 0.0
    %2314 = vmatpush1.msra.mxu0 0.0
    %2315 = vmatprep.subr.mxu0 0.0
    %2316 = vmatpush1.msra.mxu0 0.0
    %2317 = vmatprep.subr.mxu0 0.0
    %2318 = vmatpush1.msra.mxu0 0.0
    %2319 = vmatprep.subr.mxu0 0.0
    %2320 = vmatpush1.msra.mxu0 %v2284
    %2321 = vmatprep.subr.mxu0 0.0
    %2322 = vmatpush2.msra.mxu0 0.0
    %2323 = vmatprep.subr.mxu0 0.0
    %2324 = vmatpush2.msra.mxu0 0.0
    %2325 = vmatprep.subr.mxu0 0.0
    %2326 = vmatpush2.msra.mxu0 0.0
    %2327 = vmatprep.subr.mxu0 0.0
    %2328 = vmatpush2.msra.mxu0 0.0
    %2329 = vmatprep.subr.mxu0 0.0
    %2330 = vmatpush2.msra.mxu0 0.0
    %2331 = vmatprep.subr.mxu0 0.0
    %2332 = vmatpush2.msra.mxu0 0.0
    %2333 = vmatprep.subr.mxu0 0.0
    %2334 = vmatpush2.msra.mxu0 0.0
    %2335 = vmatprep.subr.mxu0 0.0
    %2336 = vmatpush2.msra.mxu0 0.0
    %2337 = vmatprep.subr.mxu0 0.0
    %2338 = vmatpush2.msra.mxu0 0.0
    %2339 = vmatprep.subr.mxu0 0.0
    %2340 = vmatpush2.msra.mxu0 0.0
    %2341 = vmatprep.subr.mxu0 0.0
    %2342 = vmatpush2.msra.mxu0 0.0
    %2343 = vmatprep.subr.mxu0 0.0
    %2344 = vmatpush2.msra.mxu0 0.0
    %2345 = vmatprep.subr.mxu0 0.0
    %2346 = vmatpush2.msra.mxu0 0.0
    %2347 = vmatprep.subr.mxu0 0.0
    %2348 = vmatpush2.msra.mxu0 0.0
    %2349 = vmatprep.subr.mxu0 0.0
    %2350 = vmatpush2.msra.mxu0 0.0
    %2351 = vmatprep.subr.mxu0 0.0
    %2352 = vmatpush2.msra.mxu0 0.0
    %2353 = vmatprep.mubr.f32.mxu0 0.0
    %2354 = vmatmul.mubr.f32.gmra.mxu0 %v2287
    %v2355 = vpop.f32.mrf.mxu0
    %v2356 = vadd.f32 0.0, %v2355
    %v2357 = vpop.f32.mrf.mxu0
    %2358 = vdwg.mxu0
    %v2360 = vsel %vm205, %v2356, 0
    %2362 = vmatprep.subr.mxu0 0.0
    %2363 = vmatpush1.msra.mxu0 0.0
    %2364 = vmatprep.subr.mxu0 0.0
    %2365 = vmatpush1.msra.mxu0 0.0
    %2366 = vmatprep.subr.mxu0 0.0
    %2367 = vmatpush1.msra.mxu0 0.0
    %2368 = vmatprep.subr.mxu0 0.0
    %2369 = vmatpush1.msra.mxu0 0.0
    %2370 = vmatprep.subr.mxu0 0.0
    %2371 = vmatpush1.msra.mxu0 0.0
    %2372 = vmatprep.subr.mxu0 0.0
    %2373 = vmatpush1.msra.mxu0 0.0
    %2374 = vmatprep.subr.mxu0 0.0
    %2375 = vmatpush1.msra.mxu0 0.0
    %2376 = vmatprep.subr.mxu0 0.0
    %2377 = vmatpush1.msra.mxu0 0.0
    %2378 = vmatprep.subr.mxu0 0.0
    %2379 = vmatpush1.msra.mxu0 0.0
    %2380 = vmatprep.subr.mxu0 0.0
    %2381 = vmatpush1.msra.mxu0 0.0
    %2382 = vmatprep.subr.mxu0 0.0
    %2383 = vmatpush1.msra.mxu0 0.0
    %2384 = vmatprep.subr.mxu0 0.0
    %2385 = vmatpush1.msra.mxu0 0.0
    %2386 = vmatprep.subr.mxu0 0.0
    %2387 = vmatpush1.msra.mxu0 0.0
    %2388 = vmatprep.subr.mxu0 0.0
    %2389 = vmatpush1.msra.mxu0 0.0
    %2390 = vmatprep.subr.mxu0 0.0
    %2391 = vmatpush1.msra.mxu0 %v1546
    %2392 = vmatprep.subr.mxu0 0.0
    %2393 = vmatpush1.msra.mxu0 %v1545
    %2394 = vmatprep.subr.mxu0 0.0
    %2395 = vmatpush2.msra.mxu0 0.0
    %2396 = vmatprep.subr.mxu0 0.0
    %2397 = vmatpush2.msra.mxu0 0.0
    %2398 = vmatprep.subr.mxu0 0.0
    %2399 = vmatpush2.msra.mxu0 0.0
    %2400 = vmatprep.subr.mxu0 0.0
    %2401 = vmatpush2.msra.mxu0 0.0
    %2402 = vmatprep.subr.mxu0 0.0
    %2403 = vmatpush2.msra.mxu0 0.0
    %2404 = vmatprep.subr.mxu0 0.0
    %2405 = vmatpush2.msra.mxu0 0.0
    %2406 = vmatprep.subr.mxu0 0.0
    %2407 = vmatpush2.msra.mxu0 0.0
    %2408 = vmatprep.subr.mxu0 0.0
    %2409 = vmatpush2.msra.mxu0 0.0
    %2410 = vmatprep.subr.mxu0 0.0
    %2411 = vmatpush2.msra.mxu0 0.0
    %2412 = vmatprep.subr.mxu0 0.0
    %2413 = vmatpush2.msra.mxu0 0.0
    %2414 = vmatprep.subr.mxu0 0.0
    %2415 = vmatpush2.msra.mxu0 0.0
    %2416 = vmatprep.subr.mxu0 0.0
    %2417 = vmatpush2.msra.mxu0 0.0
    %2418 = vmatprep.subr.mxu0 0.0
    %2419 = vmatpush2.msra.mxu0 0.0
    %2420 = vmatprep.subr.mxu0 0.0
    %2421 = vmatpush2.msra.mxu0 0.0
    %2422 = vmatprep.subr.mxu0 0.0
    %2423 = vmatpush2.msra.mxu0 0.0
    %2424 = vmatprep.subr.mxu0 0.0
    %2425 = vmatpush2.msra.mxu0 0.0
    %2426 = vmatprep.mubr.f32.mxu0 0.0
    %2427 = vmatmul.mubr.f32.gmra.mxu0 %v2360
    %v2428 = vpop.f32.mrf.mxu0
    %v2429 = vadd.f32 0.0, %v2428
    %v2430 = vpop.f32.mrf.mxu0
    %2431 = vdwg.mxu0
    %v2433 = vsel %vm205, %v2189, 0
    %2435 = vmatprep.subr.mxu0 0.0
    %2436 = vmatpush1.msra.mxu0 0.0
    %2437 = vmatprep.subr.mxu0 0.0
    %2438 = vmatpush1.msra.mxu0 0.0
    %2439 = vmatprep.subr.mxu0 0.0
    %2440 = vmatpush1.msra.mxu0 0.0
    %2441 = vmatprep.subr.mxu0 0.0
    %2442 = vmatpush1.msra.mxu0 0.0
    %2443 = vmatprep.subr.mxu0 0.0
    %2444 = vmatpush1.msra.mxu0 0.0
    %2445 = vmatprep.subr.mxu0 0.0
    %2446 = vmatpush1.msra.mxu0 0.0
    %2447 = vmatprep.subr.mxu0 0.0
    %2448 = vmatpush1.msra.mxu0 0.0
    %2449 = vmatprep.subr.mxu0 0.0
    %2450 = vmatpush1.msra.mxu0 0.0
    %2451 = vmatprep.subr.mxu0 0.0
    %2452 = vmatpush1.msra.mxu0 0.0
    %2453 = vmatprep.subr.mxu0 0.0
    %2454 = vmatpush1.msra.mxu0 0.0
    %2455 = vmatprep.subr.mxu0 0.0
    %2456 = vmatpush1.msra.mxu0 0.0
    %2457 = vmatprep.subr.mxu0 0.0
    %2458 = vmatpush1.msra.mxu0 0.0
    %2459 = vmatprep.subr.mxu0 0.0
    %2460 = vmatpush1.msra.mxu0 0.0
    %2461 = vmatprep.subr.mxu0 0.0
    %2462 = vmatpush1.msra.mxu0 0.0
    %2463 = vmatprep.subr.mxu0 0.0
    %2464 = vmatpush1.msra.mxu0 %v1544
    %2465 = vmatprep.subr.mxu0 0.0
    %2466 = vmatpush1.msra.mxu0 %v1543
    %2467 = vmatprep.subr.mxu0 0.0
    %2468 = vmatpush2.msra.mxu0 0.0
    %2469 = vmatprep.subr.mxu0 0.0
    %2470 = vmatpush2.msra.mxu0 0.0
    %2471 = vmatprep.subr.mxu0 0.0
    %2472 = vmatpush2.msra.mxu0 0.0
    %2473 = vmatprep.subr.mxu0 0.0
    %2474 = vmatpush2.msra.mxu0 0.0
    %2475 = vmatprep.subr.mxu0 0.0
    %2476 = vmatpush2.msra.mxu0 0.0
    %2477 = vmatprep.subr.mxu0 0.0
    %2478 = vmatpush2.msra.mxu0 0.0
    %2479 = vmatprep.subr.mxu0 0.0
    %2480 = vmatpush2.msra.mxu0 0.0
    %2481 = vmatprep.subr.mxu0 0.0
    %2482 = vmatpush2.msra.mxu0 0.0
    %2483 = vmatprep.subr.mxu0 0.0
    %2484 = vmatpush2.msra.mxu0 0.0
    %2485 = vmatprep.subr.mxu0 0.0
    %2486 = vmatpush2.msra.mxu0 0.0
    %2487 = vmatprep.subr.mxu0 0.0
    %2488 = vmatpush2.msra.mxu0 0.0
    %2489 = vmatprep.subr.mxu0 0.0
    %2490 = vmatpush2.msra.mxu0 0.0
    %2491 = vmatprep.subr.mxu0 0.0
    %2492 = vmatpush2.msra.mxu0 0.0
    %2493 = vmatprep.subr.mxu0 0.0
    %2494 = vmatpush2.msra.mxu0 0.0
    %2495 = vmatprep.subr.mxu0 0.0
    %2496 = vmatpush2.msra.mxu0 0.0
    %2497 = vmatprep.subr.mxu0 0.0
    %2498 = vmatpush2.msra.mxu0 0.0
    %2499 = vmatprep.mubr.f32.mxu0 0.0
    %2500 = vmatmul.mubr.f32.gmra.mxu0 %v2433
    %v2501 = vpop.f32.mrf.mxu0
    %v2502 = vadd.f32 %v2429, %v2501
    %v2503 = vpop.f32.mrf.mxu0
    %2504 = vdwg.mxu0
    %v2505 = vadd.f32 %v1412, %v2023
    %v2506 = vadd.f32 %v1413, %v2502
    %v2507 = vlaneseq
    %v2508 = vshrl.u32 %v2507, 7
    %v2509 = vsub.s32 1, %v2508
    %v2510 = vrot.slane %v64, %v2509
    %v2511 = vadd.f32 %v2505, %v2510
    %v2512 = vadd.f32 %v2506, %v2510
    %v2513 = vsel %vm69, %v2511, 0.0
    %2514 = vadd.xlane.f32.xlu0 %v2513
    %v2515 = vpop.xlane.xlu0 %2514
    %v2516 = vsel %vm69, %v2512, 0.0
    %2517 = vadd.xlane.f32.xlu0 %v2516
    %v2518 = vpop.xlane.xlu0 %2517
    %v2519 = vmul.f32 %v2515, %v76
    %v2520 = vmul.f32 %v2518, %v76
    %v2521 = vsub.f32 %v2511, %v2519
    %v2522 = vsub.f32 %v2512, %v2520
    %v2523 = vmul.f32 %v2521, %v2521
    %v2524 = vmul.f32 %v2522, %v2522
    %v2525 = vsel %vm69, %v2523, 0.0
    %2526 = vadd.xlane.f32.xlu0 %v2525
    %v2527 = vpop.xlane.xlu0 %2526
    %v2528 = vsel %vm69, %v2524, 0.0
    %2529 = vadd.xlane.f32.xlu0 %v2528
    %v2530 = vpop.xlane.xlu0 %2529
    %v2531 = vmul.f32 %v2527, %v76
    %v2532 = vmul.f32 %v2530, %v76
    %v2533 = vadd.f32 %v2531, 1e-05
    %v2534 = vadd.f32 %v2532, 1e-05
    %v2535 = vrsqrt.pop %v2533
    %v2536 = vrsqrt.pop %v2534
    %v2537 = vmul.f32 %v2521, %v2535
    %v2538 = vmul.f32 %v2522, %v2536
    %v2539 = vlaneseq
    %v2540 = vshrl.u32 %v2539, 7
    %v2541 = vsub.s32 1, %v2540
    %v2542 = vrot.slane %v65, %v2541
    %v2543 = vmul.f32 %v2537, %v2542
    %v2544 = vmul.f32 %v2538, %v2542
    %v2545 = vlaneseq
    %v2546 = vshrl.u32 %v2545, 7
    %v2547 = vsub.s32 1, %v2546
    %v2548 = vrot.slane %v66, %v2547
    %v2549 = vadd.f32 %v2543, %v2548
    %v2550 = vadd.f32 %v2544, %v2548
    %s2551 = scalar_lea.vmem %s10, 32
    %v2552 = vld [vmem:[%s2551] sm:$0xff]
    %v2553 = vld [vmem:[%s2551 + $0x8] sm:$0xff]
    %v2554 = vld [vmem:[%s2551 + $0x10] sm:$0xff]
    %v2555 = vld [vmem:[%s2551 + $0x18] sm:$0xff]
    %v2556 = vlaneseq
    %v2557 = vshrl.u32 %v2556, 7
    %v2558 = vsub.s32 1, %v2557
    %v2559 = vrot.slane %v67, %v2558
    %v2561 = vsel %vm69, %v2549, 0
    %v2564 = vsel %vm69, %v2550, 0
    %2566 = vmatprep.subr.mxu0 0.0
    %2567 = vmatpush1.msra.mxu0 0.0
    %2568 = vmatprep.subr.mxu0 0.0
    %2569 = vmatpush1.msra.mxu0 0.0
    %2570 = vmatprep.subr.mxu0 0.0
    %2571 = vmatpush1.msra.mxu0 0.0
    %2572 = vmatprep.subr.mxu0 0.0
    %2573 = vmatpush1.msra.mxu0 0.0
    %2574 = vmatprep.subr.mxu0 0.0
    %2575 = vmatpush1.msra.mxu0 0.0
    %2576 = vmatprep.subr.mxu0 0.0
    %2577 = vmatpush1.msra.mxu0 0.0
    %2578 = vmatprep.subr.mxu0 0.0
    %2579 = vmatpush1.msra.mxu0 0.0
    %2580 = vmatprep.subr.mxu0 0.0
    %2581 = vmatpush1.msra.mxu0 0.0
    %2582 = vmatprep.subr.mxu0 0.0
    %2583 = vmatpush1.msra.mxu0 0.0
    %2584 = vmatprep.subr.mxu0 0.0
    %2585 = vmatpush1.msra.mxu0 0.0
    %2586 = vmatprep.subr.mxu0 0.0
    %2587 = vmatpush1.msra.mxu0 0.0
    %2588 = vmatprep.subr.mxu0 0.0
    %2589 = vmatpush1.msra.mxu0 0.0
    %2590 = vmatprep.subr.mxu0 0.0
    %2591 = vmatpush1.msra.mxu0 %v2555
    %2592 = vmatprep.subr.mxu0 0.0
    %2593 = vmatpush1.msra.mxu0 %v2554
    %2594 = vmatprep.subr.mxu0 0.0
    %2595 = vmatpush1.msra.mxu0 %v2553
    %2596 = vmatprep.subr.mxu0 0.0
    %2597 = vmatpush1.msra.mxu0 %v2552
    %2598 = vmatprep.subr.mxu0 0.0
    %2599 = vmatpush2.msra.mxu0 0.0
    %2600 = vmatprep.subr.mxu0 0.0
    %2601 = vmatpush2.msra.mxu0 0.0
    %2602 = vmatprep.subr.mxu0 0.0
    %2603 = vmatpush2.msra.mxu0 0.0
    %2604 = vmatprep.subr.mxu0 0.0
    %2605 = vmatpush2.msra.mxu0 0.0
    %2606 = vmatprep.subr.mxu0 0.0
    %2607 = vmatpush2.msra.mxu0 0.0
    %2608 = vmatprep.subr.mxu0 0.0
    %2609 = vmatpush2.msra.mxu0 0.0
    %2610 = vmatprep.subr.mxu0 0.0
    %2611 = vmatpush2.msra.mxu0 0.0
    %2612 = vmatprep.subr.mxu0 0.0
    %2613 = vmatpush2.msra.mxu0 0.0
    %2614 = vmatprep.subr.mxu0 0.0
    %2615 = vmatpush2.msra.mxu0 0.0
    %2616 = vmatprep.subr.mxu0 0.0
    %2617 = vmatpush2.msra.mxu0 0.0
    %2618 = vmatprep.subr.mxu0 0.0
    %2619 = vmatpush2.msra.mxu0 0.0
    %2620 = vmatprep.subr.mxu0 0.0
    %2621 = vmatpush2.msra.mxu0 0.0
    %2622 = vmatprep.subr.mxu0 0.0
    %2623 = vmatpush2.msra.mxu0 0.0
    %2624 = vmatprep.subr.mxu0 0.0
    %2625 = vmatpush2.msra.mxu0 0.0
    %2626 = vmatprep.subr.mxu0 0.0
    %2627 = vmatpush2.msra.mxu0 0.0
    %2628 = vmatprep.subr.mxu0 0.0
    %2629 = vmatpush2.msra.mxu0 0.0
    %2630 = vmatprep.mubr.f32.mxu0 0.0
    %2631 = vmatmul.mubr.f32.gmra.mxu0 %v2561
    %v2632 = vpop.f32.mrf.mxu0
    %v2633 = vadd.f32 %v2559, %v2632
    %v2634 = vpop.f32.mrf.mxu0
    %2635 = vmatprep.mubr.f32.mxu0 0.0
    %2636 = vmatmul.mubr.f32.gmra.mxu0 %v2564
    %v2637 = vpop.f32.mrf.mxu0
    %v2638 = vadd.f32 %v2559, %v2637
    %v2639 = vpop.f32.mrf.mxu0
    %2640 = vdwg.mxu0
    %v2641 = vmul.f32 %v2633, %v2633
    %v2642 = vmul.f32 %v2638, %v2638
    %v2643 = vmul.f32 %v2633, %v2641
    %v2644 = vmul.f32 %v2638, %v2642
    %v2645 = vmul.f32 %v2643, 0.044715
    %v2646 = vmul.f32 %v2644, 0.044715
    %v2647 = vadd.f32 %v2633, %v2645
    %v2648 = vadd.f32 %v2638, %v2646
    %v2649 = vmul.f32 %v2647, 0.7978846
    %v2650 = vmul.f32 %v2648, 0.7978846
    %v2651 = vtanh.pop %v2649
    %v2652 = vtanh.pop %v2650
    %v2653 = vadd.f32 %v2651, 1.0
    %v2654 = vadd.f32 %v2652, 1.0
    %v2655 = vmul.f32 %v2653, 0.5
    %v2656 = vmul.f32 %v2654, 0.5
    %v2657 = vmul.f32 %v2633, %v2655
    %v2658 = vmul.f32 %v2638, %v2656
    %s2659 = scalar_lea.vmem %s12, 128
    %v2660 = vld [vmem:[%s2659] sm:$0xff]
    %v2661 = vld [vmem:[%s2659 + $0x8] sm:$0xff]
    %v2662 = vld [vmem:[%s2659 + $0x10] sm:$0xff]
    %v2663 = vld [vmem:[%s2659 + $0x18] sm:$0xff]
    %v2664 = vld [vmem:[%s2659 + $0x20] sm:$0xff]
    %v2665 = vld [vmem:[%s2659 + $0x28] sm:$0xff]
    %v2666 = vld [vmem:[%s2659 + $0x30] sm:$0xff]
    %v2667 = vld [vmem:[%s2659 + $0x38] sm:$0xff]
    %v2668 = vld [vmem:[%s2659 + $0x40] sm:$0xff]
    %v2669 = vld [vmem:[%s2659 + $0x48] sm:$0xff]
    %v2670 = vld [vmem:[%s2659 + $0x50] sm:$0xff]
    %v2671 = vld [vmem:[%s2659 + $0x58] sm:$0xff]
    %v2672 = vld [vmem:[%s2659 + $0x60] sm:$0xff]
    %v2673 = vld [vmem:[%s2659 + $0x68] sm:$0xff]
    %v2674 = vld [vmem:[%s2659 + $0x70] sm:$0xff]
    %v2675 = vld [vmem:[%s2659 + $0x78] sm:$0xff]
    %2676 = vmatprep.subr.mxu0 0.0
    %2677 = vmatpush1.msra.mxu0 %v2675
    %2678 = vmatprep.subr.mxu0 0.0
    %2679 = vmatpush1.msra.mxu0 %v2674
    %2680 = vmatprep.subr.mxu0 0.0
    %2681 = vmatpush1.msra.mxu0 %v2673
    %2682 = vmatprep.subr.mxu0 0.0
    %2683 = vmatpush1.msra.mxu0 %v2672
    %2684 = vmatprep.subr.mxu0 0.0
    %2685 = vmatpush1.msra.mxu0 %v2671
    %2686 = vmatprep.subr.mxu0 0.0
    %2687 = vmatpush1.msra.mxu0 %v2670
    %2688 = vmatprep.subr.mxu0 0.0
    %2689 = vmatpush1.msra.mxu0 %v2669
    %2690 = vmatprep.subr.mxu0 0.0
    %2691 = vmatpush1.msra.mxu0 %v2668
    %2692 = vmatprep.subr.mxu0 0.0
    %2693 = vmatpush1.msra.mxu0 %v2667
    %2694 = vmatprep.subr.mxu0 0.0
    %2695 = vmatpush1.msra.mxu0 %v2666
    %2696 = vmatprep.subr.mxu0 0.0
    %2697 = vmatpush1.msra.mxu0 %v2665
    %2698 = vmatprep.subr.mxu0 0.0
    %2699 = vmatpush1.msra.mxu0 %v2664
    %2700 = vmatprep.subr.mxu0 0.0
    %2701 = vmatpush1.msra.mxu0 %v2663
    %2702 = vmatprep.subr.mxu0 0.0
    %2703 = vmatpush1.msra.mxu0 %v2662
    %2704 = vmatprep.subr.mxu0 0.0
    %2705 = vmatpush1.msra.mxu0 %v2661
    %2706 = vmatprep.subr.mxu0 0.0
    %2707 = vmatpush1.msra.mxu0 %v2660
    %2708 = vmatprep.subr.mxu0 0.0
    %2709 = vmatpush2.msra.mxu0 0.0
    %2710 = vmatprep.subr.mxu0 0.0
    %2711 = vmatpush2.msra.mxu0 0.0
    %2712 = vmatprep.subr.mxu0 0.0
    %2713 = vmatpush2.msra.mxu0 0.0
    %2714 = vmatprep.subr.mxu0 0.0
    %2715 = vmatpush2.msra.mxu0 0.0
    %2716 = vmatprep.subr.mxu0 0.0
    %2717 = vmatpush2.msra.mxu0 0.0
    %2718 = vmatprep.subr.mxu0 0.0
    %2719 = vmatpush2.msra.mxu0 0.0
    %2720 = vmatprep.subr.mxu0 0.0
    %2721 = vmatpush2.msra.mxu0 0.0
    %2722 = vmatprep.subr.mxu0 0.0
    %2723 = vmatpush2.msra.mxu0 0.0
    %2724 = vmatprep.subr.mxu0 0.0
    %2725 = vmatpush2.msra.mxu0 0.0
    %2726 = vmatprep.subr.mxu0 0.0
    %2727 = vmatpush2.msra.mxu0 0.0
    %2728 = vmatprep.subr.mxu0 0.0
    %2729 = vmatpush2.msra.mxu0 0.0
    %2730 = vmatprep.subr.mxu0 0.0
    %2731 = vmatpush2.msra.mxu0 0.0
    %2732 = vmatprep.subr.mxu0 0.0
    %2733 = vmatpush2.msra.mxu0 0.0
    %2734 = vmatprep.subr.mxu0 0.0
    %2735 = vmatpush2.msra.mxu0 0.0
    %2736 = vmatprep.subr.mxu0 0.0
    %2737 = vmatpush2.msra.mxu0 0.0
    %2738 = vmatprep.subr.mxu0 0.0
    %2739 = vmatpush2.msra.mxu0 0.0
    %2740 = vmatprep.mubr.f32.mxu0 0.0
    %2741 = vmatmul.mubr.f32.gmra.mxu0 %v2657
    %v2742 = vpop.f32.mrf.mxu0
    %v2743 = vadd.f32 0.0, %v2742
    %v2744 = vpop.f32.mrf.mxu0
    %2745 = vmatprep.mubr.f32.mxu0 0.0
    %2746 = vmatmul.mubr.f32.gmra.mxu0 %v2658
    %v2747 = vpop.f32.mrf.mxu0
    %v2748 = vadd.f32 0.0, %v2747
    %v2749 = vpop.f32.mrf.mxu0
    %2750 = vdwg.mxu0
    %v2751 = vadd.f32 %v2511, %v2743
    %v2752 = vadd.f32 %v2512, %v2748
    %v2753 = vlaneseq
    %v2754 = vshrl.u32 %v2753, 7
    %v2755 = vsub.s32 1, %v2754
    %v2756 = vrot.slane %v68, %v2755
    %v2757 = vadd.f32 %v2751, %v2756
    %v2758 = vadd.f32 %v2752, %v2756
    %v2759 = vld [vmem:[%s14] sm:$0x1]
    %v2760 = vld [vmem:[%s15] sm:$0x1]
    %v2761 = vsel %vm69, %v2757, 0.0
    %2762 = vadd.xlane.f32.xlu0 %v2761
    %v2763 = vpop.xlane.xlu0 %2762
    %v2764 = vsel %vm69, %v2758, 0.0
    %2765 = vadd.xlane.f32.xlu0 %v2764
    %v2766 = vpop.xlane.xlu0 %2765
    %v2767 = vmul.f32 %v2763, %v76
    %v2768 = vmul.f32 %v2766, %v76
    %v2769 = vsub.f32 %v2757, %v2767
    %v2770 = vsub.f32 %v2758, %v2768
    %v2771 = vmul.f32 %v2769, %v2769
    %v2772 = vmul.f32 %v2770, %v2770
    %v2773 = vsel %vm69, %v2771, 0.0
    %2774 = vadd.xlane.f32.xlu0 %v2773
    %v2775 = vpop.xlane.xlu0 %2774
    %v2776 = vsel %vm69, %v2772, 0.0
    %2777 = vadd.xlane.f32.xlu0 %v2776
    %v2778 = vpop.xlane.xlu0 %2777
    %v2779 = vmul.f32 %v2775, %v76
    %v2780 = vmul.f32 %v2778, %v76
    %v2781 = vadd.f32 %v2779, 1e-05
    %v2782 = vadd.f32 %v2780, 1e-05
    %v2783 = vrsqrt.pop %v2781
    %v2784 = vrsqrt.pop %v2782
    %v2785 = vmul.f32 %v2769, %v2783
    %v2786 = vmul.f32 %v2770, %v2784
    %v2788 = vlaneseq
    %v2789 = vshrl.u32 %v2788, 7
    %v2790 = vsub.s32 0, %v2789
    %v2791 = vrot.slane %v2759, %v2790
    %v2793 = vmul.f32 %v2785, %v2791
    %v2794 = vmul.f32 %v2786, %v2791
    %v2796 = vlaneseq
    %v2797 = vshrl.u32 %v2796, 7
    %v2798 = vsub.s32 0, %v2797
    %v2799 = vrot.slane %v2760, %v2798
    %v2801 = vadd.f32 %v2793, %v2799
    %v2802 = vadd.f32 %v2794, %v2799
    %v2803 = vld [vmem:[%s16] sm:$0xff]
    %v2804 = vld [vmem:[%s16 + $0x8] sm:$0xff]
    %v2805 = vld [vmem:[%s16 + $0x10] sm:$0xff]
    %v2806 = vld [vmem:[%s16 + $0x18] sm:$0xff]
    %v2808 = vsel %vm69, %v2801, 0
    %v2811 = vsel %vm69, %v2802, 0
    %2813 = vmatprep.subr.mxu0 0.0
    %2814 = vmatpush1.msra.mxu0 0.0
    %2815 = vmatprep.subr.mxu0 0.0
    %2816 = vmatpush1.msra.mxu0 0.0
    %2817 = vmatprep.subr.mxu0 0.0
    %2818 = vmatpush1.msra.mxu0 0.0
    %2819 = vmatprep.subr.mxu0 0.0
    %2820 = vmatpush1.msra.mxu0 0.0
    %2821 = vmatprep.subr.mxu0 0.0
    %2822 = vmatpush1.msra.mxu0 0.0
    %2823 = vmatprep.subr.mxu0 0.0
    %2824 = vmatpush1.msra.mxu0 0.0
    %2825 = vmatprep.subr.mxu0 0.0
    %2826 = vmatpush1.msra.mxu0 0.0
    %2827 = vmatprep.subr.mxu0 0.0
    %2828 = vmatpush1.msra.mxu0 0.0
    %2829 = vmatprep.subr.mxu0 0.0
    %2830 = vmatpush1.msra.mxu0 0.0
    %2831 = vmatprep.subr.mxu0 0.0
    %2832 = vmatpush1.msra.mxu0 0.0
    %2833 = vmatprep.subr.mxu0 0.0
    %2834 = vmatpush1.msra.mxu0 0.0
    %2835 = vmatprep.subr.mxu0 0.0
    %2836 = vmatpush1.msra.mxu0 0.0
    %2837 = vmatprep.subr.mxu0 0.0
    %2838 = vmatpush1.msra.mxu0 %v2806
    %2839 = vmatprep.subr.mxu0 0.0
    %2840 = vmatpush1.msra.mxu0 %v2805
    %2841 = vmatprep.subr.mxu0 0.0
    %2842 = vmatpush1.msra.mxu0 %v2804
    %2843 = vmatprep.subr.mxu0 0.0
    %2844 = vmatpush1.msra.mxu0 %v2803
    %2845 = vmatprep.subr.mxu0 0.0
    %2846 = vmatpush2.msra.mxu0 0.0
    %2847 = vmatprep.subr.mxu0 0.0
    %2848 = vmatpush2.msra.mxu0 0.0
    %2849 = vmatprep.subr.mxu0 0.0
    %2850 = vmatpush2.msra.mxu0 0.0
    %2851 = vmatprep.subr.mxu0 0.0
    %2852 = vmatpush2.msra.mxu0 0.0
    %2853 = vmatprep.subr.mxu0 0.0
    %2854 = vmatpush2.msra.mxu0 0.0
    %2855 = vmatprep.subr.mxu0 0.0
    %2856 = vmatpush2.msra.mxu0 0.0
    %2857 = vmatprep.subr.mxu0 0.0
    %2858 = vmatpush2.msra.mxu0 0.0
    %2859 = vmatprep.subr.mxu0 0.0
    %2860 = vmatpush2.msra.mxu0 0.0
    %2861 = vmatprep.subr.mxu0 0.0
    %2862 = vmatpush2.msra.mxu0 0.0
    %2863 = vmatprep.subr.mxu0 0.0
    %2864 = vmatpush2.msra.mxu0 0.0
    %2865 = vmatprep.subr.mxu0 0.0
    %2866 = vmatpush2.msra.mxu0 0.0
    %2867 = vmatprep.subr.mxu0 0.0
    %2868 = vmatpush2.msra.mxu0 0.0
    %2869 = vmatprep.subr.mxu0 0.0
    %2870 = vmatpush2.msra.mxu0 0.0
    %2871 = vmatprep.subr.mxu0 0.0
    %2872 = vmatpush2.msra.mxu0 0.0
    %2873 = vmatprep.subr.mxu0 0.0
    %2874 = vmatpush2.msra.mxu0 0.0
    %2875 = vmatprep.subr.mxu0 0.0
    %2876 = vmatpush2.msra.mxu0 0.0
    %2877 = vmatprep.mubr.f32.mxu0 0.0
    %2878 = vmatmul.mubr.f32.gmra.mxu0 %v2808
    %v2879 = vpop.f32.mrf.mxu0
    %v2880 = vadd.f32 0.0, %v2879
    %v2881 = vpop.f32.mrf.mxu0
    %2882 = vmatprep.mubr.f32.mxu0 0.0
    %2883 = vmatmul.mubr.f32.gmra.mxu0 %v2811
    %v2884 = vpop.f32.mrf.mxu0
    %v2885 = vadd.f32 0.0, %v2884
    %v2886 = vpop.f32.mrf.mxu0
    %2887 = vdwg.mxu0
    %2888 = vst [vmem:[#allocation2] sm:$0xff] %v2880
    %2889 = vst [vmem:[#allocation2 + $0x8] sm:$0xff] %v2885
    // Predicated region
    $region70: #{sonnet_gpt_forward.1} parent=1 // pred_check
      _
    $region71: #{sonnet_gpt_forward.1} parent=1 // pred_check_branch
      %2891 = sbr.rel (0) target = $region73
    $region72: #{sonnet_gpt_forward.1} parent=1 // pred_region
      %s2893 = ssub.s32 256, 256
      %2894 = vsyncadd [#allocation3], %s2893
      %s2895 = sshll.u32 [#allocation2], 4
      %s2896 = int_to_ptr.vmem [resolvable:$true] %s2895
      %2901 = dma.vmem_to_hbm [thread:$0]  %s2896, 256, %s17, [#allocation3], 128, 128, 8
    $region73: #{sonnet_gpt_forward.1} parent=1 // pred_fallthru
      _
    // Predicated region
    $region74: #{sonnet_gpt_forward.1} parent=1 // pred_check
      _
    $region75: #{sonnet_gpt_forward.1} parent=1 // pred_check_branch
      %2903 = sbr.rel (0) target = $region77
    $region76: #{sonnet_gpt_forward.1} parent=1 // pred_region
      %2904 = dma.done [#allocation3], 256
    $region77: #{sonnet_gpt_forward.1} parent=1 // pred_fallthru
      _
    %2905 = vsyncpa [#allocation3], 1

</llo_original>
